<compile_context>
chip_gen: v7x
topology: tpu7x:2x2x1
jax: 0.10.0
libtpu: 0.0.40
codegen_flags: <defaults>
</compile_context>

<pallas_src>
import functools

import jax
import jax.numpy as jnp
from jax import lax
from jax.experimental import pallas as pl
from jax.experimental.pallas import tpu as pltpu


def _coattn_kernel(xcat_ref, wng_ref, wtail_ref, ball_ref, out_ref,
                   *, Bt, L, E, OUT, D):
    f32 = jnp.float32

    # (Bt, L, 3E) -> (Bt*L, 3E): single large-M operand for the fused matmul.
    xcat = xcat_ref[...].reshape(Bt * L, 3 * E)

    w_tail = wtail_ref[...]                 # (E, E+OUT) = [W_b | W_label^T]
    w_b = w_tail[:, :E]                     # (E, E)
    w_lab = w_tail[:, E:]                   # (E, OUT)
    b_all = ball_ref[...]                   # (1, 3E+OUT)
    b_ng = b_all[:, :3 * E]                 # (1, 3E) = [b_uni | b_bi | b_tri]
    b_lab = b_all[:, 3 * E:]                # (1, OUT)

    # Fused n-gram Conv1d stage: one (Bt*L,3E) x (3E,3E) matmul producing the
    # [uni | bi | tri] column groups, then one tanh on the slab.
    h = jnp.tanh(jnp.dot(xcat, wng_ref[...], preferred_element_type=f32)
                 + b_ng)                                        # (Bt*L, 3E)

    # MaxPool2d(kernel=(3,1)) over the three n-gram channels.
    k = jnp.maximum(jnp.maximum(h[:, :E], h[:, E:2 * E]), h[:, 2 * E:])  # (Bt*L, E)

    # K @ W_b for all Bt sequences in one matmul.
    kw = jnp.dot(k, w_b, preferred_element_type=f32)            # (Bt*L, E)

    # Per-sequence coattention, unrolled so different batch elements'
    # MXU / XLU / EUP work can interleave.
    aq_rows = []
    fp_rows = []
    for b in range(Bt):
        kb = k[b * L:(b + 1) * L, :]                            # (L, E)
        kwb = kw[b * L:(b + 1) * L, :]                          # (L, E)
        # ct = C^T where C = tanh((K W_b) K^T); row layout keeps a_q lane-dense.
        ct = jnp.tanh(lax.dot_general(kb, kwb, (((1,), (1,)), ((), ())),
                                      preferred_element_type=f32))   # (L, L)
        # MaxPool1d(kernel=D): max over first D columns of C == first D rows of C^T.
        max_cow = jnp.max(ct[:D, :], axis=0, keepdims=True)     # (1, L)
        # softmax over the sequence axis (lane axis here).
        m = jnp.max(max_cow, axis=1, keepdims=True)
        e = jnp.exp(max_cow - m)
        aq = e * pl.reciprocal(jnp.sum(e, axis=1, keepdims=True),
                               approx=True)                     # (1, L)
        # f_p = a_q^T @ K  -> (1, E)
        fp = jnp.dot(aq, kb, preferred_element_type=f32)        # (1, E)
        aq_rows.append(aq)
        fp_rows.append(fp)

    aq_all = jnp.concatenate(aq_rows, axis=0)                   # (Bt, L)
    fp_all = jnp.concatenate(fp_rows, axis=0)                   # (Bt, E)

    # final = f_p @ W_label^T + b_label for all Bt at once.
    final = jnp.dot(fp_all, w_lab, preferred_element_type=f32) + b_lab  # (Bt, OUT)

    # Single lane-dense output slab: [final | a_q].
    out_ref[...] = jnp.concatenate([final, aq_all], axis=1)     # (Bt, OUT+L)


def coattention_forward(input_sentence, params, *, block_b=8):
    emb_table = params["emb_table"]                    # (V, E)
    B, L = input_sentence.shape
    E = emb_table.shape[1]
    OUT = params["w_label"].shape[0]
    D = E                                              # MaxPool1d kernel size

    # Original module semantics require exactly one max-pool window:
    assert D <= L <= 2 * D - 1, "need E <= L <= 2E-1 for MaxPool1d/squeeze"
    assert L % 8 == 0 and E % 8 == 0, "sublane alignment"
    Bt = block_b
    assert B % Bt == 0, "batch must be a multiple of the per-step block"

    # Glue: embedding gather + shifted views packed into ONE [xp | x | xn]
    # slab (single kernel input, single matmul operand).
    x = jnp.take(emb_table, input_sentence, axis=0).astype(jnp.float32)  # (B,L,E)
    zeros = jnp.zeros((B, 1, E), x.dtype)
    xp = jnp.concatenate([zeros, x[:, :-1]], axis=1)   # x[l-1]
    xn = jnp.concatenate([x[:, 1:], zeros], axis=1)    # x[l+1]
    xcat = jnp.concatenate([xp, x, xn], axis=-1)       # (B, L, 3E)

    # Fused block-structured n-gram weight:
    #   [xp | x | xn] @ W_ng = [uni | bi | tri]   (pre-bias, pre-tanh)
    w1 = params["w_uni"][:, :, 0].T
    w2a = params["w_bi"][:, :, 0].T
    w2b = params["w_bi"][:, :, 1].T
    w3a = params["w_tri"][:, :, 0].T
    w3b = params["w_tri"][:, :, 1].T
    w3c = params["w_tri"][:, :, 2].T
    Z = jnp.zeros((E, E), jnp.float32)
    w_ng = jnp.block([[Z, w2a, w3a],
                      [w1, w2b, w3b],
                      [Z, Z, w3c]])                                    # (3E, 3E)

    # Remaining weights packed into one slab, all biases into one row.
    w_tail = jnp.concatenate([params["w_b"], params["w_label"].T], axis=1)   # (E, E+OUT)
    b_all = jnp.concatenate([params["b_uni"], params["b_bi"],
                             params["b_tri"], params["b_label"]])[None, :]   # (1, 3E+OUT)

    kernel = functools.partial(_coattn_kernel, Bt=Bt, L=L, E=E, OUT=OUT, D=D)
    out = pl.pallas_call(
        kernel,
        out_shape=jax.ShapeDtypeStruct((B, OUT + L), jnp.float32),
        grid_spec=pltpu.PrefetchScalarGridSpec(
            num_scalar_prefetch=0,
            grid=(B // Bt,),
            in_specs=[
                pl.BlockSpec((Bt, L, 3 * E), lambda i: (i, 0, 0)),
                pl.BlockSpec((3 * E, 3 * E), lambda i: (0, 0)),
                pl.BlockSpec((E, E + OUT), lambda i: (0, 0)),
                pl.BlockSpec((1, 3 * E + OUT), lambda i: (0, 0)),
            ],
            out_specs=pl.BlockSpec((Bt, OUT + L), lambda i: (i, 0)),
        ),
        compiler_params=pltpu.CompilerParams(
            dimension_semantics=("parallel",)),
    )(xcat, w_ng, w_tail, b_all)

    final = out[:, :OUT]          # (B, OUT)
    a_q = out[:, OUT:]            # (B, L)   == squeeze(f_p1, 2)
    return final, a_q


def reference_forward(input_sentence, params):
    """Pure-JAX mirror of CoattentionNet.forward (eval mode) for checking."""
    x = jnp.take(params["emb_table"], input_sentence, axis=0)   # (B, L, E)
    B, L, E = x.shape
    zeros = jnp.zeros((B, 1, E), x.dtype)
    xp = jnp.concatenate([zeros, x[:, :-1]], axis=1)
    xn = jnp.concatenate([x[:, 1:], zeros], axis=1)
    uni = jnp.tanh(x @ params["w_uni"][:, :, 0].T + params["b_uni"])
    bi = jnp.tanh(xp @ params["w_bi"][:, :, 0].T
                  + x @ params["w_bi"][:, :, 1].T + params["b_bi"])
    tri = jnp.tanh(xp @ params["w_tri"][:, :, 0].T
                   + x @ params["w_tri"][:, :, 1].T
                   + xn @ params["w_tri"][:, :, 2].T + params["b_tri"])
    k = jnp.maximum(jnp.maximum(uni, bi), tri)                  # (B, L, E)
    c = jnp.tanh(jnp.einsum("ble,ef,bmf->blm", k, params["w_b"], k))
    max_cow = jnp.max(c[:, :, :E], axis=2)                      # (B, L)
    a_q = jax.nn.softmax(max_cow, axis=1)
    f_p = jnp.einsum("bl,ble->be", a_q, k)
    final = f_p @ params["w_label"].T + params["b_label"]
    return final, a_q


def init_params(key, vocab_size, embedding_length, output_size):
    ks = jax.random.split(key, 10)
    n = lambda k, shape, s=0.1: (s * jax.random.normal(k, shape)).astype(jnp.float32)
    return {
        "emb_table": n(ks[0], (vocab_size, embedding_length), 1.0),
        "w_uni": n(ks[1], (embedding_length, embedding_length, 1)),
        "b_uni": n(ks[2], (embedding_length,)),
        "w_bi": n(ks[3], (embedding_length, embedding_length, 2)),
        "b_bi": n(ks[4], (embedding_length,)),
        "w_tri": n(ks[5], (embedding_length, embedding_length, 3)),
        "b_tri": n(ks[6], (embedding_length,)),
        "w_b": n(ks[7], (embedding_length, embedding_length)),
        "w_label": n(ks[8], (output_size, embedding_length)),
        "b_label": n(ks[9], (output_size,)),
    }


if __name__ == "__main__":
    # seq_len L must satisfy E <= L <= 2E-1 for the MaxPool1d(kernel=E) /
    # squeeze pattern in the original module; use L == E. B=16 with Bt=8 gives
    # a 2-step batch-parallel grid (both v7x TensorCores busy, M=256 matmuls).
    B, L, V, E, OUT = 16, 32, 50, 32, 8

    key = jax.random.PRNGKey(0)
    k_params, k_inp = jax.random.split(key)
    params = init_params(k_params, vocab_size=V, embedding_length=E,
                         output_size=OUT)
    input_sentence = jax.random.randint(k_inp, (B, L), 0, V, dtype=jnp.int32)

    final, a_q = coattention_forward(input_sentence, params, block_b=8)
    jax.block_until_ready((final, a_q))

    ref_final, ref_aq = reference_forward(input_sentence, params)
    assert final.shape == (B, OUT) and a_q.shape == (B, L)
    assert jnp.allclose(final, ref_final, rtol=1e-2, atol=1e-2)
    assert jnp.allclose(a_q, ref_aq, rtol=1e-2, atol=1e-2)

    # TODO(synk): PositionalEncoder / word_parallel / `heat` are constructed
    # but never used in CoattentionNet.forward, so they are intentionally
    # not implemented.
    print("KERNEL_OK")
</pallas_src>

<mosaic_0001>
module attributes {stable_mosaic.version = 11 : i64} {
  func.func @_coattn_kernel(%arg0: i32, %arg1: memref<8x32x96xf32, #tpu.memory_space<vmem>>, %arg2: memref<96x96xf32, #tpu.memory_space<vmem>>, %arg3: memref<32x40xf32, #tpu.memory_space<vmem>>, %arg4: memref<1x104xf32, #tpu.memory_space<vmem>>, %arg5: memref<8x40xf32, #tpu.memory_space<vmem>>) attributes {dimension_semantics = [#tpu.dimension_semantics<parallel>], iteration_bounds = array<i64: 2>, scalar_prefetch = 0 : i64, scratch_operands = 0 : i64, tpu.core_type = #tpu.core_type<tc>, window_params = [{transform_indices = @transform_0, window_bounds = array<i64: 8, 32, 96>}, {pipeline_mode = #tpu.pipeline_mode<synchronous>, transform_indices = @transform_1, window_bounds = array<i64: 96, 96>}, {pipeline_mode = #tpu.pipeline_mode<synchronous>, transform_indices = @transform_2, window_bounds = array<i64: 32, 40>}, {pipeline_mode = #tpu.pipeline_mode<synchronous>, transform_indices = @transform_3, window_bounds = array<i64: 1, 104>}, {transform_indices = @transform_4, window_bounds = array<i64: 8, 40>}]} {
    %c0 = arith.constant 0 : index
    %c0_0 = arith.constant 0 : index
    %c0_1 = arith.constant 0 : index
    %0 = vector.load %arg1[%c0, %c0_0, %c0_1] : memref<8x32x96xf32, #tpu.memory_space<vmem>>, vector<8x32x96xf32>
    %1 = vector.shape_cast %0 : vector<8x32x96xf32> to vector<256x96xf32>
    %c0_2 = arith.constant 0 : index
    %c0_3 = arith.constant 0 : index
    %2 = vector.load %arg3[%c0_2, %c0_3] : memref<32x40xf32, #tpu.memory_space<vmem>>, vector<32x40xf32>
    %3 = vector.extract_strided_slice %2 {offsets = [0, 0], sizes = [32, 32], strides = [1, 1]} : vector<32x40xf32> to vector<32x32xf32>
    %4 = vector.extract_strided_slice %2 {offsets = [0, 32], sizes = [32, 8], strides = [1, 1]} : vector<32x40xf32> to vector<32x8xf32>
    %c0_4 = arith.constant 0 : index
    %c0_5 = arith.constant 0 : index
    %5 = vector.load %arg4[%c0_4, %c0_5] : memref<1x104xf32, #tpu.memory_space<vmem>>, vector<1x104xf32>
    %6 = vector.extract_strided_slice %5 {offsets = [0, 0], sizes = [1, 96], strides = [1, 1]} : vector<1x104xf32> to vector<1x96xf32>
    %7 = vector.extract_strided_slice %5 {offsets = [0, 96], sizes = [1, 8], strides = [1, 1]} : vector<1x104xf32> to vector<1x8xf32>
    %c0_6 = arith.constant 0 : index
    %c0_7 = arith.constant 0 : index
    %8 = vector.load %arg2[%c0_6, %c0_7] : memref<96x96xf32, #tpu.memory_space<vmem>>, vector<96x96xf32>
    %cst = arith.constant dense<0.000000e+00> : vector<256x96xf32>
    %9 = tpu.matmul %1, %8, %cst {dimension_numbers = #tpu.dot_dimension_numbers<[1], [0], [0], [1], [0, 0, 1, 1], [], []>} : vector<256x96xf32>, vector<96x96xf32>, vector<256x96xf32> -> vector<256x96xf32>
    %10 = vector.broadcast %6 : vector<1x96xf32> to vector<256x96xf32>
    %11 = arith.addf %9, %10 : vector<256x96xf32>
    %12 = math.tanh %11 : vector<256x96xf32>
    %13 = vector.extract_strided_slice %12 {offsets = [0, 0], sizes = [256, 32], strides = [1, 1]} : vector<256x96xf32> to vector<256x32xf32>
    %14 = vector.extract_strided_slice %12 {offsets = [0, 32], sizes = [256, 32], strides = [1, 1]} : vector<256x96xf32> to vector<256x32xf32>
    %15 = arith.maximumf %13, %14 : vector<256x32xf32>
    %16 = vector.extract_strided_slice %12 {offsets = [0, 64], sizes = [256, 32], strides = [1, 1]} : vector<256x96xf32> to vector<256x32xf32>
    %17 = arith.maximumf %15, %16 : vector<256x32xf32>
    %cst_8 = arith.constant dense<0.000000e+00> : vector<256x32xf32>
    %18 = tpu.matmul %17, %3, %cst_8 {dimension_numbers = #tpu.dot_dimension_numbers<[1], [0], [0], [1], [0, 0, 1, 1], [], []>} : vector<256x32xf32>, vector<32x32xf32>, vector<256x32xf32> -> vector<256x32xf32>
    %19 = vector.extract_strided_slice %17 {offsets = [0, 0], sizes = [32, 32], strides = [1, 1]} : vector<256x32xf32> to vector<32x32xf32>
    %20 = vector.extract_strided_slice %18 {offsets = [0, 0], sizes = [32, 32], strides = [1, 1]} : vector<256x32xf32> to vector<32x32xf32>
    %cst_9 = arith.constant dense<0.000000e+00> : vector<32x32xf32>
    %21 = tpu.matmul %19, %20, %cst_9 {dimension_numbers = #tpu.dot_dimension_numbers<[1], [1], [0], [0], [0, 0, 1, 0], [], []>} : vector<32x32xf32>, vector<32x32xf32>, vector<32x32xf32> -> vector<32x32xf32>
    %22 = math.tanh %21 : vector<32x32xf32>
    %cst_10 = arith.constant dense<0xFF800000> : vector<32xf32>
    %23 = vector.multi_reduction <maximumf>, %22, %cst_10 [0] : vector<32x32xf32> to vector<32xf32>
    %24 = vector.shape_cast %23 : vector<32xf32> to vector<1x32xf32>
    %cst_11 = arith.constant dense<0xFF800000> : vector<1xf32>
    %25 = vector.multi_reduction <maximumf>, %24, %cst_11 [1] : vector<1x32xf32> to vector<1xf32>
    %26 = vector.shape_cast %25 : vector<1xf32> to vector<1x1xf32>
    %27 = vector.broadcast %26 : vector<1x1xf32> to vector<1x32xf32>
    %28 = arith.subf %24, %27 : vector<1x32xf32>
    %29 = math.exp %28 : vector<1x32xf32>
    %cst_12 = arith.constant dense<0.000000e+00> : vector<1xf32>
    %30 = vector.multi_reduction <add>, %29, %cst_12 [1] : vector<1x32xf32> to vector<1xf32>
    %31 = vector.shape_cast %30 : vector<1xf32> to vector<1x1xf32>
    %32 = tpu.reciprocal %31 {approx = true} : vector<1x1xf32> -> vector<1x1xf32>
    %33 = vector.broadcast %32 : vector<1x1xf32> to vector<1x32xf32>
    %34 = arith.mulf %29, %33 : vector<1x32xf32>
    %cst_13 = arith.constant dense<0.000000e+00> : vector<1x32xf32>
    %35 = tpu.matmul %34, %19, %cst_13 {dimension_numbers = #tpu.dot_dimension_numbers<[1], [0], [0], [1], [0, 0, 1, 1], [], []>} : vector<1x32xf32>, vector<32x32xf32>, vector<1x32xf32> -> vector<1x32xf32>
    %36 = vector.extract_strided_slice %17 {offsets = [32, 0], sizes = [32, 32], strides = [1, 1]} : vector<256x32xf32> to vector<32x32xf32>
    %37 = vector.extract_strided_slice %18 {offsets = [32, 0], sizes = [32, 32], strides = [1, 1]} : vector<256x32xf32> to vector<32x32xf32>
    %cst_14 = arith.constant dense<0.000000e+00> : vector<32x32xf32>
    %38 = tpu.matmul %36, %37, %cst_14 {dimension_numbers = #tpu.dot_dimension_numbers<[1], [1], [0], [0], [0, 0, 1, 0], [], []>} : vector<32x32xf32>, vector<32x32xf32>, vector<32x32xf32> -> vector<32x32xf32>
    %39 = math.tanh %38 : vector<32x32xf32>
    %cst_15 = arith.constant dense<0xFF800000> : vector<32xf32>
    %40 = vector.multi_reduction <maximumf>, %39, %cst_15 [0] : vector<32x32xf32> to vector<32xf32>
    %41 = vector.shape_cast %40 : vector<32xf32> to vector<1x32xf32>
    %cst_16 = arith.constant dense<0xFF800000> : vector<1xf32>
    %42 = vector.multi_reduction <maximumf>, %41, %cst_16 [1] : vector<1x32xf32> to vector<1xf32>
    %43 = vector.shape_cast %42 : vector<1xf32> to vector<1x1xf32>
    %44 = vector.broadcast %43 : vector<1x1xf32> to vector<1x32xf32>
    %45 = arith.subf %41, %44 : vector<1x32xf32>
    %46 = math.exp %45 : vector<1x32xf32>
    %cst_17 = arith.constant dense<0.000000e+00> : vector<1xf32>
    %47 = vector.multi_reduction <add>, %46, %cst_17 [1] : vector<1x32xf32> to vector<1xf32>
    %48 = vector.shape_cast %47 : vector<1xf32> to vector<1x1xf32>
    %49 = tpu.reciprocal %48 {approx = true} : vector<1x1xf32> -> vector<1x1xf32>
    %50 = vector.broadcast %49 : vector<1x1xf32> to vector<1x32xf32>
    %51 = arith.mulf %46, %50 : vector<1x32xf32>
    %cst_18 = arith.constant dense<0.000000e+00> : vector<1x32xf32>
    %52 = tpu.matmul %51, %36, %cst_18 {dimension_numbers = #tpu.dot_dimension_numbers<[1], [0], [0], [1], [0, 0, 1, 1], [], []>} : vector<1x32xf32>, vector<32x32xf32>, vector<1x32xf32> -> vector<1x32xf32>
    %53 = vector.extract_strided_slice %17 {offsets = [64, 0], sizes = [32, 32], strides = [1, 1]} : vector<256x32xf32> to vector<32x32xf32>
    %54 = vector.extract_strided_slice %18 {offsets = [64, 0], sizes = [32, 32], strides = [1, 1]} : vector<256x32xf32> to vector<32x32xf32>
    %cst_19 = arith.constant dense<0.000000e+00> : vector<32x32xf32>
    %55 = tpu.matmul %53, %54, %cst_19 {dimension_numbers = #tpu.dot_dimension_numbers<[1], [1], [0], [0], [0, 0, 1, 0], [], []>} : vector<32x32xf32>, vector<32x32xf32>, vector<32x32xf32> -> vector<32x32xf32>
    %56 = math.tanh %55 : vector<32x32xf32>
    %cst_20 = arith.constant dense<0xFF800000> : vector<32xf32>
    %57 = vector.multi_reduction <maximumf>, %56, %cst_20 [0] : vector<32x32xf32> to vector<32xf32>
    %58 = vector.shape_cast %57 : vector<32xf32> to vector<1x32xf32>
    %cst_21 = arith.constant dense<0xFF800000> : vector<1xf32>
    %59 = vector.multi_reduction <maximumf>, %58, %cst_21 [1] : vector<1x32xf32> to vector<1xf32>
    %60 = vector.shape_cast %59 : vector<1xf32> to vector<1x1xf32>
    %61 = vector.broadcast %60 : vector<1x1xf32> to vector<1x32xf32>
    %62 = arith.subf %58, %61 : vector<1x32xf32>
    %63 = math.exp %62 : vector<1x32xf32>
    %cst_22 = arith.constant dense<0.000000e+00> : vector<1xf32>
    %64 = vector.multi_reduction <add>, %63, %cst_22 [1] : vector<1x32xf32> to vector<1xf32>
    %65 = vector.shape_cast %64 : vector<1xf32> to vector<1x1xf32>
    %66 = tpu.reciprocal %65 {approx = true} : vector<1x1xf32> -> vector<1x1xf32>
    %67 = vector.broadcast %66 : vector<1x1xf32> to vector<1x32xf32>
    %68 = arith.mulf %63, %67 : vector<1x32xf32>
    %cst_23 = arith.constant dense<0.000000e+00> : vector<1x32xf32>
    %69 = tpu.matmul %68, %53, %cst_23 {dimension_numbers = #tpu.dot_dimension_numbers<[1], [0], [0], [1], [0, 0, 1, 1], [], []>} : vector<1x32xf32>, vector<32x32xf32>, vector<1x32xf32> -> vector<1x32xf32>
    %70 = vector.extract_strided_slice %17 {offsets = [96, 0], sizes = [32, 32], strides = [1, 1]} : vector<256x32xf32> to vector<32x32xf32>
    %71 = vector.extract_strided_slice %18 {offsets = [96, 0], sizes = [32, 32], strides = [1, 1]} : vector<256x32xf32> to vector<32x32xf32>
    %cst_24 = arith.constant dense<0.000000e+00> : vector<32x32xf32>
    %72 = tpu.matmul %70, %71, %cst_24 {dimension_numbers = #tpu.dot_dimension_numbers<[1], [1], [0], [0], [0, 0, 1, 0], [], []>} : vector<32x32xf32>, vector<32x32xf32>, vector<32x32xf32> -> vector<32x32xf32>
    %73 = math.tanh %72 : vector<32x32xf32>
    %cst_25 = arith.constant dense<0xFF800000> : vector<32xf32>
    %74 = vector.multi_reduction <maximumf>, %73, %cst_25 [0] : vector<32x32xf32> to vector<32xf32>
    %75 = vector.shape_cast %74 : vector<32xf32> to vector<1x32xf32>
    %cst_26 = arith.constant dense<0xFF800000> : vector<1xf32>
    %76 = vector.multi_reduction <maximumf>, %75, %cst_26 [1] : vector<1x32xf32> to vector<1xf32>
    %77 = vector.shape_cast %76 : vector<1xf32> to vector<1x1xf32>
    %78 = vector.broadcast %77 : vector<1x1xf32> to vector<1x32xf32>
    %79 = arith.subf %75, %78 : vector<1x32xf32>
    %80 = math.exp %79 : vector<1x32xf32>
    %cst_27 = arith.constant dense<0.000000e+00> : vector<1xf32>
    %81 = vector.multi_reduction <add>, %80, %cst_27 [1] : vector<1x32xf32> to vector<1xf32>
    %82 = vector.shape_cast %81 : vector<1xf32> to vector<1x1xf32>
    %83 = tpu.reciprocal %82 {approx = true} : vector<1x1xf32> -> vector<1x1xf32>
    %84 = vector.broadcast %83 : vector<1x1xf32> to vector<1x32xf32>
    %85 = arith.mulf %80, %84 : vector<1x32xf32>
    %cst_28 = arith.constant dense<0.000000e+00> : vector<1x32xf32>
    %86 = tpu.matmul %85, %70, %cst_28 {dimension_numbers = #tpu.dot_dimension_numbers<[1], [0], [0], [1], [0, 0, 1, 1], [], []>} : vector<1x32xf32>, vector<32x32xf32>, vector<1x32xf32> -> vector<1x32xf32>
    %87 = vector.extract_strided_slice %17 {offsets = [128, 0], sizes = [32, 32], strides = [1, 1]} : vector<256x32xf32> to vector<32x32xf32>
    %88 = vector.extract_strided_slice %18 {offsets = [128, 0], sizes = [32, 32], strides = [1, 1]} : vector<256x32xf32> to vector<32x32xf32>
    %cst_29 = arith.constant dense<0.000000e+00> : vector<32x32xf32>
    %89 = tpu.matmul %87, %88, %cst_29 {dimension_numbers = #tpu.dot_dimension_numbers<[1], [1], [0], [0], [0, 0, 1, 0], [], []>} : vector<32x32xf32>, vector<32x32xf32>, vector<32x32xf32> -> vector<32x32xf32>
    %90 = math.tanh %89 : vector<32x32xf32>
    %cst_30 = arith.constant dense<0xFF800000> : vector<32xf32>
    %91 = vector.multi_reduction <maximumf>, %90, %cst_30 [0] : vector<32x32xf32> to vector<32xf32>
    %92 = vector.shape_cast %91 : vector<32xf32> to vector<1x32xf32>
    %cst_31 = arith.constant dense<0xFF800000> : vector<1xf32>
    %93 = vector.multi_reduction <maximumf>, %92, %cst_31 [1] : vector<1x32xf32> to vector<1xf32>
    %94 = vector.shape_cast %93 : vector<1xf32> to vector<1x1xf32>
    %95 = vector.broadcast %94 : vector<1x1xf32> to vector<1x32xf32>
    %96 = arith.subf %92, %95 : vector<1x32xf32>
    %97 = math.exp %96 : vector<1x32xf32>
    %cst_32 = arith.constant dense<0.000000e+00> : vector<1xf32>
    %98 = vector.multi_reduction <add>, %97, %cst_32 [1] : vector<1x32xf32> to vector<1xf32>
    %99 = vector.shape_cast %98 : vector<1xf32> to vector<1x1xf32>
    %100 = tpu.reciprocal %99 {approx = true} : vector<1x1xf32> -> vector<1x1xf32>
    %101 = vector.broadcast %100 : vector<1x1xf32> to vector<1x32xf32>
    %102 = arith.mulf %97, %101 : vector<1x32xf32>
    %cst_33 = arith.constant dense<0.000000e+00> : vector<1x32xf32>
    %103 = tpu.matmul %102, %87, %cst_33 {dimension_numbers = #tpu.dot_dimension_numbers<[1], [0], [0], [1], [0, 0, 1, 1], [], []>} : vector<1x32xf32>, vector<32x32xf32>, vector<1x32xf32> -> vector<1x32xf32>
    %104 = vector.extract_strided_slice %17 {offsets = [160, 0], sizes = [32, 32], strides = [1, 1]} : vector<256x32xf32> to vector<32x32xf32>
    %105 = vector.extract_strided_slice %18 {offsets = [160, 0], sizes = [32, 32], strides = [1, 1]} : vector<256x32xf32> to vector<32x32xf32>
    %cst_34 = arith.constant dense<0.000000e+00> : vector<32x32xf32>
    %106 = tpu.matmul %104, %105, %cst_34 {dimension_numbers = #tpu.dot_dimension_numbers<[1], [1], [0], [0], [0, 0, 1, 0], [], []>} : vector<32x32xf32>, vector<32x32xf32>, vector<32x32xf32> -> vector<32x32xf32>
    %107 = math.tanh %106 : vector<32x32xf32>
    %cst_35 = arith.constant dense<0xFF800000> : vector<32xf32>
    %108 = vector.multi_reduction <maximumf>, %107, %cst_35 [0] : vector<32x32xf32> to vector<32xf32>
    %109 = vector.shape_cast %108 : vector<32xf32> to vector<1x32xf32>
    %cst_36 = arith.constant dense<0xFF800000> : vector<1xf32>
    %110 = vector.multi_reduction <maximumf>, %109, %cst_36 [1] : vector<1x32xf32> to vector<1xf32>
    %111 = vector.shape_cast %110 : vector<1xf32> to vector<1x1xf32>
    %112 = vector.broadcast %111 : vector<1x1xf32> to vector<1x32xf32>
    %113 = arith.subf %109, %112 : vector<1x32xf32>
    %114 = math.exp %113 : vector<1x32xf32>
    %cst_37 = arith.constant dense<0.000000e+00> : vector<1xf32>
    %115 = vector.multi_reduction <add>, %114, %cst_37 [1] : vector<1x32xf32> to vector<1xf32>
    %116 = vector.shape_cast %115 : vector<1xf32> to vector<1x1xf32>
    %117 = tpu.reciprocal %116 {approx = true} : vector<1x1xf32> -> vector<1x1xf32>
    %118 = vector.broadcast %117 : vector<1x1xf32> to vector<1x32xf32>
    %119 = arith.mulf %114, %118 : vector<1x32xf32>
    %cst_38 = arith.constant dense<0.000000e+00> : vector<1x32xf32>
    %120 = tpu.matmul %119, %104, %cst_38 {dimension_numbers = #tpu.dot_dimension_numbers<[1], [0], [0], [1], [0, 0, 1, 1], [], []>} : vector<1x32xf32>, vector<32x32xf32>, vector<1x32xf32> -> vector<1x32xf32>
    %121 = vector.extract_strided_slice %17 {offsets = [192, 0], sizes = [32, 32], strides = [1, 1]} : vector<256x32xf32> to vector<32x32xf32>
    %122 = vector.extract_strided_slice %18 {offsets = [192, 0], sizes = [32, 32], strides = [1, 1]} : vector<256x32xf32> to vector<32x32xf32>
    %cst_39 = arith.constant dense<0.000000e+00> : vector<32x32xf32>
    %123 = tpu.matmul %121, %122, %cst_39 {dimension_numbers = #tpu.dot_dimension_numbers<[1], [1], [0], [0], [0, 0, 1, 0], [], []>} : vector<32x32xf32>, vector<32x32xf32>, vector<32x32xf32> -> vector<32x32xf32>
    %124 = math.tanh %123 : vector<32x32xf32>
    %cst_40 = arith.constant dense<0xFF800000> : vector<32xf32>
    %125 = vector.multi_reduction <maximumf>, %124, %cst_40 [0] : vector<32x32xf32> to vector<32xf32>
    %126 = vector.shape_cast %125 : vector<32xf32> to vector<1x32xf32>
    %cst_41 = arith.constant dense<0xFF800000> : vector<1xf32>
    %127 = vector.multi_reduction <maximumf>, %126, %cst_41 [1] : vector<1x32xf32> to vector<1xf32>
    %128 = vector.shape_cast %127 : vector<1xf32> to vector<1x1xf32>
    %129 = vector.broadcast %128 : vector<1x1xf32> to vector<1x32xf32>
    %130 = arith.subf %126, %129 : vector<1x32xf32>
    %131 = math.exp %130 : vector<1x32xf32>
    %cst_42 = arith.constant dense<0.000000e+00> : vector<1xf32>
    %132 = vector.multi_reduction <add>, %131, %cst_42 [1] : vector<1x32xf32> to vector<1xf32>
    %133 = vector.shape_cast %132 : vector<1xf32> to vector<1x1xf32>
    %134 = tpu.reciprocal %133 {approx = true} : vector<1x1xf32> -> vector<1x1xf32>
    %135 = vector.broadcast %134 : vector<1x1xf32> to vector<1x32xf32>
    %136 = arith.mulf %131, %135 : vector<1x32xf32>
    %cst_43 = arith.constant dense<0.000000e+00> : vector<1x32xf32>
    %137 = tpu.matmul %136, %121, %cst_43 {dimension_numbers = #tpu.dot_dimension_numbers<[1], [0], [0], [1], [0, 0, 1, 1], [], []>} : vector<1x32xf32>, vector<32x32xf32>, vector<1x32xf32> -> vector<1x32xf32>
    %138 = vector.extract_strided_slice %17 {offsets = [224, 0], sizes = [32, 32], strides = [1, 1]} : vector<256x32xf32> to vector<32x32xf32>
    %139 = vector.extract_strided_slice %18 {offsets = [224, 0], sizes = [32, 32], strides = [1, 1]} : vector<256x32xf32> to vector<32x32xf32>
    %cst_44 = arith.constant dense<0.000000e+00> : vector<32x32xf32>
    %140 = tpu.matmul %138, %139, %cst_44 {dimension_numbers = #tpu.dot_dimension_numbers<[1], [1], [0], [0], [0, 0, 1, 0], [], []>} : vector<32x32xf32>, vector<32x32xf32>, vector<32x32xf32> -> vector<32x32xf32>
    %141 = math.tanh %140 : vector<32x32xf32>
    %cst_45 = arith.constant dense<0xFF800000> : vector<32xf32>
    %142 = vector.multi_reduction <maximumf>, %141, %cst_45 [0] : vector<32x32xf32> to vector<32xf32>
    %143 = vector.shape_cast %142 : vector<32xf32> to vector<1x32xf32>
    %cst_46 = arith.constant dense<0xFF800000> : vector<1xf32>
    %144 = vector.multi_reduction <maximumf>, %143, %cst_46 [1] : vector<1x32xf32> to vector<1xf32>
    %145 = vector.shape_cast %144 : vector<1xf32> to vector<1x1xf32>
    %146 = vector.broadcast %145 : vector<1x1xf32> to vector<1x32xf32>
    %147 = arith.subf %143, %146 : vector<1x32xf32>
    %148 = math.exp %147 : vector<1x32xf32>
    %cst_47 = arith.constant dense<0.000000e+00> : vector<1xf32>
    %149 = vector.multi_reduction <add>, %148, %cst_47 [1] : vector<1x32xf32> to vector<1xf32>
    %150 = vector.shape_cast %149 : vector<1xf32> to vector<1x1xf32>
    %151 = tpu.reciprocal %150 {approx = true} : vector<1x1xf32> -> vector<1x1xf32>
    %152 = vector.broadcast %151 : vector<1x1xf32> to vector<1x32xf32>
    %153 = arith.mulf %148, %152 : vector<1x32xf32>
    %cst_48 = arith.constant dense<0.000000e+00> : vector<1x32xf32>
    %154 = tpu.matmul %153, %138, %cst_48 {dimension_numbers = #tpu.dot_dimension_numbers<[1], [0], [0], [1], [0, 0, 1, 1], [], []>} : vector<1x32xf32>, vector<32x32xf32>, vector<1x32xf32> -> vector<1x32xf32>
    %155 = tpu.concatenate %34, %51, %68, %85, %102, %119, %136, %153 in 0 : vector<1x32xf32>, vector<1x32xf32>, vector<1x32xf32>, vector<1x32xf32>, vector<1x32xf32>, vector<1x32xf32>, vector<1x32xf32>, vector<1x32xf32> -> vector<8x32xf32>
    %156 = tpu.concatenate %35, %52, %69, %86, %103, %120, %137, %154 in 0 : vector<1x32xf32>, vector<1x32xf32>, vector<1x32xf32>, vector<1x32xf32>, vector<1x32xf32>, vector<1x32xf32>, vector<1x32xf32>, vector<1x32xf32> -> vector<8x32xf32>
    %cst_49 = arith.constant dense<0.000000e+00> : vector<8x8xf32>
    %157 = tpu.matmul %156, %4, %cst_49 {dimension_numbers = #tpu.dot_dimension_numbers<[1], [0], [0], [1], [0, 0, 1, 1], [], []>} : vector<8x32xf32>, vector<32x8xf32>, vector<8x8xf32> -> vector<8x8xf32>
    %158 = vector.broadcast %7 : vector<1x8xf32> to vector<8x8xf32>
    %159 = arith.addf %157, %158 : vector<8x8xf32>
    %160 = tpu.concatenate %159, %155 in 1 : vector<8x8xf32>, vector<8x32xf32> -> vector<8x40xf32>
    %c0_50 = arith.constant 0 : index
    %c0_51 = arith.constant 0 : index
    %161 = vector.load %arg5[%c0_50, %c0_51] : memref<8x40xf32, #tpu.memory_space<vmem>>, vector<8x40xf32>
    tpu.vector_store %arg5[%c0_50, %c0_51], %160 {strides = array<i32>} : memref<8x40xf32, #tpu.memory_space<vmem>>, vector<8x40xf32>,
    return
  }
  func.func @transform_0(%arg0: i32) -> (i32, i32, i32) {
    %c0_i32 = arith.constant 0 : i32
    %c0_i32_0 = arith.constant 0 : i32
    %c0_i32_1 = arith.constant 0 : i32
    return %arg0, %c0_i32, %c0_i32_0 : i32, i32, i32
  }
  func.func @transform_1(%arg0: i32) -> (i32, i32) {
    %c0_i32 = arith.constant 0 : i32
    %c0_i32_0 = arith.constant 0 : i32
    %c0_i32_1 = arith.constant 0 : i32
    return %c0_i32, %c0_i32_0 : i32, i32
  }
  func.func @transform_2(%arg0: i32) -> (i32, i32) {
    %c0_i32 = arith.constant 0 : i32
    %c0_i32_0 = arith.constant 0 : i32
    %c0_i32_1 = arith.constant 0 : i32
    return %c0_i32, %c0_i32_0 : i32, i32
  }
  func.func @transform_3(%arg0: i32) -> (i32, i32) {
    %c0_i32 = arith.constant 0 : i32
    %c0_i32_0 = arith.constant 0 : i32
    %c0_i32_1 = arith.constant 0 : i32
    return %c0_i32, %c0_i32_0 : i32, i32
  }
  func.func @transform_4(%arg0: i32) -> (i32, i32) {
    %c0_i32 = arith.constant 0 : i32
    %c0_i32_0 = arith.constant 0 : i32
    return %arg0, %c0_i32 : i32, i32
  }
}

</mosaic_0001>

<llo_original>
// kernel: tpu_custom_call.1
$region0: #{tpu_custom_call.1}
  #allocation0 [shape = 'u32[]', space=smem, size = 0x4, offset = 0x4, fixed_abs, tag = 'smem constant byte address 0x4 - core index']
  #allocation1 [shape = 'u32[144,128]{1,0:T(1,128)}', space=vmem, size = 0x12000, scoped, tag = 'internal scratch']
  %s0 = inlined_call_operand.hbm [shape: f32[16,32,96], index: 0, kind: input, shape index: {}]
  %s1 = inlined_call_operand.hbm [shape: f32[96,96], index: 1, kind: input, shape index: {}]
  %s2 = inlined_call_operand.hbm [shape: f32[32,40], index: 2, kind: input, shape index: {}]
  %s3 = inlined_call_operand.vmem [shape: f32[1,104], index: 3, kind: input, shape index: {}]
  %s4 = inlined_call_operand.hbm [shape: f32[16,40], index: 4, kind: output, shape index: {}]
  %s5 = sld [smem:[#allocation0]]
  $region61: #{tpu_custom_call.1} parent=0
    _
  %s7 = ssub.s32 1, %s5
  %s8 = scalar_select 0, %s7, %s5
  $region1: #{tpu_custom_call.1} parent=0
    #allocation2 [shape = 'u8[262144]{0}', space=vmem, size = 0x40000, scoped, tag = 'input window, operand 0']
    #allocation3 [shape = 's32[2]{0}', space=sflag, size = 0x8, scoped, tag = 'scoped memory for tpu_custom_call.1']
    #allocation4 [shape = 's32[2]{0}', space=sflag, size = 0x8, scoped, tag = 'scoped memory for tpu_custom_call.1']
    #allocation5 [shape = 'u8[49152]{0}', space=vmem, size = 0xc000, scoped, tag = 'input window, operand 1, single buffered']
    #allocation6 [shape = 's32[1]{0}', space=sflag, size = 0x4, scoped, tag = 'scoped memory for tpu_custom_call.1']
    #allocation7 [shape = 'u8[16384]{0}', space=vmem, size = 0x4000, scoped, tag = 'input window, operand 2, single buffered']
    #allocation8 [shape = 'u8[8192]{0}', space=vmem, size = 0x2000, scoped, tag = 'output window, operand 0']
    %9 = vsyncpa [#allocation3], 0
    %s10 = scalar_lea.sflag [#allocation3], 1
    %11 = vsyncpa %s10, 0
    %12 = vsyncpa [#allocation6], 0
    %13 = vsyncpa [#allocation4], 0
    %s14 = scalar_lea.sflag [#allocation4], 1
    %15 = vsyncpa %s14, 0
    loop: start=0, step=1, limit=4
    $region2: #{tpu_custom_call.1} parent=1 // loop_pre_header
      _
    $region3: #{tpu_custom_call.1} parent=1 // loop_header
      %s17 = sphi 0, %s21
      %p18 = scmp.ge.s32.totalorder %s17, 4
      %s27 = sphi 0, %s29
      %s30 = sphi 0, %s27
      %s31 = sphi 0, %s30
      %s47 = sphi 0, %s31
      %s51 = sphi 0, %s51
      %s53 = sphi 0, %s51
      %s54 = sphi 0, %s53
      %s68 = sphi 0, %s54
      %s72 = sphi 0, %s72
      %s74 = sphi 0, %s72
      %s75 = sphi 0, %s74
      %s89 = sphi 0, %s75
      %s93 = sphi 0, %s93
      %s95 = sphi 0, %s93
      %s96 = sphi 0, %s95
      %s110 = sphi 0, %s96
      %s116 = sphi 0, %s118
      %s119 = sphi 0, %s116
      %s120 = sphi 0, %s119
      %s136 = sphi 0, %s120
    $region4: #{tpu_custom_call.1} parent=1 // loop_header_branch
      %20 = sbr.rel (%p18) target = $region8
    $region5: #{tpu_custom_call.1} parent=1 // loop_body
      %s22 = ssub.s32 %s17, 1
      %s23 = ssub.s32 %s17, 2
      %s24 = sadd.s32 %s17, 1
      %s25 = ssub.s32 %s17, %s24
      %p26 = scmp.eq.s32.totalorder %s25, 0
      %s28 = sadd.s32 %s27, 1
      %s29 = scalar_select %p26, %s27, %s28
      %p32 = pneg %p26
      %p33 = scmp.eq.s32.totalorder %s17, 1
      %p34 = por %p32, %p33
      %p35 = scmp.ne.s32.totalorder %s27, %s30
      %p36 = scmp.eq.s32.totalorder %s17, 0
      %p37 = por %p35, %p36
      %p38 = scmp.ne.s32.totalorder %s27, %s30
      %p39 = scmp.eq.s32.totalorder %s22, 1
      %p40 = por %p38, %p39
      %p41 = scmp.ne.s32.totalorder %s30, %s31
      %p42 = scmp.eq.s32.totalorder %s22, 0
      %p43 = por %p41, %p42
      %p44 = scmp.ne.s32.totalorder %s30, %s31
      %p45 = scmp.eq.s32.totalorder %s23, 1
      %p46 = por %p44, %p45
      %p48 = scmp.ne.s32.totalorder %s31, %s47
      %p49 = scmp.eq.s32.totalorder %s23, 0
      %p50 = por %p48, %p49
      %s52 = sadd.s32 %s51, 1
      %p55 = scmp.eq.s32.totalorder %s17, 1
      %p56 = scmp.ne.s32.totalorder %s51, %s53
      %p57 = scmp.eq.s32.totalorder %s17, 0
      %p58 = por %p56, %p57
      %p59 = scmp.ne.s32.totalorder %s51, %s53
      %p60 = scmp.eq.s32.totalorder %s22, 1
      %p61 = por %p59, %p60
      %p62 = scmp.ne.s32.totalorder %s53, %s54
      %p63 = scmp.eq.s32.totalorder %s22, 0
      %p64 = por %p62, %p63
      %p65 = scmp.ne.s32.totalorder %s53, %s54
      %p66 = scmp.eq.s32.totalorder %s23, 1
      %p67 = por %p65, %p66
      %p69 = scmp.ne.s32.totalorder %s54, %s68
      %p70 = scmp.eq.s32.totalorder %s23, 0
      %p71 = por %p69, %p70
      %s73 = sadd.s32 %s72, 1
      %p76 = scmp.eq.s32.totalorder %s17, 1
      %p77 = scmp.ne.s32.totalorder %s72, %s74
      %p78 = scmp.eq.s32.totalorder %s17, 0
      %p79 = por %p77, %p78
      %p80 = scmp.ne.s32.totalorder %s72, %s74
      %p81 = scmp.eq.s32.totalorder %s22, 1
      %p82 = por %p80, %p81
      %p83 = scmp.ne.s32.totalorder %s74, %s75
      %p84 = scmp.eq.s32.totalorder %s22, 0
      %p85 = por %p83, %p84
      %p86 = scmp.ne.s32.totalorder %s74, %s75
      %p87 = scmp.eq.s32.totalorder %s23, 1
      %p88 = por %p86, %p87
      %p90 = scmp.ne.s32.totalorder %s75, %s89
      %p91 = scmp.eq.s32.totalorder %s23, 0
      %p92 = por %p90, %p91
      %s94 = sadd.s32 %s93, 1
      %p97 = scmp.eq.s32.totalorder %s17, 1
      %p98 = scmp.ne.s32.totalorder %s93, %s95
      %p99 = scmp.eq.s32.totalorder %s17, 0
      %p100 = por %p98, %p99
      %p101 = scmp.ne.s32.totalorder %s93, %s95
      %p102 = scmp.eq.s32.totalorder %s22, 1
      %p103 = por %p101, %p102
      %p104 = scmp.ne.s32.totalorder %s95, %s96
      %p105 = scmp.eq.s32.totalorder %s22, 0
      %p106 = por %p104, %p105
      %p107 = scmp.ne.s32.totalorder %s95, %s96
      %p108 = scmp.eq.s32.totalorder %s23, 1
      %p109 = por %p107, %p108
      %p111 = scmp.ne.s32.totalorder %s96, %s110
      %p112 = scmp.eq.s32.totalorder %s23, 0
      %p113 = por %p111, %p112
      %s114 = ssub.s32 %s17, %s24
      %p115 = scmp.eq.s32.totalorder %s114, 0
      %s117 = sadd.s32 %s116, 1
      %s118 = scalar_select %p115, %s116, %s117
      %p121 = pneg %p115
      %p122 = scmp.eq.s32.totalorder %s17, 1
      %p123 = por %p121, %p122
      %p124 = scmp.ne.s32.totalorder %s116, %s119
      %p125 = scmp.eq.s32.totalorder %s17, 0
      %p126 = por %p124, %p125
      %p127 = scmp.ne.s32.totalorder %s116, %s119
      %p128 = scmp.eq.s32.totalorder %s22, 1
      %p129 = por %p127, %p128
      %p130 = scmp.ne.s32.totalorder %s119, %s120
      %p131 = scmp.eq.s32.totalorder %s22, 0
      %p132 = por %p130, %p131
      %p133 = scmp.ne.s32.totalorder %s119, %s120
      %p134 = scmp.eq.s32.totalorder %s23, 1
      %p135 = por %p133, %p134
      %p137 = scmp.ne.s32.totalorder %s120, %s136
      %p138 = scmp.eq.s32.totalorder %s23, 0
      %p139 = por %p137, %p138
      %p140 = scmp.le.s32.totalorder 1, %s17
      %p141 = scmp.lt.s32.totalorder %s17, 3
      %p142 = pnand %p140, %p141
      %p143 = pneg %p142
      // Predicated region
      $region9: #{tpu_custom_call.1} parent=5 // pred_check
        _
      $region10: #{tpu_custom_call.1} parent=5 // pred_check_branch
        %145 = sbr.rel (%p142) target = $region12
      $region11: #{tpu_custom_call.1} parent=5 // pred_region
        %s146 = ssub.s32 %s17, 1
        // Predicated region
        $region13: #{tpu_custom_call.1} parent=11 // pred_check
          %p147 = pneg %p64
        $region14: #{tpu_custom_call.1} parent=11 // pred_check_branch
          %149 = sbr.rel (%p147) target = $region16
        $region15: #{tpu_custom_call.1} parent=11 // pred_region
          %s151 = ssub.s32 1536, 1536
          %152 = vsyncadd [#allocation6], %s151
          %s153 = sshll.u32 [#allocation5], 4
          %s154 = int_to_ptr.vmem [resolvable:$true] %s153
          %159 = dma.hbm_to_vmem [thread:$0]  %s1, 1536, %s154, [#allocation6], 128, 128, 8
        $region16: #{tpu_custom_call.1} parent=11 // pred_fallthru
          _
        // Predicated region
        $region17: #{tpu_custom_call.1} parent=11 // pred_check
          %p160 = pneg %p85
        $region18: #{tpu_custom_call.1} parent=11 // pred_check_branch
          %162 = sbr.rel (%p160) target = $region20
        $region19: #{tpu_custom_call.1} parent=11 // pred_region
          %s164 = ssub.s32 512, 512
          %165 = vsyncadd [#allocation6], %s164
          %s166 = sshll.u32 [#allocation7], 4
          %s167 = int_to_ptr.vmem [resolvable:$true] %s166
          %172 = dma.hbm_to_vmem [thread:$0]  %s2, 512, %s167, [#allocation6], 128, 128, 8
        $region20: #{tpu_custom_call.1} parent=11 // pred_fallthru
          _
        // Predicated region
        $region21: #{tpu_custom_call.1} parent=11 // pred_check
          %p173 = pneg %p106
        $region22: #{tpu_custom_call.1} parent=11 // pred_check_branch
          %175 = sbr.rel (%p173) target = $region24
        $region23: #{tpu_custom_call.1} parent=11 // pred_region
          _
        $region24: #{tpu_custom_call.1} parent=11 // pred_fallthru
          _
      $region12: #{tpu_custom_call.1} parent=5 // pred_fallthru
        _
      %p176 = scmp.lt.s32.totalorder %s17, 2
      // Predicated region
      $region25: #{tpu_custom_call.1} parent=5 // pred_check
        %p177 = pneg %p176
      $region26: #{tpu_custom_call.1} parent=5 // pred_check_branch
        %179 = sbr.rel (%p177) target = $region28
      $region27: #{tpu_custom_call.1} parent=5 // pred_region
        // Predicated region
        $region29: #{tpu_custom_call.1} parent=27 // pred_check
          %p180 = pneg %p37
        $region30: #{tpu_custom_call.1} parent=27 // pred_check_branch
          %182 = sbr.rel (%p180) target = $region32
        $region31: #{tpu_custom_call.1} parent=27 // pred_region
          %s183 = sand.u32 %s27, 1
          %s184 = scalar_lea.sflag [#allocation3], %s183
          %s185 = sand.u32 %s27, 1
          %s186 = smul.addr %s185, 256
          %s187 = scalar_lea.vmem [#allocation2], %s186
          %s188 = smul.u32 8, %s17
          %s190 = ssub.s32 4096, 4096
          %191 = vsyncadd %s184, %s190
          %s192 = smul.addr %s188, 4
          %s193 = smul.addr %s192, 128
          %s194 = scalar_lea.hbm %s0, %s193
          %s195 = sshll.u32 %s187, 4
          %s196 = int_to_ptr.vmem [resolvable:$true] %s195
          %201 = dma.hbm_to_vmem [thread:$0]  %s194, 4096, %s196, %s184, 128, 128, 8
        $region32: #{tpu_custom_call.1} parent=27 // pred_fallthru
          _
      $region28: #{tpu_custom_call.1} parent=5 // pred_fallthru
        _
      %p202 = scmp.le.s32.totalorder 1, %s17
      %p203 = scmp.lt.s32.totalorder %s17, 3
      %p204 = pnand %p202, %p203
      %p205 = pneg %p204
      // Predicated region
      $region33: #{tpu_custom_call.1} parent=5 // pred_check
        _
      $region34: #{tpu_custom_call.1} parent=5 // pred_check_branch
        %207 = sbr.rel (%p204) target = $region36
      $region35: #{tpu_custom_call.1} parent=5 // pred_region
        %s208 = ssub.s32 %s17, 1
        %s209 = sand.u32 %s30, 1
        %s210 = scalar_lea.sflag [#allocation3], %s209
        %s211 = sand.u32 %s30, 1
        %s212 = smul.addr %s211, 256
        %s213 = scalar_lea.vmem [#allocation2], %s212
        // Predicated region
        $region37: #{tpu_custom_call.1} parent=35 // pred_check
          %p214 = pneg %p43
        $region38: #{tpu_custom_call.1} parent=35 // pred_check_branch
          %216 = sbr.rel (%p214) target = $region40
        $region39: #{tpu_custom_call.1} parent=35 // pred_region
          %217 = dma.done %s210, 4096
        $region40: #{tpu_custom_call.1} parent=35 // pred_fallthru
          _
        // Predicated region
        $region41: #{tpu_custom_call.1} parent=35 // pred_check
          %p218 = pneg %p64
        $region42: #{tpu_custom_call.1} parent=35 // pred_check_branch
          %220 = sbr.rel (%p218) target = $region44
        $region43: #{tpu_custom_call.1} parent=35 // pred_region
          %221 = dma.done [#allocation6], 1536
        $region44: #{tpu_custom_call.1} parent=35 // pred_fallthru
          _
        // Predicated region
        $region45: #{tpu_custom_call.1} parent=35 // pred_check
          %p222 = pneg %p85
        $region46: #{tpu_custom_call.1} parent=35 // pred_check_branch
          %224 = sbr.rel (%p222) target = $region48
        $region47: #{tpu_custom_call.1} parent=35 // pred_region
          %225 = dma.done [#allocation6], 512
        $region48: #{tpu_custom_call.1} parent=35 // pred_fallthru
          _
        %s226 = sand.u32 %s30, 1
        %s227 = scalar_lea.sflag [#allocation3], %s226
        %s228 = sand.u32 %s30, 1
        %s229 = smul.addr %s228, 256
        %s230 = scalar_lea.vmem [#allocation2], %s229
        %p231 = pneg %p43
        %p232 = pneg %p40
        %p233 = pneg %p64
        %p234 = pneg %p61
        %p235 = pneg %p85
        %p236 = pneg %p82
        %p237 = pneg %p106
        %p238 = pneg %p103
        %p239 = pneg %p132
        %p240 = pneg %p129
        %s241 = sand.u32 %s119, 1
        %s242 = scalar_lea.sflag [#allocation4], %s241
        %s243 = sand.u32 %s119, 1
        %s244 = smul.addr %s243, 8
        %s245 = scalar_lea.vmem [#allocation8], %s244
        %s246 = smul.u32 8, %s22
        %v247 = vld [vmem:[%s213] sm:$0xff]
        %v248 = vld [vmem:[%s213 + $0x8] sm:$0xff]
        %v249 = vld [vmem:[%s213 + $0x10] sm:$0xff]
        %v250 = vld [vmem:[%s213 + $0x18] sm:$0xff]
        %v251 = vld [vmem:[%s213 + $0x20] sm:$0xff]
        %v252 = vld [vmem:[%s213 + $0x28] sm:$0xff]
        %v253 = vld [vmem:[%s213 + $0x30] sm:$0xff]
        %v254 = vld [vmem:[%s213 + $0x38] sm:$0xff]
        %v255 = vld [vmem:[%s213 + $0x40] sm:$0xff]
        %v256 = vld [vmem:[%s213 + $0x48] sm:$0xff]
        %v257 = vld [vmem:[%s213 + $0x50] sm:$0xff]
        %v258 = vld [vmem:[%s213 + $0x58] sm:$0xff]
        %v259 = vld [vmem:[%s213 + $0x60] sm:$0xff]
        %v260 = vld [vmem:[%s213 + $0x68] sm:$0xff]
        %v261 = vld [vmem:[%s213 + $0x70] sm:$0xff]
        %v262 = vld [vmem:[%s213 + $0x78] sm:$0xff]
        %v263 = vld [vmem:[%s213 + $0x80] sm:$0xff]
        %v264 = vld [vmem:[%s213 + $0x88] sm:$0xff]
        %v265 = vld [vmem:[%s213 + $0x90] sm:$0xff]
        %v266 = vld [vmem:[%s213 + $0x98] sm:$0xff]
        %v267 = vld [vmem:[%s213 + $0xa0] sm:$0xff]
        %v268 = vld [vmem:[%s213 + $0xa8] sm:$0xff]
        %v269 = vld [vmem:[%s213 + $0xb0] sm:$0xff]
        %v270 = vld [vmem:[%s213 + $0xb8] sm:$0xff]
        %v271 = vld [vmem:[%s213 + $0xc0] sm:$0xff]
        %v272 = vld [vmem:[%s213 + $0xc8] sm:$0xff]
        %v273 = vld [vmem:[%s213 + $0xd0] sm:$0xff]
        %v274 = vld [vmem:[%s213 + $0xd8] sm:$0xff]
        %v275 = vld [vmem:[%s213 + $0xe0] sm:$0xff]
        %v276 = vld [vmem:[%s213 + $0xe8] sm:$0xff]
        %v277 = vld [vmem:[%s213 + $0xf0] sm:$0xff]
        %v278 = vld [vmem:[%s213 + $0xf8] sm:$0xff]
        %v279 = vld [vmem:[#allocation7] sm:$0xff]
        %v280 = vld [vmem:[#allocation7 + $0x8] sm:$0xff]
        %v281 = vld [vmem:[#allocation7 + $0x10] sm:$0xff]
        %v282 = vld [vmem:[#allocation7 + $0x18] sm:$0xff]
        %v283 = vld [vmem:[%s3] sm:$0x1]
        %v284 = vld [vmem:[#allocation5] sm:$0xff]
        %v285 = vld [vmem:[#allocation5 + $0x8] sm:$0xff]
        %v286 = vld [vmem:[#allocation5 + $0x10] sm:$0xff]
        %v287 = vld [vmem:[#allocation5 + $0x18] sm:$0xff]
        %v288 = vld [vmem:[#allocation5 + $0x20] sm:$0xff]
        %v289 = vld [vmem:[#allocation5 + $0x28] sm:$0xff]
        %v290 = vld [vmem:[#allocation5 + $0x30] sm:$0xff]
        %v291 = vld [vmem:[#allocation5 + $0x38] sm:$0xff]
        %v292 = vld [vmem:[#allocation5 + $0x40] sm:$0xff]
        %v293 = vld [vmem:[#allocation5 + $0x48] sm:$0xff]
        %v294 = vld [vmem:[#allocation5 + $0x50] sm:$0xff]
        %v295 = vld [vmem:[#allocation5 + $0x58] sm:$0xff]
        %v297 = vlaneseq
        %v298 = vshrl.u32 %v297, 7
        %v299 = vsub.s32 0, %v298
        %v300 = vrot.slane %v283, %v299
        %vm302 = vcmask 785408
        %v304 = vsel %vm302, %v247, 0
        %v307 = vsel %vm302, %v248, 0
        %v310 = vsel %vm302, %v249, 0
        %v313 = vsel %vm302, %v250, 0
        %v316 = vsel %vm302, %v251, 0
        %v319 = vsel %vm302, %v252, 0
        %v322 = vsel %vm302, %v253, 0
        %v325 = vsel %vm302, %v254, 0
        %v328 = vsel %vm302, %v255, 0
        %v331 = vsel %vm302, %v256, 0
        %v334 = vsel %vm302, %v257, 0
        %v337 = vsel %vm302, %v258, 0
        %v340 = vsel %vm302, %v259, 0
        %v343 = vsel %vm302, %v260, 0
        %v346 = vsel %vm302, %v261, 0
        %v349 = vsel %vm302, %v262, 0
        %v352 = vsel %vm302, %v263, 0
        %v355 = vsel %vm302, %v264, 0
        %v358 = vsel %vm302, %v265, 0
        %v361 = vsel %vm302, %v266, 0
        %v364 = vsel %vm302, %v267, 0
        %v367 = vsel %vm302, %v268, 0
        %v370 = vsel %vm302, %v269, 0
        %v373 = vsel %vm302, %v270, 0
        %v376 = vsel %vm302, %v271, 0
        %v379 = vsel %vm302, %v272, 0
        %v382 = vsel %vm302, %v273, 0
        %v385 = vsel %vm302, %v274, 0
        %v388 = vsel %vm302, %v275, 0
        %v391 = vsel %vm302, %v276, 0
        %v394 = vsel %vm302, %v277, 0
        %v397 = vsel %vm302, %v278, 0
        %399 = vmatprep.subr.mxu0 0.0
        %400 = vmatpush1.msra.mxu0 %v284
        %401 = vmatprep.subr.mxu0 0.0
        %402 = vmatpush1.msra.mxu0 %v285
        %403 = vmatprep.subr.mxu0 0.0
        %404 = vmatpush1.msra.mxu0 %v286
        %405 = vmatprep.subr.mxu0 0.0
        %406 = vmatpush1.msra.mxu0 %v287
        %407 = vmatprep.subr.mxu0 0.0
        %408 = vmatpush1.msra.mxu0 %v288
        %409 = vmatprep.subr.mxu0 0.0
        %410 = vmatpush1.msra.mxu0 %v289
        %411 = vmatprep.subr.mxu0 0.0
        %412 = vmatpush1.msra.mxu0 %v290
        %413 = vmatprep.subr.mxu0 0.0
        %414 = vmatpush1.msra.mxu0 %v291
        %415 = vmatprep.subr.mxu0 0.0
        %416 = vmatpush1.msra.mxu0 %v292
        %417 = vmatprep.subr.mxu0 0.0
        %418 = vmatpush1.msra.mxu0 %v293
        %419 = vmatprep.subr.mxu0 0.0
        %420 = vmatpush1.msra.mxu0 %v294
        %421 = vmatprep.subr.mxu0 0.0
        %422 = vmatpush1.msra.mxu0 %v295
        %423 = vmatprep.subr.mxu0 0.0
        %424 = vmatpush1.msra.mxu0 0.0
        %425 = vmatprep.subr.mxu0 0.0
        %426 = vmatpush1.msra.mxu0 0.0
        %427 = vmatprep.subr.mxu0 0.0
        %428 = vmatpush1.msra.mxu0 0.0
        %429 = vmatprep.subr.mxu0 0.0
        %430 = vmatpush1.msra.mxu0 0.0
        %431 = vmatprep.subr.mxu0 0.0
        %432 = vmatpush1.msra.mxu0 0.0
        %433 = vmatprep.subr.mxu0 0.0
        %434 = vmatpush1.msra.mxu0 0.0
        %435 = vmatprep.subr.mxu0 0.0
        %436 = vmatpush1.msra.mxu0 0.0
        %437 = vmatprep.subr.mxu0 0.0
        %438 = vmatpush1.msra.mxu0 0.0
        %439 = vmatprep.subr.mxu0 0.0
        %440 = vmatpush1.msra.mxu0 0.0
        %441 = vmatprep.subr.mxu0 0.0
        %442 = vmatpush1.msra.mxu0 0.0
        %443 = vmatprep.subr.mxu0 0.0
        %444 = vmatpush1.msra.mxu0 0.0
        %445 = vmatprep.subr.mxu0 0.0
        %446 = vmatpush1.msra.mxu0 0.0
        %447 = vmatprep.subr.mxu0 0.0
        %448 = vmatpush1.msra.mxu0 0.0
        %449 = vmatprep.subr.mxu0 0.0
        %450 = vmatpush1.msra.mxu0 0.0
        %451 = vmatprep.subr.mxu0 0.0
        %452 = vmatpush1.msra.mxu0 0.0
        %453 = vmatprep.subr.mxu0 0.0
        %454 = vmatpush1.msra.mxu0 0.0
        %455 = vmatprep.subr.mxu0 0.0
        %456 = vmatpush1.msra.mxu0 0.0
        %457 = vmatprep.subr.mxu0 0.0
        %458 = vmatpush1.msra.mxu0 0.0
        %459 = vmatprep.subr.mxu0 0.0
        %460 = vmatpush1.msra.mxu0 0.0
        %461 = vmatprep.subr.mxu0 0.0
        %462 = vmatpush1.msra.mxu0 0.0
        %463 = vmatprep.mubr.f32.mxu0 0.0
        %464 = vmatmul.mubr.f32.gmra.mrb[0].mxu0 %v304
        %v465 = vpop.f32.mrb[0].mxu0
        %v466 = vadd.f32 %v300, %v465
        %v467 = vpop.f32.mrb[0].mxu0
        %468 = vmatprep.mubr.f32.mxu0 0.0
        %469 = vmatmul.mubr.f32.gmra.mrb[0].mxu0 %v307
        %v470 = vpop.f32.mrb[0].mxu0
        %v471 = vadd.f32 %v300, %v470
        %v472 = vpop.f32.mrb[0].mxu0
        %473 = vmatprep.mubr.f32.mxu0 0.0
        %474 = vmatmul.mubr.f32.gmra.mrb[0].mxu0 %v310
        %v475 = vpop.f32.mrb[0].mxu0
        %v476 = vadd.f32 %v300, %v475
        %v477 = vpop.f32.mrb[0].mxu0
        %478 = vmatprep.mubr.f32.mxu0 0.0
        %479 = vmatmul.mubr.f32.gmra.mrb[0].mxu0 %v313
        %v480 = vpop.f32.mrb[0].mxu0
        %v481 = vadd.f32 %v300, %v480
        %v482 = vpop.f32.mrb[0].mxu0
        %483 = vmatprep.mubr.f32.mxu0 0.0
        %484 = vmatmul.mubr.f32.gmra.mrb[0].mxu0 %v316
        %v485 = vpop.f32.mrb[0].mxu0
        %v486 = vadd.f32 %v300, %v485
        %v487 = vpop.f32.mrb[0].mxu0
        %488 = vmatprep.mubr.f32.mxu0 0.0
        %489 = vmatmul.mubr.f32.gmra.mrb[0].mxu0 %v319
        %v490 = vpop.f32.mrb[0].mxu0
        %v491 = vadd.f32 %v300, %v490
        %v492 = vpop.f32.mrb[0].mxu0
        %493 = vmatprep.mubr.f32.mxu0 0.0
        %494 = vmatmul.mubr.f32.gmra.mrb[0].mxu0 %v322
        %v495 = vpop.f32.mrb[0].mxu0
        %v496 = vadd.f32 %v300, %v495
        %v497 = vpop.f32.mrb[0].mxu0
        %498 = vmatprep.mubr.f32.mxu0 0.0
        %499 = vmatmul.mubr.f32.gmra.mrb[0].mxu0 %v325
        %v500 = vpop.f32.mrb[0].mxu0
        %v501 = vadd.f32 %v300, %v500
        %v502 = vpop.f32.mrb[0].mxu0
        %503 = vmatprep.mubr.f32.mxu0 0.0
        %504 = vmatmul.mubr.f32.gmra.mrb[0].mxu0 %v328
        %v505 = vpop.f32.mrb[0].mxu0
        %v506 = vadd.f32 %v300, %v505
        %v507 = vpop.f32.mrb[0].mxu0
        %508 = vmatprep.mubr.f32.mxu0 0.0
        %509 = vmatmul.mubr.f32.gmra.mrb[0].mxu0 %v331
        %v510 = vpop.f32.mrb[0].mxu0
        %v511 = vadd.f32 %v300, %v510
        %v512 = vpop.f32.mrb[0].mxu0
        %513 = vmatprep.mubr.f32.mxu0 0.0
        %514 = vmatmul.mubr.f32.gmra.mrb[0].mxu0 %v334
        %v515 = vpop.f32.mrb[0].mxu0
        %v516 = vadd.f32 %v300, %v515
        %v517 = vpop.f32.mrb[0].mxu0
        %518 = vmatprep.mubr.f32.mxu0 0.0
        %519 = vmatmul.mubr.f32.gmra.mrb[0].mxu0 %v337
        %v520 = vpop.f32.mrb[0].mxu0
        %v521 = vadd.f32 %v300, %v520
        %v522 = vpop.f32.mrb[0].mxu0
        %523 = vmatprep.mubr.f32.mxu0 0.0
        %524 = vmatmul.mubr.f32.gmra.mrb[0].mxu0 %v340
        %v525 = vpop.f32.mrb[0].mxu0
        %v526 = vadd.f32 %v300, %v525
        %v527 = vpop.f32.mrb[0].mxu0
        %528 = vmatprep.mubr.f32.mxu0 0.0
        %529 = vmatmul.mubr.f32.gmra.mrb[0].mxu0 %v343
        %v530 = vpop.f32.mrb[0].mxu0
        %v531 = vadd.f32 %v300, %v530
        %v532 = vpop.f32.mrb[0].mxu0
        %533 = vmatprep.mubr.f32.mxu0 0.0
        %534 = vmatmul.mubr.f32.gmra.mrb[0].mxu0 %v346
        %v535 = vpop.f32.mrb[0].mxu0
        %v536 = vadd.f32 %v300, %v535
        %v537 = vpop.f32.mrb[0].mxu0
        %538 = vmatprep.mubr.f32.mxu0 0.0
        %539 = vmatmul.mubr.f32.gmra.mrb[0].mxu0 %v349
        %v540 = vpop.f32.mrb[0].mxu0
        %v541 = vadd.f32 %v300, %v540
        %v542 = vpop.f32.mrb[0].mxu0
        %543 = vmatprep.mubr.f32.mxu0 0.0
        %544 = vmatmul.mubr.f32.gmra.mrb[0].mxu0 %v352
        %v545 = vpop.f32.mrb[0].mxu0
        %v546 = vadd.f32 %v300, %v545
        %v547 = vpop.f32.mrb[0].mxu0
        %548 = vmatprep.mubr.f32.mxu0 0.0
        %549 = vmatmul.mubr.f32.gmra.mrb[0].mxu0 %v355
        %v550 = vpop.f32.mrb[0].mxu0
        %v551 = vadd.f32 %v300, %v550
        %v552 = vpop.f32.mrb[0].mxu0
        %553 = vmatprep.mubr.f32.mxu0 0.0
        %554 = vmatmul.mubr.f32.gmra.mrb[0].mxu0 %v358
        %v555 = vpop.f32.mrb[0].mxu0
        %v556 = vadd.f32 %v300, %v555
        %v557 = vpop.f32.mrb[0].mxu0
        %558 = vmatprep.mubr.f32.mxu0 0.0
        %559 = vmatmul.mubr.f32.gmra.mrb[0].mxu0 %v361
        %v560 = vpop.f32.mrb[0].mxu0
        %v561 = vadd.f32 %v300, %v560
        %v562 = vpop.f32.mrb[0].mxu0
        %563 = vmatprep.mubr.f32.mxu0 0.0
        %564 = vmatmul.mubr.f32.gmra.mrb[0].mxu0 %v364
        %v565 = vpop.f32.mrb[0].mxu0
        %v566 = vadd.f32 %v300, %v565
        %v567 = vpop.f32.mrb[0].mxu0
        %568 = vmatprep.mubr.f32.mxu0 0.0
        %569 = vmatmul.mubr.f32.gmra.mrb[0].mxu0 %v367
        %v570 = vpop.f32.mrb[0].mxu0
        %v571 = vadd.f32 %v300, %v570
        %v572 = vpop.f32.mrb[0].mxu0
        %573 = vmatprep.mubr.f32.mxu0 0.0
        %574 = vmatmul.mubr.f32.gmra.mrb[0].mxu0 %v370
        %v575 = vpop.f32.mrb[0].mxu0
        %v576 = vadd.f32 %v300, %v575
        %v577 = vpop.f32.mrb[0].mxu0
        %578 = vmatprep.mubr.f32.mxu0 0.0
        %579 = vmatmul.mubr.f32.gmra.mrb[0].mxu0 %v373
        %v580 = vpop.f32.mrb[0].mxu0
        %v581 = vadd.f32 %v300, %v580
        %v582 = vpop.f32.mrb[0].mxu0
        %583 = vmatprep.mubr.f32.mxu0 0.0
        %584 = vmatmul.mubr.f32.gmra.mrb[0].mxu0 %v376
        %v585 = vpop.f32.mrb[0].mxu0
        %v586 = vadd.f32 %v300, %v585
        %v587 = vpop.f32.mrb[0].mxu0
        %588 = vmatprep.mubr.f32.mxu0 0.0
        %589 = vmatmul.mubr.f32.gmra.mrb[0].mxu0 %v379
        %v590 = vpop.f32.mrb[0].mxu0
        %v591 = vadd.f32 %v300, %v590
        %v592 = vpop.f32.mrb[0].mxu0
        %593 = vmatprep.mubr.f32.mxu0 0.0
        %594 = vmatmul.mubr.f32.gmra.mrb[0].mxu0 %v382
        %v595 = vpop.f32.mrb[0].mxu0
        %v596 = vadd.f32 %v300, %v595
        %v597 = vpop.f32.mrb[0].mxu0
        %598 = vmatprep.mubr.f32.mxu0 0.0
        %599 = vmatmul.mubr.f32.gmra.mrb[0].mxu0 %v385
        %v600 = vpop.f32.mrb[0].mxu0
        %v601 = vadd.f32 %v300, %v600
        %v602 = vpop.f32.mrb[0].mxu0
        %603 = vmatprep.mubr.f32.mxu0 0.0
        %604 = vmatmul.mubr.f32.gmra.mrb[0].mxu0 %v388
        %v605 = vpop.f32.mrb[0].mxu0
        %v606 = vadd.f32 %v300, %v605
        %v607 = vpop.f32.mrb[0].mxu0
        %608 = vmatprep.mubr.f32.mxu0 0.0
        %609 = vmatmul.mubr.f32.gmra.mrb[0].mxu0 %v391
        %v610 = vpop.f32.mrb[0].mxu0
        %v611 = vadd.f32 %v300, %v610
        %v612 = vpop.f32.mrb[0].mxu0
        %613 = vmatprep.mubr.f32.mxu0 0.0
        %614 = vmatmul.mubr.f32.gmra.mrb[0].mxu0 %v394
        %v615 = vpop.f32.mrb[0].mxu0
        %v616 = vadd.f32 %v300, %v615
        %v617 = vpop.f32.mrb[0].mxu0
        %618 = vmatprep.mubr.f32.mxu0 0.0
        %619 = vmatmul.mubr.f32.gmra.mrb[0].mxu0 %v397
        %v620 = vpop.f32.mrb[0].mxu0
        %v621 = vadd.f32 %v300, %v620
        %v622 = vpop.f32.mrb[0].mxu0
        %623 = vdwg.mxu0
        %v624 = vtanh.pop %v466
        %v625 = vtanh.pop %v471
        %v626 = vtanh.pop %v476
        %v627 = vtanh.pop %v481
        %v628 = vtanh.pop %v486
        %v629 = vtanh.pop %v491
        %v630 = vtanh.pop %v496
        %v631 = vtanh.pop %v501
        %v632 = vtanh.pop %v506
        %v633 = vtanh.pop %v511
        %v634 = vtanh.pop %v516
        %v635 = vtanh.pop %v521
        %v636 = vtanh.pop %v526
        %v637 = vtanh.pop %v531
        %v638 = vtanh.pop %v536
        %v639 = vtanh.pop %v541
        %v640 = vtanh.pop %v546
        %v641 = vtanh.pop %v551
        %v642 = vtanh.pop %v556
        %v643 = vtanh.pop %v561
        %v644 = vtanh.pop %v566
        %v645 = vtanh.pop %v571
        %v646 = vtanh.pop %v576
        %v647 = vtanh.pop %v581
        %v648 = vtanh.pop %v586
        %v649 = vtanh.pop %v591
        %v650 = vtanh.pop %v596
        %v651 = vtanh.pop %v601
        %v652 = vtanh.pop %v606
        %v653 = vtanh.pop %v611
        %v654 = vtanh.pop %v616
        %v655 = vtanh.pop %v621
        %688 = vrot.lane.b32.xlu0 %v624, 96
        %v689 = vpop.permute.xlu0 %688
        %690 = vrot.lane.b32.xlu0 %v625, 96
        %v691 = vpop.permute.xlu0 %690
        %692 = vrot.lane.b32.xlu0 %v626, 96
        %v693 = vpop.permute.xlu0 %692
        %694 = vrot.lane.b32.xlu0 %v627, 96
        %v695 = vpop.permute.xlu0 %694
        %696 = vrot.lane.b32.xlu0 %v628, 96
        %v697 = vpop.permute.xlu0 %696
        %698 = vrot.lane.b32.xlu0 %v629, 96
        %v699 = vpop.permute.xlu0 %698
        %700 = vrot.lane.b32.xlu0 %v630, 96
        %v701 = vpop.permute.xlu0 %700
        %702 = vrot.lane.b32.xlu0 %v631, 96
        %v703 = vpop.permute.xlu0 %702
        %704 = vrot.lane.b32.xlu0 %v632, 96
        %v705 = vpop.permute.xlu0 %704
        %706 = vrot.lane.b32.xlu0 %v633, 96
        %v707 = vpop.permute.xlu0 %706
        %708 = vrot.lane.b32.xlu0 %v634, 96
        %v709 = vpop.permute.xlu0 %708
        %710 = vrot.lane.b32.xlu0 %v635, 96
        %v711 = vpop.permute.xlu0 %710
        %712 = vrot.lane.b32.xlu0 %v636, 96
        %v713 = vpop.permute.xlu0 %712
        %714 = vrot.lane.b32.xlu0 %v637, 96
        %v715 = vpop.permute.xlu0 %714
        %716 = vrot.lane.b32.xlu0 %v638, 96
        %v717 = vpop.permute.xlu0 %716
        %718 = vrot.lane.b32.xlu0 %v639, 96
        %v719 = vpop.permute.xlu0 %718
        %720 = vrot.lane.b32.xlu0 %v640, 96
        %v721 = vpop.permute.xlu0 %720
        %722 = vrot.lane.b32.xlu0 %v641, 96
        %v723 = vpop.permute.xlu0 %722
        %724 = vrot.lane.b32.xlu0 %v642, 96
        %v725 = vpop.permute.xlu0 %724
        %726 = vrot.lane.b32.xlu0 %v643, 96
        %v727 = vpop.permute.xlu0 %726
        %728 = vrot.lane.b32.xlu0 %v644, 96
        %v729 = vpop.permute.xlu0 %728
        %730 = vrot.lane.b32.xlu0 %v645, 96
        %v731 = vpop.permute.xlu0 %730
        %732 = vrot.lane.b32.xlu0 %v646, 96
        %v733 = vpop.permute.xlu0 %732
        %734 = vrot.lane.b32.xlu0 %v647, 96
        %v735 = vpop.permute.xlu0 %734
        %736 = vrot.lane.b32.xlu0 %v648, 96
        %v737 = vpop.permute.xlu0 %736
        %738 = vrot.lane.b32.xlu0 %v649, 96
        %v739 = vpop.permute.xlu0 %738
        %740 = vrot.lane.b32.xlu0 %v650, 96
        %v741 = vpop.permute.xlu0 %740
        %742 = vrot.lane.b32.xlu0 %v651, 96
        %v743 = vpop.permute.xlu0 %742
        %744 = vrot.lane.b32.xlu0 %v652, 96
        %v745 = vpop.permute.xlu0 %744
        %746 = vrot.lane.b32.xlu0 %v653, 96
        %v747 = vpop.permute.xlu0 %746
        %748 = vrot.lane.b32.xlu0 %v654, 96
        %v749 = vpop.permute.xlu0 %748
        %750 = vrot.lane.b32.xlu0 %v655, 96
        %v751 = vpop.permute.xlu0 %750
        %v784 = vmax.f32 %v624, %v689
        %v785 = vmax.f32 %v625, %v691
        %v786 = vmax.f32 %v626, %v693
        %v787 = vmax.f32 %v627, %v695
        %v788 = vmax.f32 %v628, %v697
        %v789 = vmax.f32 %v629, %v699
        %v790 = vmax.f32 %v630, %v701
        %v791 = vmax.f32 %v631, %v703
        %v792 = vmax.f32 %v632, %v705
        %v793 = vmax.f32 %v633, %v707
        %v794 = vmax.f32 %v634, %v709
        %v795 = vmax.f32 %v635, %v711
        %v796 = vmax.f32 %v636, %v713
        %v797 = vmax.f32 %v637, %v715
        %v798 = vmax.f32 %v638, %v717
        %v799 = vmax.f32 %v639, %v719
        %v800 = vmax.f32 %v640, %v721
        %v801 = vmax.f32 %v641, %v723
        %v802 = vmax.f32 %v642, %v725
        %v803 = vmax.f32 %v643, %v727
        %v804 = vmax.f32 %v644, %v729
        %v805 = vmax.f32 %v645, %v731
        %v806 = vmax.f32 %v646, %v733
        %v807 = vmax.f32 %v647, %v735
        %v808 = vmax.f32 %v648, %v737
        %v809 = vmax.f32 %v649, %v739
        %v810 = vmax.f32 %v650, %v741
        %v811 = vmax.f32 %v651, %v743
        %v812 = vmax.f32 %v652, %v745
        %v813 = vmax.f32 %v653, %v747
        %v814 = vmax.f32 %v654, %v749
        %v815 = vmax.f32 %v655, %v751
        %816 = vrot.lane.b32.xlu0 %v624, 64
        %v817 = vpop.permute.xlu0 %816
        %818 = vrot.lane.b32.xlu0 %v625, 64
        %v819 = vpop.permute.xlu0 %818
        %820 = vrot.lane.b32.xlu0 %v626, 64
        %v821 = vpop.permute.xlu0 %820
        %822 = vrot.lane.b32.xlu0 %v627, 64
        %v823 = vpop.permute.xlu0 %822
        %824 = vrot.lane.b32.xlu0 %v628, 64
        %v825 = vpop.permute.xlu0 %824
        %826 = vrot.lane.b32.xlu0 %v629, 64
        %v827 = vpop.permute.xlu0 %826
        %828 = vrot.lane.b32.xlu0 %v630, 64
        %v829 = vpop.permute.xlu0 %828
        %830 = vrot.lane.b32.xlu0 %v631, 64
        %v831 = vpop.permute.xlu0 %830
        %832 = vrot.lane.b32.xlu0 %v632, 64
        %v833 = vpop.permute.xlu0 %832
        %834 = vrot.lane.b32.xlu0 %v633, 64
        %v835 = vpop.permute.xlu0 %834
        %836 = vrot.lane.b32.xlu0 %v634, 64
        %v837 = vpop.permute.xlu0 %836
        %838 = vrot.lane.b32.xlu0 %v635, 64
        %v839 = vpop.permute.xlu0 %838
        %840 = vrot.lane.b32.xlu0 %v636, 64
        %v841 = vpop.permute.xlu0 %840
        %842 = vrot.lane.b32.xlu0 %v637, 64
        %v843 = vpop.permute.xlu0 %842
        %844 = vrot.lane.b32.xlu0 %v638, 64
        %v845 = vpop.permute.xlu0 %844
        %846 = vrot.lane.b32.xlu0 %v639, 64
        %v847 = vpop.permute.xlu0 %846
        %848 = vrot.lane.b32.xlu0 %v640, 64
        %v849 = vpop.permute.xlu0 %848
        %850 = vrot.lane.b32.xlu0 %v641, 64
        %v851 = vpop.permute.xlu0 %850
        %852 = vrot.lane.b32.xlu0 %v642, 64
        %v853 = vpop.permute.xlu0 %852
        %854 = vrot.lane.b32.xlu0 %v643, 64
        %v855 = vpop.permute.xlu0 %854
        %856 = vrot.lane.b32.xlu0 %v644, 64
        %v857 = vpop.permute.xlu0 %856
        %858 = vrot.lane.b32.xlu0 %v645, 64
        %v859 = vpop.permute.xlu0 %858
        %860 = vrot.lane.b32.xlu0 %v646, 64
        %v861 = vpop.permute.xlu0 %860
        %862 = vrot.lane.b32.xlu0 %v647, 64
        %v863 = vpop.permute.xlu0 %862
        %864 = vrot.lane.b32.xlu0 %v648, 64
        %v865 = vpop.permute.xlu0 %864
        %866 = vrot.lane.b32.xlu0 %v649, 64
        %v867 = vpop.permute.xlu0 %866
        %868 = vrot.lane.b32.xlu0 %v650, 64
        %v869 = vpop.permute.xlu0 %868
        %870 = vrot.lane.b32.xlu0 %v651, 64
        %v871 = vpop.permute.xlu0 %870
        %872 = vrot.lane.b32.xlu0 %v652, 64
        %v873 = vpop.permute.xlu0 %872
        %874 = vrot.lane.b32.xlu0 %v653, 64
        %v875 = vpop.permute.xlu0 %874
        %876 = vrot.lane.b32.xlu0 %v654, 64
        %v877 = vpop.permute.xlu0 %876
        %878 = vrot.lane.b32.xlu0 %v655, 64
        %v879 = vpop.permute.xlu0 %878
        %v912 = vmax.f32 %v784, %v817
        %v913 = vmax.f32 %v785, %v819
        %v914 = vmax.f32 %v786, %v821
        %v915 = vmax.f32 %v787, %v823
        %v916 = vmax.f32 %v788, %v825
        %v917 = vmax.f32 %v789, %v827
        %v918 = vmax.f32 %v790, %v829
        %v919 = vmax.f32 %v791, %v831
        %v920 = vmax.f32 %v792, %v833
        %v921 = vmax.f32 %v793, %v835
        %v922 = vmax.f32 %v794, %v837
        %v923 = vmax.f32 %v795, %v839
        %v924 = vmax.f32 %v796, %v841
        %v925 = vmax.f32 %v797, %v843
        %v926 = vmax.f32 %v798, %v845
        %v927 = vmax.f32 %v799, %v847
        %v928 = vmax.f32 %v800, %v849
        %v929 = vmax.f32 %v801, %v851
        %v930 = vmax.f32 %v802, %v853
        %v931 = vmax.f32 %v803, %v855
        %v932 = vmax.f32 %v804, %v857
        %v933 = vmax.f32 %v805, %v859
        %v934 = vmax.f32 %v806, %v861
        %v935 = vmax.f32 %v807, %v863
        %v936 = vmax.f32 %v808, %v865
        %v937 = vmax.f32 %v809, %v867
        %v938 = vmax.f32 %v810, %v869
        %v939 = vmax.f32 %v811, %v871
        %v940 = vmax.f32 %v812, %v873
        %v941 = vmax.f32 %v813, %v875
        %v942 = vmax.f32 %v814, %v877
        %v943 = vmax.f32 %v815, %v879
        %vm944 = vcmask 261120
        %v946 = vsel %vm944, %v912, 0
        %v949 = vsel %vm944, %v913, 0
        %v952 = vsel %vm944, %v914, 0
        %v955 = vsel %vm944, %v915, 0
        %v958 = vsel %vm944, %v916, 0
        %v961 = vsel %vm944, %v917, 0
        %v964 = vsel %vm944, %v918, 0
        %v967 = vsel %vm944, %v919, 0
        %v970 = vsel %vm944, %v920, 0
        %v973 = vsel %vm944, %v921, 0
        %v976 = vsel %vm944, %v922, 0
        %v979 = vsel %vm944, %v923, 0
        %v982 = vsel %vm944, %v924, 0
        %v985 = vsel %vm944, %v925, 0
        %v988 = vsel %vm944, %v926, 0
        %v991 = vsel %vm944, %v927, 0
        %v994 = vsel %vm944, %v928, 0
        %v997 = vsel %vm944, %v929, 0
        %v1000 = vsel %vm944, %v930, 0
        %v1003 = vsel %vm944, %v931, 0
        %v1006 = vsel %vm944, %v932, 0
        %v1009 = vsel %vm944, %v933, 0
        %v1012 = vsel %vm944, %v934, 0
        %v1015 = vsel %vm944, %v935, 0
        %v1018 = vsel %vm944, %v936, 0
        %v1021 = vsel %vm944, %v937, 0
        %v1024 = vsel %vm944, %v938, 0
        %v1027 = vsel %vm944, %v939, 0
        %v1030 = vsel %vm944, %v940, 0
        %v1033 = vsel %vm944, %v941, 0
        %v1036 = vsel %vm944, %v942, 0
        %v1039 = vsel %vm944, %v943, 0
        %1041 = vmatprep.subr.mxu0 0.0
        %1042 = vmatpush1.msra.mxu0 %v279
        %1043 = vmatprep.subr.mxu0 0.0
        %1044 = vmatpush1.msra.mxu0 %v280
        %1045 = vmatprep.subr.mxu0 0.0
        %1046 = vmatpush1.msra.mxu0 %v281
        %1047 = vmatprep.subr.mxu0 0.0
        %1048 = vmatpush1.msra.mxu0 %v282
        %1049 = vmatprep.subr.mxu0 0.0
        %1050 = vmatpush1.msra.mxu0 0.0
        %1051 = vmatprep.subr.mxu0 0.0
        %1052 = vmatpush1.msra.mxu0 0.0
        %1053 = vmatprep.subr.mxu0 0.0
        %1054 = vmatpush1.msra.mxu0 0.0
        %1055 = vmatprep.subr.mxu0 0.0
        %1056 = vmatpush1.msra.mxu0 0.0
        %1057 = vmatprep.subr.mxu0 0.0
        %1058 = vmatpush1.msra.mxu0 0.0
        %1059 = vmatprep.subr.mxu0 0.0
        %1060 = vmatpush1.msra.mxu0 0.0
        %1061 = vmatprep.subr.mxu0 0.0
        %1062 = vmatpush1.msra.mxu0 0.0
        %1063 = vmatprep.subr.mxu0 0.0
        %1064 = vmatpush1.msra.mxu0 0.0
        %1065 = vmatprep.subr.mxu0 0.0
        %1066 = vmatpush1.msra.mxu0 0.0
        %1067 = vmatprep.subr.mxu0 0.0
        %1068 = vmatpush1.msra.mxu0 0.0
        %1069 = vmatprep.subr.mxu0 0.0
        %1070 = vmatpush1.msra.mxu0 0.0
        %1071 = vmatprep.subr.mxu0 0.0
        %1072 = vmatpush1.msra.mxu0 0.0
        %1073 = vmatprep.subr.mxu0 0.0
        %1074 = vmatpush1.msra.mxu0 0.0
        %1075 = vmatprep.subr.mxu0 0.0
        %1076 = vmatpush1.msra.mxu0 0.0
        %1077 = vmatprep.subr.mxu0 0.0
        %1078 = vmatpush1.msra.mxu0 0.0
        %1079 = vmatprep.subr.mxu0 0.0
        %1080 = vmatpush1.msra.mxu0 0.0
        %1081 = vmatprep.subr.mxu0 0.0
        %1082 = vmatpush1.msra.mxu0 0.0
        %1083 = vmatprep.subr.mxu0 0.0
        %1084 = vmatpush1.msra.mxu0 0.0
        %1085 = vmatprep.subr.mxu0 0.0
        %1086 = vmatpush1.msra.mxu0 0.0
        %1087 = vmatprep.subr.mxu0 0.0
        %1088 = vmatpush1.msra.mxu0 0.0
        %1089 = vmatprep.subr.mxu0 0.0
        %1090 = vmatpush1.msra.mxu0 0.0
        %1091 = vmatprep.subr.mxu0 0.0
        %1092 = vmatpush1.msra.mxu0 0.0
        %1093 = vmatprep.subr.mxu0 0.0
        %1094 = vmatpush1.msra.mxu0 0.0
        %1095 = vmatprep.subr.mxu0 0.0
        %1096 = vmatpush1.msra.mxu0 0.0
        %1097 = vmatprep.subr.mxu0 0.0
        %1098 = vmatpush1.msra.mxu0 0.0
        %1099 = vmatprep.subr.mxu0 0.0
        %1100 = vmatpush1.msra.mxu0 0.0
        %1101 = vmatprep.subr.mxu0 0.0
        %1102 = vmatpush1.msra.mxu0 0.0
        %1103 = vmatprep.subr.mxu0 0.0
        %1104 = vmatpush1.msra.mxu0 0.0
        %1105 = vmatprep.mubr.f32.mxu0 0.0
        %1106 = vmatmul.mubr.f32.gmra.mrb[0].mxu0 %v946
        %v1107 = vpop.f32.mrb[0].mxu0
        %v1108 = vadd.f32 0.0, %v1107
        %v1109 = vpop.f32.mrb[0].mxu0
        %1110 = vmatprep.mubr.f32.mxu0 0.0
        %1111 = vmatmul.mubr.f32.gmra.mrb[0].mxu0 %v949
        %v1112 = vpop.f32.mrb[0].mxu0
        %v1113 = vadd.f32 0.0, %v1112
        %v1114 = vpop.f32.mrb[0].mxu0
        %1115 = vmatprep.mubr.f32.mxu0 0.0
        %1116 = vmatmul.mubr.f32.gmra.mrb[0].mxu0 %v952
        %v1117 = vpop.f32.mrb[0].mxu0
        %v1118 = vadd.f32 0.0, %v1117
        %v1119 = vpop.f32.mrb[0].mxu0
        %1120 = vmatprep.mubr.f32.mxu0 0.0
        %1121 = vmatmul.mubr.f32.gmra.mrb[0].mxu0 %v955
        %v1122 = vpop.f32.mrb[0].mxu0
        %v1123 = vadd.f32 0.0, %v1122
        %v1124 = vpop.f32.mrb[0].mxu0
        %1125 = vmatprep.mubr.f32.mxu0 0.0
        %1126 = vmatmul.mubr.f32.gmra.mrb[0].mxu0 %v958
        %v1127 = vpop.f32.mrb[0].mxu0
        %v1128 = vadd.f32 0.0, %v1127
        %v1129 = vpop.f32.mrb[0].mxu0
        %1130 = vmatprep.mubr.f32.mxu0 0.0
        %1131 = vmatmul.mubr.f32.gmra.mrb[0].mxu0 %v961
        %v1132 = vpop.f32.mrb[0].mxu0
        %v1133 = vadd.f32 0.0, %v1132
        %v1134 = vpop.f32.mrb[0].mxu0
        %1135 = vmatprep.mubr.f32.mxu0 0.0
        %1136 = vmatmul.mubr.f32.gmra.mrb[0].mxu0 %v964
        %v1137 = vpop.f32.mrb[0].mxu0
        %v1138 = vadd.f32 0.0, %v1137
        %v1139 = vpop.f32.mrb[0].mxu0
        %1140 = vmatprep.mubr.f32.mxu0 0.0
        %1141 = vmatmul.mubr.f32.gmra.mrb[0].mxu0 %v967
        %v1142 = vpop.f32.mrb[0].mxu0
        %v1143 = vadd.f32 0.0, %v1142
        %v1144 = vpop.f32.mrb[0].mxu0
        %1145 = vmatprep.mubr.f32.mxu0 0.0
        %1146 = vmatmul.mubr.f32.gmra.mrb[0].mxu0 %v970
        %v1147 = vpop.f32.mrb[0].mxu0
        %v1148 = vadd.f32 0.0, %v1147
        %v1149 = vpop.f32.mrb[0].mxu0
        %1150 = vmatprep.mubr.f32.mxu0 0.0
        %1151 = vmatmul.mubr.f32.gmra.mrb[0].mxu0 %v973
        %v1152 = vpop.f32.mrb[0].mxu0
        %v1153 = vadd.f32 0.0, %v1152
        %v1154 = vpop.f32.mrb[0].mxu0
        %1155 = vmatprep.mubr.f32.mxu0 0.0
        %1156 = vmatmul.mubr.f32.gmra.mrb[0].mxu0 %v976
        %v1157 = vpop.f32.mrb[0].mxu0
        %v1158 = vadd.f32 0.0, %v1157
        %v1159 = vpop.f32.mrb[0].mxu0
        %1160 = vmatprep.mubr.f32.mxu0 0.0
        %1161 = vmatmul.mubr.f32.gmra.mrb[0].mxu0 %v979
        %v1162 = vpop.f32.mrb[0].mxu0
        %v1163 = vadd.f32 0.0, %v1162
        %v1164 = vpop.f32.mrb[0].mxu0
        %1165 = vmatprep.mubr.f32.mxu0 0.0
        %1166 = vmatmul.mubr.f32.gmra.mrb[0].mxu0 %v982
        %v1167 = vpop.f32.mrb[0].mxu0
        %v1168 = vadd.f32 0.0, %v1167
        %v1169 = vpop.f32.mrb[0].mxu0
        %1170 = vmatprep.mubr.f32.mxu0 0.0
        %1171 = vmatmul.mubr.f32.gmra.mrb[0].mxu0 %v985
        %v1172 = vpop.f32.mrb[0].mxu0
        %v1173 = vadd.f32 0.0, %v1172
        %v1174 = vpop.f32.mrb[0].mxu0
        %1175 = vmatprep.mubr.f32.mxu0 0.0
        %1176 = vmatmul.mubr.f32.gmra.mrb[0].mxu0 %v988
        %v1177 = vpop.f32.mrb[0].mxu0
        %v1178 = vadd.f32 0.0, %v1177
        %v1179 = vpop.f32.mrb[0].mxu0
        %1180 = vmatprep.mubr.f32.mxu0 0.0
        %1181 = vmatmul.mubr.f32.gmra.mrb[0].mxu0 %v991
        %v1182 = vpop.f32.mrb[0].mxu0
        %v1183 = vadd.f32 0.0, %v1182
        %v1184 = vpop.f32.mrb[0].mxu0
        %1185 = vmatprep.mubr.f32.mxu0 0.0
        %1186 = vmatmul.mubr.f32.gmra.mrb[0].mxu0 %v994
        %v1187 = vpop.f32.mrb[0].mxu0
        %v1188 = vadd.f32 0.0, %v1187
        %v1189 = vpop.f32.mrb[0].mxu0
        %1190 = vmatprep.mubr.f32.mxu0 0.0
        %1191 = vmatmul.mubr.f32.gmra.mrb[0].mxu0 %v997
        %v1192 = vpop.f32.mrb[0].mxu0
        %v1193 = vadd.f32 0.0, %v1192
        %v1194 = vpop.f32.mrb[0].mxu0
        %1195 = vmatprep.mubr.f32.mxu0 0.0
        %1196 = vmatmul.mubr.f32.gmra.mrb[0].mxu0 %v1000
        %v1197 = vpop.f32.mrb[0].mxu0
        %v1198 = vadd.f32 0.0, %v1197
        %v1199 = vpop.f32.mrb[0].mxu0
        %1200 = vmatprep.mubr.f32.mxu0 0.0
        %1201 = vmatmul.mubr.f32.gmra.mrb[0].mxu0 %v1003
        %v1202 = vpop.f32.mrb[0].mxu0
        %v1203 = vadd.f32 0.0, %v1202
        %v1204 = vpop.f32.mrb[0].mxu0
        %1205 = vmatprep.mubr.f32.mxu0 0.0
        %1206 = vmatmul.mubr.f32.gmra.mrb[0].mxu0 %v1006
        %v1207 = vpop.f32.mrb[0].mxu0
        %v1208 = vadd.f32 0.0, %v1207
        %v1209 = vpop.f32.mrb[0].mxu0
        %1210 = vmatprep.mubr.f32.mxu0 0.0
        %1211 = vmatmul.mubr.f32.gmra.mrb[0].mxu0 %v1009
        %v1212 = vpop.f32.mrb[0].mxu0
        %v1213 = vadd.f32 0.0, %v1212
        %v1214 = vpop.f32.mrb[0].mxu0
        %1215 = vmatprep.mubr.f32.mxu0 0.0
        %1216 = vmatmul.mubr.f32.gmra.mrb[0].mxu0 %v1012
        %v1217 = vpop.f32.mrb[0].mxu0
        %v1218 = vadd.f32 0.0, %v1217
        %v1219 = vpop.f32.mrb[0].mxu0
        %1220 = vmatprep.mubr.f32.mxu0 0.0
        %1221 = vmatmul.mubr.f32.gmra.mrb[0].mxu0 %v1015
        %v1222 = vpop.f32.mrb[0].mxu0
        %v1223 = vadd.f32 0.0, %v1222
        %v1224 = vpop.f32.mrb[0].mxu0
        %1225 = vmatprep.mubr.f32.mxu0 0.0
        %1226 = vmatmul.mubr.f32.gmra.mrb[0].mxu0 %v1018
        %v1227 = vpop.f32.mrb[0].mxu0
        %v1228 = vadd.f32 0.0, %v1227
        %v1229 = vpop.f32.mrb[0].mxu0
        %1230 = vmatprep.mubr.f32.mxu0 0.0
        %1231 = vmatmul.mubr.f32.gmra.mrb[0].mxu0 %v1021
        %v1232 = vpop.f32.mrb[0].mxu0
        %v1233 = vadd.f32 0.0, %v1232
        %v1234 = vpop.f32.mrb[0].mxu0
        %1235 = vmatprep.mubr.f32.mxu0 0.0
        %1236 = vmatmul.mubr.f32.gmra.mrb[0].mxu0 %v1024
        %v1237 = vpop.f32.mrb[0].mxu0
        %v1238 = vadd.f32 0.0, %v1237
        %v1239 = vpop.f32.mrb[0].mxu0
        %1240 = vmatprep.mubr.f32.mxu0 0.0
        %1241 = vmatmul.mubr.f32.gmra.mrb[0].mxu0 %v1027
        %v1242 = vpop.f32.mrb[0].mxu0
        %v1243 = vadd.f32 0.0, %v1242
        %v1244 = vpop.f32.mrb[0].mxu0
        %1245 = vmatprep.mubr.f32.mxu0 0.0
        %1246 = vmatmul.mubr.f32.gmra.mrb[0].mxu0 %v1030
        %v1247 = vpop.f32.mrb[0].mxu0
        %v1248 = vadd.f32 0.0, %v1247
        %v1249 = vpop.f32.mrb[0].mxu0
        %1250 = vmatprep.mubr.f32.mxu0 0.0
        %1251 = vmatmul.mubr.f32.gmra.mrb[0].mxu0 %v1033
        %v1252 = vpop.f32.mrb[0].mxu0
        %v1253 = vadd.f32 0.0, %v1252
        %v1254 = vpop.f32.mrb[0].mxu0
        %1255 = vmatprep.mubr.f32.mxu0 0.0
        %1256 = vmatmul.mubr.f32.gmra.mrb[0].mxu0 %v1036
        %v1257 = vpop.f32.mrb[0].mxu0
        %v1258 = vadd.f32 0.0, %v1257
        %v1259 = vpop.f32.mrb[0].mxu0
        %1260 = vmatprep.mubr.f32.mxu0 0.0
        %1261 = vmatmul.mubr.f32.gmra.mrb[0].mxu0 %v1039
        %v1262 = vpop.f32.mrb[0].mxu0
        %v1263 = vadd.f32 0.0, %v1262
        %v1264 = vpop.f32.mrb[0].mxu0
        %1265 = vdwg.mxu0
        %v1267 = vsel %vm944, %v1108, 0
        %v1270 = vsel %vm944, %v1113, 0
        %v1273 = vsel %vm944, %v1118, 0
        %v1276 = vsel %vm944, %v1123, 0
        %1278 = vmatprep.subr.mxu0 0.0
        %1279 = vmatpush1.xpose.msra.mxu0 %v1267
        %1280 = vmatprep.subr.mxu0 0.0
        %1281 = vmatpush1.xpose.msra.mxu0 %v1270
        %1282 = vmatprep.subr.mxu0 0.0
        %1283 = vmatpush1.xpose.msra.mxu0 %v1273
        %1284 = vmatprep.subr.mxu0 0.0
        %1285 = vmatpush1.xpose.msra.mxu0 %v1276
        %1286 = vmatprep.subr.mxu0 0.0
        %1287 = vmatpush1.xpose.msra.mxu0 0.0
        %1288 = vmatprep.subr.mxu0 0.0
        %1289 = vmatpush1.xpose.msra.mxu0 0.0
        %1290 = vmatprep.subr.mxu0 0.0
        %1291 = vmatpush1.xpose.msra.mxu0 0.0
        %1292 = vmatprep.subr.mxu0 0.0
        %1293 = vmatpush1.xpose.msra.mxu0 0.0
        %1294 = vmatprep.subr.mxu0 0.0
        %1295 = vmatpush1.xpose.msra.mxu0 0.0
        %1296 = vmatprep.subr.mxu0 0.0
        %1297 = vmatpush1.xpose.msra.mxu0 0.0
        %1298 = vmatprep.subr.mxu0 0.0
        %1299 = vmatpush1.xpose.msra.mxu0 0.0
        %1300 = vmatprep.subr.mxu0 0.0
        %1301 = vmatpush1.xpose.msra.mxu0 0.0
        %1302 = vmatprep.subr.mxu0 0.0
        %1303 = vmatpush1.xpose.msra.mxu0 0.0
        %1304 = vmatprep.subr.mxu0 0.0
        %1305 = vmatpush1.xpose.msra.mxu0 0.0
        %1306 = vmatprep.subr.mxu0 0.0
        %1307 = vmatpush1.xpose.msra.mxu0 0.0
        %1308 = vmatprep.subr.mxu0 0.0
        %1309 = vmatpush1.xpose.msra.mxu0 0.0
        %1310 = vmatprep.subr.mxu0 0.0
        %1311 = vmatpush1.xpose.msra.mxu0 0.0
        %1312 = vmatprep.subr.mxu0 0.0
        %1313 = vmatpush1.xpose.msra.mxu0 0.0
        %1314 = vmatprep.subr.mxu0 0.0
        %1315 = vmatpush1.xpose.msra.mxu0 0.0
        %1316 = vmatprep.subr.mxu0 0.0
        %1317 = vmatpush1.xpose.msra.mxu0 0.0
        %1318 = vmatprep.subr.mxu0 0.0
        %1319 = vmatpush1.xpose.msra.mxu0 0.0
        %1320 = vmatprep.subr.mxu0 0.0
        %1321 = vmatpush1.xpose.msra.mxu0 0.0
        %1322 = vmatprep.subr.mxu0 0.0
        %1323 = vmatpush1.xpose.msra.mxu0 0.0
        %1324 = vmatprep.subr.mxu0 0.0
        %1325 = vmatpush1.xpose.msra.mxu0 0.0
        %1326 = vmatprep.subr.mxu0 0.0
        %1327 = vmatpush1.xpose.msra.mxu0 0.0
        %1328 = vmatprep.subr.mxu0 0.0
        %1329 = vmatpush1.xpose.msra.mxu0 0.0
        %1330 = vmatprep.subr.mxu0 0.0
        %1331 = vmatpush1.xpose.msra.mxu0 0.0
        %1332 = vmatprep.subr.mxu0 0.0
        %1333 = vmatpush1.xpose.msra.mxu0 0.0
        %1334 = vmatprep.subr.mxu0 0.0
        %1335 = vmatpush1.xpose.msra.mxu0 0.0
        %1336 = vmatprep.subr.mxu0 0.0
        %1337 = vmatpush1.xpose.msra.mxu0 0.0
        %1338 = vmatprep.subr.mxu0 0.0
        %1339 = vmatpush1.xpose.msra.mxu0 0.0
        %1340 = vmatprep.subr.mxu0 0.0
        %1341 = vmatpush1.xpose.msra.mxu0 0.0
        %1342 = vmatprep.mubr.f32.mxu0 0.0
        %1343 = vmatmul.mubr.f32.gmra.mrb[0].mxu0 %v946
        %v1344 = vpop.f32.mrb[0].mxu0
        %v1345 = vadd.f32 0.0, %v1344
        %v1346 = vpop.f32.mrb[0].mxu0
        %1347 = vmatprep.mubr.f32.mxu0 0.0
        %1348 = vmatmul.mubr.f32.gmra.mrb[0].mxu0 %v949
        %v1349 = vpop.f32.mrb[0].mxu0
        %v1350 = vadd.f32 0.0, %v1349
        %v1351 = vpop.f32.mrb[0].mxu0
        %1352 = vmatprep.mubr.f32.mxu0 0.0
        %1353 = vmatmul.mubr.f32.gmra.mrb[0].mxu0 %v952
        %v1354 = vpop.f32.mrb[0].mxu0
        %v1355 = vadd.f32 0.0, %v1354
        %v1356 = vpop.f32.mrb[0].mxu0
        %1357 = vmatprep.mubr.f32.mxu0 0.0
        %1358 = vmatmul.mubr.f32.gmra.mrb[0].mxu0 %v955
        %v1359 = vpop.f32.mrb[0].mxu0
        %v1360 = vadd.f32 0.0, %v1359
        %v1361 = vpop.f32.mrb[0].mxu0
        %1362 = vdwg.mxu0
        %v1363 = vtanh.pop %v1345
        %v1364 = vtanh.pop %v1350
        %v1365 = vtanh.pop %v1355
        %v1366 = vtanh.pop %v1360
        %v1367 = vsel %vm944, %v1363, -inf
        %v1368 = vsel %vm944, %v1364, -inf
        %v1369 = vsel %vm944, %v1365, -inf
        %v1370 = vsel %vm944, %v1366, -inf
        %v1371 = vmax.f32 %v1367, %v1368
        %v1372 = vmax.f32 %v1369, %v1370
        %v1373 = vmax.f32 %v1371, %v1372
        %v1374 = vrot.slane %v1373, 4
        %v1375 = vmax.f32 %v1373, %v1374
        %v1376 = vrot.slane %v1375, 2
        %v1377 = vmax.f32 %v1375, %v1376
        %v1378 = vrot.slane %v1377, 1
        %v1379 = vmax.f32 %v1377, %v1378
        %v1380 = vsel %vm944, %v1379, -inf
        %1381 = vmax.xlane.f32.xlu0 %v1380
        %v1382 = vpop.xlane.xlu0 %1381
        %v1383 = vsub.f32 %v1379, %v1382
        %v1384 = vmul.f32 %v1383, 1.442695
        %v1385 = vpow.pop %v1384
        %v1386 = vsel %vm944, %v1385, 0.0
        %1387 = vadd.xlane.f32.xlu0 %v1386
        %v1388 = vpop.xlane.xlu0 %1387
        %v1389 = vrcp.pop %v1388
        %v1390 = vmul.f32 %v1385, %v1389
        %v1392 = vsel %vm944, %v1390, 0
        %1394 = vmatprep.subr.mxu0 0.0
        %1395 = vmatpush1.msra.mxu0 %v912
        %1396 = vmatprep.subr.mxu0 0.0
        %1397 = vmatpush1.msra.mxu0 %v913
        %1398 = vmatprep.subr.mxu0 0.0
        %1399 = vmatpush1.msra.mxu0 %v914
        %1400 = vmatprep.subr.mxu0 0.0
        %1401 = vmatpush1.msra.mxu0 %v915
        %1402 = vmatprep.subr.mxu0 0.0
        %1403 = vmatpush1.msra.mxu0 0.0
        %1404 = vmatprep.subr.mxu0 0.0
        %1405 = vmatpush1.msra.mxu0 0.0
        %1406 = vmatprep.subr.mxu0 0.0
        %1407 = vmatpush1.msra.mxu0 0.0
        %1408 = vmatprep.subr.mxu0 0.0
        %1409 = vmatpush1.msra.mxu0 0.0
        %1410 = vmatprep.subr.mxu0 0.0
        %1411 = vmatpush1.msra.mxu0 0.0
        %1412 = vmatprep.subr.mxu0 0.0
        %1413 = vmatpush1.msra.mxu0 0.0
        %1414 = vmatprep.subr.mxu0 0.0
        %1415 = vmatpush1.msra.mxu0 0.0
        %1416 = vmatprep.subr.mxu0 0.0
        %1417 = vmatpush1.msra.mxu0 0.0
        %1418 = vmatprep.subr.mxu0 0.0
        %1419 = vmatpush1.msra.mxu0 0.0
        %1420 = vmatprep.subr.mxu0 0.0
        %1421 = vmatpush1.msra.mxu0 0.0
        %1422 = vmatprep.subr.mxu0 0.0
        %1423 = vmatpush1.msra.mxu0 0.0
        %1424 = vmatprep.subr.mxu0 0.0
        %1425 = vmatpush1.msra.mxu0 0.0
        %1426 = vmatprep.subr.mxu0 0.0
        %1427 = vmatpush1.msra.mxu0 0.0
        %1428 = vmatprep.subr.mxu0 0.0
        %1429 = vmatpush1.msra.mxu0 0.0
        %1430 = vmatprep.subr.mxu0 0.0
        %1431 = vmatpush1.msra.mxu0 0.0
        %1432 = vmatprep.subr.mxu0 0.0
        %1433 = vmatpush1.msra.mxu0 0.0
        %1434 = vmatprep.subr.mxu0 0.0
        %1435 = vmatpush1.msra.mxu0 0.0
        %1436 = vmatprep.subr.mxu0 0.0
        %1437 = vmatpush1.msra.mxu0 0.0
        %1438 = vmatprep.subr.mxu0 0.0
        %1439 = vmatpush1.msra.mxu0 0.0
        %1440 = vmatprep.subr.mxu0 0.0
        %1441 = vmatpush1.msra.mxu0 0.0
        %1442 = vmatprep.subr.mxu0 0.0
        %1443 = vmatpush1.msra.mxu0 0.0
        %1444 = vmatprep.subr.mxu0 0.0
        %1445 = vmatpush1.msra.mxu0 0.0
        %1446 = vmatprep.subr.mxu0 0.0
        %1447 = vmatpush1.msra.mxu0 0.0
        %1448 = vmatprep.subr.mxu0 0.0
        %1449 = vmatpush1.msra.mxu0 0.0
        %1450 = vmatprep.subr.mxu0 0.0
        %1451 = vmatpush1.msra.mxu0 0.0
        %1452 = vmatprep.subr.mxu0 0.0
        %1453 = vmatpush1.msra.mxu0 0.0
        %1454 = vmatprep.subr.mxu0 0.0
        %1455 = vmatpush1.msra.mxu0 0.0
        %1456 = vmatprep.subr.mxu0 0.0
        %1457 = vmatpush1.msra.mxu0 0.0
        %1458 = vmatprep.mubr.f32.mxu0 0.0
        %1459 = vmatmul.mubr.f32.gmra.mrb[0].mxu0 %v1392
        %v1460 = vpop.f32.mrb[0].mxu0
        %v1461 = vadd.f32 0.0, %v1460
        %v1462 = vpop.f32.mrb[0].mxu0
        %1463 = vdwg.mxu0
        %v1465 = vsel %vm944, %v1128, 0
        %v1468 = vsel %vm944, %v1133, 0
        %v1471 = vsel %vm944, %v1138, 0
        %v1474 = vsel %vm944, %v1143, 0
        %1476 = vmatprep.subr.mxu0 0.0
        %1477 = vmatpush1.xpose.msra.mxu0 %v1465
        %1478 = vmatprep.subr.mxu0 0.0
        %1479 = vmatpush1.xpose.msra.mxu0 %v1468
        %1480 = vmatprep.subr.mxu0 0.0
        %1481 = vmatpush1.xpose.msra.mxu0 %v1471
        %1482 = vmatprep.subr.mxu0 0.0
        %1483 = vmatpush1.xpose.msra.mxu0 %v1474
        %1484 = vmatprep.subr.mxu0 0.0
        %1485 = vmatpush1.xpose.msra.mxu0 0.0
        %1486 = vmatprep.subr.mxu0 0.0
        %1487 = vmatpush1.xpose.msra.mxu0 0.0
        %1488 = vmatprep.subr.mxu0 0.0
        %1489 = vmatpush1.xpose.msra.mxu0 0.0
        %1490 = vmatprep.subr.mxu0 0.0
        %1491 = vmatpush1.xpose.msra.mxu0 0.0
        %1492 = vmatprep.subr.mxu0 0.0
        %1493 = vmatpush1.xpose.msra.mxu0 0.0
        %1494 = vmatprep.subr.mxu0 0.0
        %1495 = vmatpush1.xpose.msra.mxu0 0.0
        %1496 = vmatprep.subr.mxu0 0.0
        %1497 = vmatpush1.xpose.msra.mxu0 0.0
        %1498 = vmatprep.subr.mxu0 0.0
        %1499 = vmatpush1.xpose.msra.mxu0 0.0
        %1500 = vmatprep.subr.mxu0 0.0
        %1501 = vmatpush1.xpose.msra.mxu0 0.0
        %1502 = vmatprep.subr.mxu0 0.0
        %1503 = vmatpush1.xpose.msra.mxu0 0.0
        %1504 = vmatprep.subr.mxu0 0.0
        %1505 = vmatpush1.xpose.msra.mxu0 0.0
        %1506 = vmatprep.subr.mxu0 0.0
        %1507 = vmatpush1.xpose.msra.mxu0 0.0
        %1508 = vmatprep.subr.mxu0 0.0
        %1509 = vmatpush1.xpose.msra.mxu0 0.0
        %1510 = vmatprep.subr.mxu0 0.0
        %1511 = vmatpush1.xpose.msra.mxu0 0.0
        %1512 = vmatprep.subr.mxu0 0.0
        %1513 = vmatpush1.xpose.msra.mxu0 0.0
        %1514 = vmatprep.subr.mxu0 0.0
        %1515 = vmatpush1.xpose.msra.mxu0 0.0
        %1516 = vmatprep.subr.mxu0 0.0
        %1517 = vmatpush1.xpose.msra.mxu0 0.0
        %1518 = vmatprep.subr.mxu0 0.0
        %1519 = vmatpush1.xpose.msra.mxu0 0.0
        %1520 = vmatprep.subr.mxu0 0.0
        %1521 = vmatpush1.xpose.msra.mxu0 0.0
        %1522 = vmatprep.subr.mxu0 0.0
        %1523 = vmatpush1.xpose.msra.mxu0 0.0
        %1524 = vmatprep.subr.mxu0 0.0
        %1525 = vmatpush1.xpose.msra.mxu0 0.0
        %1526 = vmatprep.subr.mxu0 0.0
        %1527 = vmatpush1.xpose.msra.mxu0 0.0
        %1528 = vmatprep.subr.mxu0 0.0
        %1529 = vmatpush1.xpose.msra.mxu0 0.0
        %1530 = vmatprep.subr.mxu0 0.0
        %1531 = vmatpush1.xpose.msra.mxu0 0.0
        %1532 = vmatprep.subr.mxu0 0.0
        %1533 = vmatpush1.xpose.msra.mxu0 0.0
        %1534 = vmatprep.subr.mxu0 0.0
        %1535 = vmatpush1.xpose.msra.mxu0 0.0
        %1536 = vmatprep.subr.mxu0 0.0
        %1537 = vmatpush1.xpose.msra.mxu0 0.0
        %1538 = vmatprep.subr.mxu0 0.0
        %1539 = vmatpush1.xpose.msra.mxu0 0.0
        %1540 = vmatprep.mubr.f32.mxu0 0.0
        %1541 = vmatmul.mubr.f32.gmra.mrb[0].mxu0 %v958
        %v1542 = vpop.f32.mrb[0].mxu0
        %v1543 = vadd.f32 0.0, %v1542
        %v1544 = vpop.f32.mrb[0].mxu0
        %1545 = vmatprep.mubr.f32.mxu0 0.0
        %1546 = vmatmul.mubr.f32.gmra.mrb[0].mxu0 %v961
        %v1547 = vpop.f32.mrb[0].mxu0
        %v1548 = vadd.f32 0.0, %v1547
        %v1549 = vpop.f32.mrb[0].mxu0
        %1550 = vmatprep.mubr.f32.mxu0 0.0
        %1551 = vmatmul.mubr.f32.gmra.mrb[0].mxu0 %v964
        %v1552 = vpop.f32.mrb[0].mxu0
        %v1553 = vadd.f32 0.0, %v1552
        %v1554 = vpop.f32.mrb[0].mxu0
        %1555 = vmatprep.mubr.f32.mxu0 0.0
        %1556 = vmatmul.mubr.f32.gmra.mrb[0].mxu0 %v967
        %v1557 = vpop.f32.mrb[0].mxu0
        %v1558 = vadd.f32 0.0, %v1557
        %v1559 = vpop.f32.mrb[0].mxu0
        %1560 = vdwg.mxu0
        %v1561 = vtanh.pop %v1543
        %v1562 = vtanh.pop %v1548
        %v1563 = vtanh.pop %v1553
        %v1564 = vtanh.pop %v1558
        %v1565 = vsel %vm944, %v1561, -inf
        %v1566 = vsel %vm944, %v1562, -inf
        %v1567 = vsel %vm944, %v1563, -inf
        %v1568 = vsel %vm944, %v1564, -inf
        %v1569 = vmax.f32 %v1565, %v1566
        %v1570 = vmax.f32 %v1567, %v1568
        %v1571 = vmax.f32 %v1569, %v1570
        %v1572 = vrot.slane %v1571, 4
        %v1573 = vmax.f32 %v1571, %v1572
        %v1574 = vrot.slane %v1573, 2
        %v1575 = vmax.f32 %v1573, %v1574
        %v1576 = vrot.slane %v1575, 1
        %v1577 = vmax.f32 %v1575, %v1576
        %v1578 = vsel %vm944, %v1577, -inf
        %1579 = vmax.xlane.f32.xlu0 %v1578
        %v1580 = vpop.xlane.xlu0 %1579
        %v1581 = vsub.f32 %v1577, %v1580
        %v1582 = vmul.f32 %v1581, 1.442695
        %v1583 = vpow.pop %v1582
        %v1584 = vsel %vm944, %v1583, 0.0
        %1585 = vadd.xlane.f32.xlu0 %v1584
        %v1586 = vpop.xlane.xlu0 %1585
        %v1587 = vrcp.pop %v1586
        %v1588 = vmul.f32 %v1583, %v1587
        %v1590 = vsel %vm944, %v1588, 0
        %1592 = vmatprep.subr.mxu0 0.0
        %1593 = vmatpush1.msra.mxu0 %v916
        %1594 = vmatprep.subr.mxu0 0.0
        %1595 = vmatpush1.msra.mxu0 %v917
        %1596 = vmatprep.subr.mxu0 0.0
        %1597 = vmatpush1.msra.mxu0 %v918
        %1598 = vmatprep.subr.mxu0 0.0
        %1599 = vmatpush1.msra.mxu0 %v919
        %1600 = vmatprep.subr.mxu0 0.0
        %1601 = vmatpush1.msra.mxu0 0.0
        %1602 = vmatprep.subr.mxu0 0.0
        %1603 = vmatpush1.msra.mxu0 0.0
        %1604 = vmatprep.subr.mxu0 0.0
        %1605 = vmatpush1.msra.mxu0 0.0
        %1606 = vmatprep.subr.mxu0 0.0
        %1607 = vmatpush1.msra.mxu0 0.0
        %1608 = vmatprep.subr.mxu0 0.0
        %1609 = vmatpush1.msra.mxu0 0.0
        %1610 = vmatprep.subr.mxu0 0.0
        %1611 = vmatpush1.msra.mxu0 0.0
        %1612 = vmatprep.subr.mxu0 0.0
        %1613 = vmatpush1.msra.mxu0 0.0
        %1614 = vmatprep.subr.mxu0 0.0
        %1615 = vmatpush1.msra.mxu0 0.0
        %1616 = vmatprep.subr.mxu0 0.0
        %1617 = vmatpush1.msra.mxu0 0.0
        %1618 = vmatprep.subr.mxu0 0.0
        %1619 = vmatpush1.msra.mxu0 0.0
        %1620 = vmatprep.subr.mxu0 0.0
        %1621 = vmatpush1.msra.mxu0 0.0
        %1622 = vmatprep.subr.mxu0 0.0
        %1623 = vmatpush1.msra.mxu0 0.0
        %1624 = vmatprep.subr.mxu0 0.0
        %1625 = vmatpush1.msra.mxu0 0.0
        %1626 = vmatprep.subr.mxu0 0.0
        %1627 = vmatpush1.msra.mxu0 0.0
        %1628 = vmatprep.subr.mxu0 0.0
        %1629 = vmatpush1.msra.mxu0 0.0
        %1630 = vmatprep.subr.mxu0 0.0
        %1631 = vmatpush1.msra.mxu0 0.0
        %1632 = vmatprep.subr.mxu0 0.0
        %1633 = vmatpush1.msra.mxu0 0.0
        %1634 = vmatprep.subr.mxu0 0.0
        %1635 = vmatpush1.msra.mxu0 0.0
        %1636 = vmatprep.subr.mxu0 0.0
        %1637 = vmatpush1.msra.mxu0 0.0
        %1638 = vmatprep.subr.mxu0 0.0
        %1639 = vmatpush1.msra.mxu0 0.0
        %1640 = vmatprep.subr.mxu0 0.0
        %1641 = vmatpush1.msra.mxu0 0.0
        %1642 = vmatprep.subr.mxu0 0.0
        %1643 = vmatpush1.msra.mxu0 0.0
        %1644 = vmatprep.subr.mxu0 0.0
        %1645 = vmatpush1.msra.mxu0 0.0
        %1646 = vmatprep.subr.mxu0 0.0
        %1647 = vmatpush1.msra.mxu0 0.0
        %1648 = vmatprep.subr.mxu0 0.0
        %1649 = vmatpush1.msra.mxu0 0.0
        %1650 = vmatprep.subr.mxu0 0.0
        %1651 = vmatpush1.msra.mxu0 0.0
        %1652 = vmatprep.subr.mxu0 0.0
        %1653 = vmatpush1.msra.mxu0 0.0
        %1654 = vmatprep.subr.mxu0 0.0
        %1655 = vmatpush1.msra.mxu0 0.0
        %1656 = vmatprep.mubr.f32.mxu0 0.0
        %1657 = vmatmul.mubr.f32.gmra.mrb[0].mxu0 %v1590
        %v1658 = vpop.f32.mrb[0].mxu0
        %v1659 = vadd.f32 0.0, %v1658
        %v1660 = vpop.f32.mrb[0].mxu0
        %1661 = vdwg.mxu0
        %v1663 = vsel %vm944, %v1148, 0
        %v1666 = vsel %vm944, %v1153, 0
        %v1669 = vsel %vm944, %v1158, 0
        %v1672 = vsel %vm944, %v1163, 0
        %1674 = vmatprep.subr.mxu0 0.0
        %1675 = vmatpush1.xpose.msra.mxu0 %v1663
        %1676 = vmatprep.subr.mxu0 0.0
        %1677 = vmatpush1.xpose.msra.mxu0 %v1666
        %1678 = vmatprep.subr.mxu0 0.0
        %1679 = vmatpush1.xpose.msra.mxu0 %v1669
        %1680 = vmatprep.subr.mxu0 0.0
        %1681 = vmatpush1.xpose.msra.mxu0 %v1672
        %1682 = vmatprep.subr.mxu0 0.0
        %1683 = vmatpush1.xpose.msra.mxu0 0.0
        %1684 = vmatprep.subr.mxu0 0.0
        %1685 = vmatpush1.xpose.msra.mxu0 0.0
        %1686 = vmatprep.subr.mxu0 0.0
        %1687 = vmatpush1.xpose.msra.mxu0 0.0
        %1688 = vmatprep.subr.mxu0 0.0
        %1689 = vmatpush1.xpose.msra.mxu0 0.0
        %1690 = vmatprep.subr.mxu0 0.0
        %1691 = vmatpush1.xpose.msra.mxu0 0.0
        %1692 = vmatprep.subr.mxu0 0.0
        %1693 = vmatpush1.xpose.msra.mxu0 0.0
        %1694 = vmatprep.subr.mxu0 0.0
        %1695 = vmatpush1.xpose.msra.mxu0 0.0
        %1696 = vmatprep.subr.mxu0 0.0
        %1697 = vmatpush1.xpose.msra.mxu0 0.0
        %1698 = vmatprep.subr.mxu0 0.0
        %1699 = vmatpush1.xpose.msra.mxu0 0.0
        %1700 = vmatprep.subr.mxu0 0.0
        %1701 = vmatpush1.xpose.msra.mxu0 0.0
        %1702 = vmatprep.subr.mxu0 0.0
        %1703 = vmatpush1.xpose.msra.mxu0 0.0
        %1704 = vmatprep.subr.mxu0 0.0
        %1705 = vmatpush1.xpose.msra.mxu0 0.0
        %1706 = vmatprep.subr.mxu0 0.0
        %1707 = vmatpush1.xpose.msra.mxu0 0.0
        %1708 = vmatprep.subr.mxu0 0.0
        %1709 = vmatpush1.xpose.msra.mxu0 0.0
        %1710 = vmatprep.subr.mxu0 0.0
        %1711 = vmatpush1.xpose.msra.mxu0 0.0
        %1712 = vmatprep.subr.mxu0 0.0
        %1713 = vmatpush1.xpose.msra.mxu0 0.0
        %1714 = vmatprep.subr.mxu0 0.0
        %1715 = vmatpush1.xpose.msra.mxu0 0.0
        %1716 = vmatprep.subr.mxu0 0.0
        %1717 = vmatpush1.xpose.msra.mxu0 0.0
        %1718 = vmatprep.subr.mxu0 0.0
        %1719 = vmatpush1.xpose.msra.mxu0 0.0
        %1720 = vmatprep.subr.mxu0 0.0
        %1721 = vmatpush1.xpose.msra.mxu0 0.0
        %1722 = vmatprep.subr.mxu0 0.0
        %1723 = vmatpush1.xpose.msra.mxu0 0.0
        %1724 = vmatprep.subr.mxu0 0.0
        %1725 = vmatpush1.xpose.msra.mxu0 0.0
        %1726 = vmatprep.subr.mxu0 0.0
        %1727 = vmatpush1.xpose.msra.mxu0 0.0
        %1728 = vmatprep.subr.mxu0 0.0
        %1729 = vmatpush1.xpose.msra.mxu0 0.0
        %1730 = vmatprep.subr.mxu0 0.0
        %1731 = vmatpush1.xpose.msra.mxu0 0.0
        %1732 = vmatprep.subr.mxu0 0.0
        %1733 = vmatpush1.xpose.msra.mxu0 0.0
        %1734 = vmatprep.subr.mxu0 0.0
        %1735 = vmatpush1.xpose.msra.mxu0 0.0
        %1736 = vmatprep.subr.mxu0 0.0
        %1737 = vmatpush1.xpose.msra.mxu0 0.0
        %1738 = vmatprep.mubr.f32.mxu0 0.0
        %1739 = vmatmul.mubr.f32.gmra.mrb[0].mxu0 %v970
        %v1740 = vpop.f32.mrb[0].mxu0
        %v1741 = vadd.f32 0.0, %v1740
        %v1742 = vpop.f32.mrb[0].mxu0
        %1743 = vmatprep.mubr.f32.mxu0 0.0
        %1744 = vmatmul.mubr.f32.gmra.mrb[0].mxu0 %v973
        %v1745 = vpop.f32.mrb[0].mxu0
        %v1746 = vadd.f32 0.0, %v1745
        %v1747 = vpop.f32.mrb[0].mxu0
        %1748 = vmatprep.mubr.f32.mxu0 0.0
        %1749 = vmatmul.mubr.f32.gmra.mrb[0].mxu0 %v976
        %v1750 = vpop.f32.mrb[0].mxu0
        %v1751 = vadd.f32 0.0, %v1750
        %v1752 = vpop.f32.mrb[0].mxu0
        %1753 = vmatprep.mubr.f32.mxu0 0.0
        %1754 = vmatmul.mubr.f32.gmra.mrb[0].mxu0 %v979
        %v1755 = vpop.f32.mrb[0].mxu0
        %v1756 = vadd.f32 0.0, %v1755
        %v1757 = vpop.f32.mrb[0].mxu0
        %1758 = vdwg.mxu0
        %v1759 = vtanh.pop %v1741
        %v1760 = vtanh.pop %v1746
        %v1761 = vtanh.pop %v1751
        %v1762 = vtanh.pop %v1756
        %v1763 = vsel %vm944, %v1759, -inf
        %v1764 = vsel %vm944, %v1760, -inf
        %v1765 = vsel %vm944, %v1761, -inf
        %v1766 = vsel %vm944, %v1762, -inf
        %v1767 = vmax.f32 %v1763, %v1764
        %v1768 = vmax.f32 %v1765, %v1766
        %v1769 = vmax.f32 %v1767, %v1768
        %v1770 = vrot.slane %v1769, 4
        %v1771 = vmax.f32 %v1769, %v1770
        %v1772 = vrot.slane %v1771, 2
        %v1773 = vmax.f32 %v1771, %v1772
        %v1774 = vrot.slane %v1773, 1
        %v1775 = vmax.f32 %v1773, %v1774
        %v1776 = vsel %vm944, %v1775, -inf
        %1777 = vmax.xlane.f32.xlu0 %v1776
        %v1778 = vpop.xlane.xlu0 %1777
        %v1779 = vsub.f32 %v1775, %v1778
        %v1780 = vmul.f32 %v1779, 1.442695
        %v1781 = vpow.pop %v1780
        %v1782 = vsel %vm944, %v1781, 0.0
        %1783 = vadd.xlane.f32.xlu0 %v1782
        %v1784 = vpop.xlane.xlu0 %1783
        %v1785 = vrcp.pop %v1784
        %v1786 = vmul.f32 %v1781, %v1785
        %v1788 = vsel %vm944, %v1786, 0
        %1790 = vmatprep.subr.mxu0 0.0
        %1791 = vmatpush1.msra.mxu0 %v920
        %1792 = vmatprep.subr.mxu0 0.0
        %1793 = vmatpush1.msra.mxu0 %v921
        %1794 = vmatprep.subr.mxu0 0.0
        %1795 = vmatpush1.msra.mxu0 %v922
        %1796 = vmatprep.subr.mxu0 0.0
        %1797 = vmatpush1.msra.mxu0 %v923
        %1798 = vmatprep.subr.mxu0 0.0
        %1799 = vmatpush1.msra.mxu0 0.0
        %1800 = vmatprep.subr.mxu0 0.0
        %1801 = vmatpush1.msra.mxu0 0.0
        %1802 = vmatprep.subr.mxu0 0.0
        %1803 = vmatpush1.msra.mxu0 0.0
        %1804 = vmatprep.subr.mxu0 0.0
        %1805 = vmatpush1.msra.mxu0 0.0
        %1806 = vmatprep.subr.mxu0 0.0
        %1807 = vmatpush1.msra.mxu0 0.0
        %1808 = vmatprep.subr.mxu0 0.0
        %1809 = vmatpush1.msra.mxu0 0.0
        %1810 = vmatprep.subr.mxu0 0.0
        %1811 = vmatpush1.msra.mxu0 0.0
        %1812 = vmatprep.subr.mxu0 0.0
        %1813 = vmatpush1.msra.mxu0 0.0
        %1814 = vmatprep.subr.mxu0 0.0
        %1815 = vmatpush1.msra.mxu0 0.0
        %1816 = vmatprep.subr.mxu0 0.0
        %1817 = vmatpush1.msra.mxu0 0.0
        %1818 = vmatprep.subr.mxu0 0.0
        %1819 = vmatpush1.msra.mxu0 0.0
        %1820 = vmatprep.subr.mxu0 0.0
        %1821 = vmatpush1.msra.mxu0 0.0
        %1822 = vmatprep.subr.mxu0 0.0
        %1823 = vmatpush1.msra.mxu0 0.0
        %1824 = vmatprep.subr.mxu0 0.0
        %1825 = vmatpush1.msra.mxu0 0.0
        %1826 = vmatprep.subr.mxu0 0.0
        %1827 = vmatpush1.msra.mxu0 0.0
        %1828 = vmatprep.subr.mxu0 0.0
        %1829 = vmatpush1.msra.mxu0 0.0
        %1830 = vmatprep.subr.mxu0 0.0
        %1831 = vmatpush1.msra.mxu0 0.0
        %1832 = vmatprep.subr.mxu0 0.0
        %1833 = vmatpush1.msra.mxu0 0.0
        %1834 = vmatprep.subr.mxu0 0.0
        %1835 = vmatpush1.msra.mxu0 0.0
        %1836 = vmatprep.subr.mxu0 0.0
        %1837 = vmatpush1.msra.mxu0 0.0
        %1838 = vmatprep.subr.mxu0 0.0
        %1839 = vmatpush1.msra.mxu0 0.0
        %1840 = vmatprep.subr.mxu0 0.0
        %1841 = vmatpush1.msra.mxu0 0.0
        %1842 = vmatprep.subr.mxu0 0.0
        %1843 = vmatpush1.msra.mxu0 0.0
        %1844 = vmatprep.subr.mxu0 0.0
        %1845 = vmatpush1.msra.mxu0 0.0
        %1846 = vmatprep.subr.mxu0 0.0
        %1847 = vmatpush1.msra.mxu0 0.0
        %1848 = vmatprep.subr.mxu0 0.0
        %1849 = vmatpush1.msra.mxu0 0.0
        %1850 = vmatprep.subr.mxu0 0.0
        %1851 = vmatpush1.msra.mxu0 0.0
        %1852 = vmatprep.subr.mxu0 0.0
        %1853 = vmatpush1.msra.mxu0 0.0
        %1854 = vmatprep.mubr.f32.mxu0 0.0
        %1855 = vmatmul.mubr.f32.gmra.mrb[0].mxu0 %v1788
        %v1856 = vpop.f32.mrb[0].mxu0
        %v1857 = vadd.f32 0.0, %v1856
        %v1858 = vpop.f32.mrb[0].mxu0
        %1859 = vdwg.mxu0
        %v1861 = vsel %vm944, %v1168, 0
        %v1864 = vsel %vm944, %v1173, 0
        %v1867 = vsel %vm944, %v1178, 0
        %v1870 = vsel %vm944, %v1183, 0
        %1872 = vmatprep.subr.mxu0 0.0
        %1873 = vmatpush1.xpose.msra.mxu0 %v1861
        %1874 = vmatprep.subr.mxu0 0.0
        %1875 = vmatpush1.xpose.msra.mxu0 %v1864
        %1876 = vmatprep.subr.mxu0 0.0
        %1877 = vmatpush1.xpose.msra.mxu0 %v1867
        %1878 = vmatprep.subr.mxu0 0.0
        %1879 = vmatpush1.xpose.msra.mxu0 %v1870
        %1880 = vmatprep.subr.mxu0 0.0
        %1881 = vmatpush1.xpose.msra.mxu0 0.0
        %1882 = vmatprep.subr.mxu0 0.0
        %1883 = vmatpush1.xpose.msra.mxu0 0.0
        %1884 = vmatprep.subr.mxu0 0.0
        %1885 = vmatpush1.xpose.msra.mxu0 0.0
        %1886 = vmatprep.subr.mxu0 0.0
        %1887 = vmatpush1.xpose.msra.mxu0 0.0
        %1888 = vmatprep.subr.mxu0 0.0
        %1889 = vmatpush1.xpose.msra.mxu0 0.0
        %1890 = vmatprep.subr.mxu0 0.0
        %1891 = vmatpush1.xpose.msra.mxu0 0.0
        %1892 = vmatprep.subr.mxu0 0.0
        %1893 = vmatpush1.xpose.msra.mxu0 0.0
        %1894 = vmatprep.subr.mxu0 0.0
        %1895 = vmatpush1.xpose.msra.mxu0 0.0
        %1896 = vmatprep.subr.mxu0 0.0
        %1897 = vmatpush1.xpose.msra.mxu0 0.0
        %1898 = vmatprep.subr.mxu0 0.0
        %1899 = vmatpush1.xpose.msra.mxu0 0.0
        %1900 = vmatprep.subr.mxu0 0.0
        %1901 = vmatpush1.xpose.msra.mxu0 0.0
        %1902 = vmatprep.subr.mxu0 0.0
        %1903 = vmatpush1.xpose.msra.mxu0 0.0
        %1904 = vmatprep.subr.mxu0 0.0
        %1905 = vmatpush1.xpose.msra.mxu0 0.0
        %1906 = vmatprep.subr.mxu0 0.0
        %1907 = vmatpush1.xpose.msra.mxu0 0.0
        %1908 = vmatprep.subr.mxu0 0.0
        %1909 = vmatpush1.xpose.msra.mxu0 0.0
        %1910 = vmatprep.subr.mxu0 0.0
        %1911 = vmatpush1.xpose.msra.mxu0 0.0
        %1912 = vmatprep.subr.mxu0 0.0
        %1913 = vmatpush1.xpose.msra.mxu0 0.0
        %1914 = vmatprep.subr.mxu0 0.0
        %1915 = vmatpush1.xpose.msra.mxu0 0.0
        %1916 = vmatprep.subr.mxu0 0.0
        %1917 = vmatpush1.xpose.msra.mxu0 0.0
        %1918 = vmatprep.subr.mxu0 0.0
        %1919 = vmatpush1.xpose.msra.mxu0 0.0
        %1920 = vmatprep.subr.mxu0 0.0
        %1921 = vmatpush1.xpose.msra.mxu0 0.0
        %1922 = vmatprep.subr.mxu0 0.0
        %1923 = vmatpush1.xpose.msra.mxu0 0.0
        %1924 = vmatprep.subr.mxu0 0.0
        %1925 = vmatpush1.xpose.msra.mxu0 0.0
        %1926 = vmatprep.subr.mxu0 0.0
        %1927 = vmatpush1.xpose.msra.mxu0 0.0
        %1928 = vmatprep.subr.mxu0 0.0
        %1929 = vmatpush1.xpose.msra.mxu0 0.0
        %1930 = vmatprep.subr.mxu0 0.0
        %1931 = vmatpush1.xpose.msra.mxu0 0.0
        %1932 = vmatprep.subr.mxu0 0.0
        %1933 = vmatpush1.xpose.msra.mxu0 0.0
        %1934 = vmatprep.subr.mxu0 0.0
        %1935 = vmatpush1.xpose.msra.mxu0 0.0
        %1936 = vmatprep.mubr.f32.mxu0 0.0
        %1937 = vmatmul.mubr.f32.gmra.mrb[0].mxu0 %v982
        %v1938 = vpop.f32.mrb[0].mxu0
        %v1939 = vadd.f32 0.0, %v1938
        %v1940 = vpop.f32.mrb[0].mxu0
        %1941 = vmatprep.mubr.f32.mxu0 0.0
        %1942 = vmatmul.mubr.f32.gmra.mrb[0].mxu0 %v985
        %v1943 = vpop.f32.mrb[0].mxu0
        %v1944 = vadd.f32 0.0, %v1943
        %v1945 = vpop.f32.mrb[0].mxu0
        %1946 = vmatprep.mubr.f32.mxu0 0.0
        %1947 = vmatmul.mubr.f32.gmra.mrb[0].mxu0 %v988
        %v1948 = vpop.f32.mrb[0].mxu0
        %v1949 = vadd.f32 0.0, %v1948
        %v1950 = vpop.f32.mrb[0].mxu0
        %1951 = vmatprep.mubr.f32.mxu0 0.0
        %1952 = vmatmul.mubr.f32.gmra.mrb[0].mxu0 %v991
        %v1953 = vpop.f32.mrb[0].mxu0
        %v1954 = vadd.f32 0.0, %v1953
        %v1955 = vpop.f32.mrb[0].mxu0
        %1956 = vdwg.mxu0
        %v1957 = vtanh.pop %v1939
        %v1958 = vtanh.pop %v1944
        %v1959 = vtanh.pop %v1949
        %v1960 = vtanh.pop %v1954
        %v1961 = vsel %vm944, %v1957, -inf
        %v1962 = vsel %vm944, %v1958, -inf
        %v1963 = vsel %vm944, %v1959, -inf
        %v1964 = vsel %vm944, %v1960, -inf
        %v1965 = vmax.f32 %v1961, %v1962
        %v1966 = vmax.f32 %v1963, %v1964
        %v1967 = vmax.f32 %v1965, %v1966
        %v1968 = vrot.slane %v1967, 4
        %v1969 = vmax.f32 %v1967, %v1968
        %v1970 = vrot.slane %v1969, 2
        %v1971 = vmax.f32 %v1969, %v1970
        %v1972 = vrot.slane %v1971, 1
        %v1973 = vmax.f32 %v1971, %v1972
        %v1974 = vsel %vm944, %v1973, -inf
        %1975 = vmax.xlane.f32.xlu0 %v1974
        %v1976 = vpop.xlane.xlu0 %1975
        %v1977 = vsub.f32 %v1973, %v1976
        %v1978 = vmul.f32 %v1977, 1.442695
        %v1979 = vpow.pop %v1978
        %v1980 = vsel %vm944, %v1979, 0.0
        %1981 = vadd.xlane.f32.xlu0 %v1980
        %v1982 = vpop.xlane.xlu0 %1981
        %v1983 = vrcp.pop %v1982
        %v1984 = vmul.f32 %v1979, %v1983
        %v1986 = vsel %vm944, %v1984, 0
        %1988 = vmatprep.subr.mxu0 0.0
        %1989 = vmatpush1.msra.mxu0 %v924
        %1990 = vmatprep.subr.mxu0 0.0
        %1991 = vmatpush1.msra.mxu0 %v925
        %1992 = vmatprep.subr.mxu0 0.0
        %1993 = vmatpush1.msra.mxu0 %v926
        %1994 = vmatprep.subr.mxu0 0.0
        %1995 = vmatpush1.msra.mxu0 %v927
        %1996 = vmatprep.subr.mxu0 0.0
        %1997 = vmatpush1.msra.mxu0 0.0
        %1998 = vmatprep.subr.mxu0 0.0
        %1999 = vmatpush1.msra.mxu0 0.0
        %2000 = vmatprep.subr.mxu0 0.0
        %2001 = vmatpush1.msra.mxu0 0.0
        %2002 = vmatprep.subr.mxu0 0.0
        %2003 = vmatpush1.msra.mxu0 0.0
        %2004 = vmatprep.subr.mxu0 0.0
        %2005 = vmatpush1.msra.mxu0 0.0
        %2006 = vmatprep.subr.mxu0 0.0
        %2007 = vmatpush1.msra.mxu0 0.0
        %2008 = vmatprep.subr.mxu0 0.0
        %2009 = vmatpush1.msra.mxu0 0.0
        %2010 = vmatprep.subr.mxu0 0.0
        %2011 = vmatpush1.msra.mxu0 0.0
        %2012 = vmatprep.subr.mxu0 0.0
        %2013 = vmatpush1.msra.mxu0 0.0
        %2014 = vmatprep.subr.mxu0 0.0
        %2015 = vmatpush1.msra.mxu0 0.0
        %2016 = vmatprep.subr.mxu0 0.0
        %2017 = vmatpush1.msra.mxu0 0.0
        %2018 = vmatprep.subr.mxu0 0.0
        %2019 = vmatpush1.msra.mxu0 0.0
        %2020 = vmatprep.subr.mxu0 0.0
        %2021 = vmatpush1.msra.mxu0 0.0
        %2022 = vmatprep.subr.mxu0 0.0
        %2023 = vmatpush1.msra.mxu0 0.0
        %2024 = vmatprep.subr.mxu0 0.0
        %2025 = vmatpush1.msra.mxu0 0.0
        %2026 = vmatprep.subr.mxu0 0.0
        %2027 = vmatpush1.msra.mxu0 0.0
        %2028 = vmatprep.subr.mxu0 0.0
        %2029 = vmatpush1.msra.mxu0 0.0
        %2030 = vmatprep.subr.mxu0 0.0
        %2031 = vmatpush1.msra.mxu0 0.0
        %2032 = vmatprep.subr.mxu0 0.0
        %2033 = vmatpush1.msra.mxu0 0.0
        %2034 = vmatprep.subr.mxu0 0.0
        %2035 = vmatpush1.msra.mxu0 0.0
        %2036 = vmatprep.subr.mxu0 0.0
        %2037 = vmatpush1.msra.mxu0 0.0
        %2038 = vmatprep.subr.mxu0 0.0
        %2039 = vmatpush1.msra.mxu0 0.0
        %2040 = vmatprep.subr.mxu0 0.0
        %2041 = vmatpush1.msra.mxu0 0.0
        %2042 = vmatprep.subr.mxu0 0.0
        %2043 = vmatpush1.msra.mxu0 0.0
        %2044 = vmatprep.subr.mxu0 0.0
        %2045 = vmatpush1.msra.mxu0 0.0
        %2046 = vmatprep.subr.mxu0 0.0
        %2047 = vmatpush1.msra.mxu0 0.0
        %2048 = vmatprep.subr.mxu0 0.0
        %2049 = vmatpush1.msra.mxu0 0.0
        %2050 = vmatprep.subr.mxu0 0.0
        %2051 = vmatpush1.msra.mxu0 0.0
        %2052 = vmatprep.mubr.f32.mxu0 0.0
        %2053 = vmatmul.mubr.f32.gmra.mrb[0].mxu0 %v1986
        %v2054 = vpop.f32.mrb[0].mxu0
        %v2055 = vadd.f32 0.0, %v2054
        %v2056 = vpop.f32.mrb[0].mxu0
        %2057 = vdwg.mxu0
        %v2059 = vsel %vm944, %v1188, 0
        %v2062 = vsel %vm944, %v1193, 0
        %v2065 = vsel %vm944, %v1198, 0
        %v2068 = vsel %vm944, %v1203, 0
        %2070 = vmatprep.subr.mxu0 0.0
        %2071 = vmatpush1.xpose.msra.mxu0 %v2059
        %2072 = vmatprep.subr.mxu0 0.0
        %2073 = vmatpush1.xpose.msra.mxu0 %v2062
        %2074 = vmatprep.subr.mxu0 0.0
        %2075 = vmatpush1.xpose.msra.mxu0 %v2065
        %2076 = vmatprep.subr.mxu0 0.0
        %2077 = vmatpush1.xpose.msra.mxu0 %v2068
        %2078 = vmatprep.subr.mxu0 0.0
        %2079 = vmatpush1.xpose.msra.mxu0 0.0
        %2080 = vmatprep.subr.mxu0 0.0
        %2081 = vmatpush1.xpose.msra.mxu0 0.0
        %2082 = vmatprep.subr.mxu0 0.0
        %2083 = vmatpush1.xpose.msra.mxu0 0.0
        %2084 = vmatprep.subr.mxu0 0.0
        %2085 = vmatpush1.xpose.msra.mxu0 0.0
        %2086 = vmatprep.subr.mxu0 0.0
        %2087 = vmatpush1.xpose.msra.mxu0 0.0
        %2088 = vmatprep.subr.mxu0 0.0
        %2089 = vmatpush1.xpose.msra.mxu0 0.0
        %2090 = vmatprep.subr.mxu0 0.0
        %2091 = vmatpush1.xpose.msra.mxu0 0.0
        %2092 = vmatprep.subr.mxu0 0.0
        %2093 = vmatpush1.xpose.msra.mxu0 0.0
        %2094 = vmatprep.subr.mxu0 0.0
        %2095 = vmatpush1.xpose.msra.mxu0 0.0
        %2096 = vmatprep.subr.mxu0 0.0
        %2097 = vmatpush1.xpose.msra.mxu0 0.0
        %2098 = vmatprep.subr.mxu0 0.0
        %2099 = vmatpush1.xpose.msra.mxu0 0.0
        %2100 = vmatprep.subr.mxu0 0.0
        %2101 = vmatpush1.xpose.msra.mxu0 0.0
        %2102 = vmatprep.subr.mxu0 0.0
        %2103 = vmatpush1.xpose.msra.mxu0 0.0
        %2104 = vmatprep.subr.mxu0 0.0
        %2105 = vmatpush1.xpose.msra.mxu0 0.0
        %2106 = vmatprep.subr.mxu0 0.0
        %2107 = vmatpush1.xpose.msra.mxu0 0.0
        %2108 = vmatprep.subr.mxu0 0.0
        %2109 = vmatpush1.xpose.msra.mxu0 0.0
        %2110 = vmatprep.subr.mxu0 0.0
        %2111 = vmatpush1.xpose.msra.mxu0 0.0
        %2112 = vmatprep.subr.mxu0 0.0
        %2113 = vmatpush1.xpose.msra.mxu0 0.0
        %2114 = vmatprep.subr.mxu0 0.0
        %2115 = vmatpush1.xpose.msra.mxu0 0.0
        %2116 = vmatprep.subr.mxu0 0.0
        %2117 = vmatpush1.xpose.msra.mxu0 0.0
        %2118 = vmatprep.subr.mxu0 0.0
        %2119 = vmatpush1.xpose.msra.mxu0 0.0
        %2120 = vmatprep.subr.mxu0 0.0
        %2121 = vmatpush1.xpose.msra.mxu0 0.0
        %2122 = vmatprep.subr.mxu0 0.0
        %2123 = vmatpush1.xpose.msra.mxu0 0.0
        %2124 = vmatprep.subr.mxu0 0.0
        %2125 = vmatpush1.xpose.msra.mxu0 0.0
        %2126 = vmatprep.subr.mxu0 0.0
        %2127 = vmatpush1.xpose.msra.mxu0 0.0
        %2128 = vmatprep.subr.mxu0 0.0
        %2129 = vmatpush1.xpose.msra.mxu0 0.0
        %2130 = vmatprep.subr.mxu0 0.0
        %2131 = vmatpush1.xpose.msra.mxu0 0.0
        %2132 = vmatprep.subr.mxu0 0.0
        %2133 = vmatpush1.xpose.msra.mxu0 0.0
        %2134 = vmatprep.mubr.f32.mxu0 0.0
        %2135 = vmatmul.mubr.f32.gmra.mrb[0].mxu0 %v994
        %v2136 = vpop.f32.mrb[0].mxu0
        %v2137 = vadd.f32 0.0, %v2136
        %v2138 = vpop.f32.mrb[0].mxu0
        %2139 = vmatprep.mubr.f32.mxu0 0.0
        %2140 = vmatmul.mubr.f32.gmra.mrb[0].mxu0 %v997
        %v2141 = vpop.f32.mrb[0].mxu0
        %v2142 = vadd.f32 0.0, %v2141
        %v2143 = vpop.f32.mrb[0].mxu0
        %2144 = vmatprep.mubr.f32.mxu0 0.0
        %2145 = vmatmul.mubr.f32.gmra.mrb[0].mxu0 %v1000
        %v2146 = vpop.f32.mrb[0].mxu0
        %v2147 = vadd.f32 0.0, %v2146
        %v2148 = vpop.f32.mrb[0].mxu0
        %2149 = vmatprep.mubr.f32.mxu0 0.0
        %2150 = vmatmul.mubr.f32.gmra.mrb[0].mxu0 %v1003
        %v2151 = vpop.f32.mrb[0].mxu0
        %v2152 = vadd.f32 0.0, %v2151
        %v2153 = vpop.f32.mrb[0].mxu0
        %2154 = vdwg.mxu0
        %v2155 = vtanh.pop %v2137
        %v2156 = vtanh.pop %v2142
        %v2157 = vtanh.pop %v2147
        %v2158 = vtanh.pop %v2152
        %v2159 = vsel %vm944, %v2155, -inf
        %v2160 = vsel %vm944, %v2156, -inf
        %v2161 = vsel %vm944, %v2157, -inf
        %v2162 = vsel %vm944, %v2158, -inf
        %v2163 = vmax.f32 %v2159, %v2160
        %v2164 = vmax.f32 %v2161, %v2162
        %v2165 = vmax.f32 %v2163, %v2164
        %v2166 = vrot.slane %v2165, 4
        %v2167 = vmax.f32 %v2165, %v2166
        %v2168 = vrot.slane %v2167, 2
        %v2169 = vmax.f32 %v2167, %v2168
        %v2170 = vrot.slane %v2169, 1
        %v2171 = vmax.f32 %v2169, %v2170
        %v2172 = vsel %vm944, %v2171, -inf
        %2173 = vmax.xlane.f32.xlu0 %v2172
        %v2174 = vpop.xlane.xlu0 %2173
        %v2175 = vsub.f32 %v2171, %v2174
        %v2176 = vmul.f32 %v2175, 1.442695
        %v2177 = vpow.pop %v2176
        %v2178 = vsel %vm944, %v2177, 0.0
        %2179 = vadd.xlane.f32.xlu0 %v2178
        %v2180 = vpop.xlane.xlu0 %2179
        %v2181 = vrcp.pop %v2180
        %v2182 = vmul.f32 %v2177, %v2181
        %v2184 = vsel %vm944, %v2182, 0
        %2186 = vmatprep.subr.mxu0 0.0
        %2187 = vmatpush1.msra.mxu0 %v928
        %2188 = vmatprep.subr.mxu0 0.0
        %2189 = vmatpush1.msra.mxu0 %v929
        %2190 = vmatprep.subr.mxu0 0.0
        %2191 = vmatpush1.msra.mxu0 %v930
        %2192 = vmatprep.subr.mxu0 0.0
        %2193 = vmatpush1.msra.mxu0 %v931
        %2194 = vmatprep.subr.mxu0 0.0
        %2195 = vmatpush1.msra.mxu0 0.0
        %2196 = vmatprep.subr.mxu0 0.0
        %2197 = vmatpush1.msra.mxu0 0.0
        %2198 = vmatprep.subr.mxu0 0.0
        %2199 = vmatpush1.msra.mxu0 0.0
        %2200 = vmatprep.subr.mxu0 0.0
        %2201 = vmatpush1.msra.mxu0 0.0
        %2202 = vmatprep.subr.mxu0 0.0
        %2203 = vmatpush1.msra.mxu0 0.0
        %2204 = vmatprep.subr.mxu0 0.0
        %2205 = vmatpush1.msra.mxu0 0.0
        %2206 = vmatprep.subr.mxu0 0.0
        %2207 = vmatpush1.msra.mxu0 0.0
        %2208 = vmatprep.subr.mxu0 0.0
        %2209 = vmatpush1.msra.mxu0 0.0
        %2210 = vmatprep.subr.mxu0 0.0
        %2211 = vmatpush1.msra.mxu0 0.0
        %2212 = vmatprep.subr.mxu0 0.0
        %2213 = vmatpush1.msra.mxu0 0.0
        %2214 = vmatprep.subr.mxu0 0.0
        %2215 = vmatpush1.msra.mxu0 0.0
        %2216 = vmatprep.subr.mxu0 0.0
        %2217 = vmatpush1.msra.mxu0 0.0
        %2218 = vmatprep.subr.mxu0 0.0
        %2219 = vmatpush1.msra.mxu0 0.0
        %2220 = vmatprep.subr.mxu0 0.0
        %2221 = vmatpush1.msra.mxu0 0.0
        %2222 = vmatprep.subr.mxu0 0.0
        %2223 = vmatpush1.msra.mxu0 0.0
        %2224 = vmatprep.subr.mxu0 0.0
        %2225 = vmatpush1.msra.mxu0 0.0
        %2226 = vmatprep.subr.mxu0 0.0
        %2227 = vmatpush1.msra.mxu0 0.0
        %2228 = vmatprep.subr.mxu0 0.0
        %2229 = vmatpush1.msra.mxu0 0.0
        %2230 = vmatprep.subr.mxu0 0.0
        %2231 = vmatpush1.msra.mxu0 0.0
        %2232 = vmatprep.subr.mxu0 0.0
        %2233 = vmatpush1.msra.mxu0 0.0
        %2234 = vmatprep.subr.mxu0 0.0
        %2235 = vmatpush1.msra.mxu0 0.0
        %2236 = vmatprep.subr.mxu0 0.0
        %2237 = vmatpush1.msra.mxu0 0.0
        %2238 = vmatprep.subr.mxu0 0.0
        %2239 = vmatpush1.msra.mxu0 0.0
        %2240 = vmatprep.subr.mxu0 0.0
        %2241 = vmatpush1.msra.mxu0 0.0
        %2242 = vmatprep.subr.mxu0 0.0
        %2243 = vmatpush1.msra.mxu0 0.0
        %2244 = vmatprep.subr.mxu0 0.0
        %2245 = vmatpush1.msra.mxu0 0.0
        %2246 = vmatprep.subr.mxu0 0.0
        %2247 = vmatpush1.msra.mxu0 0.0
        %2248 = vmatprep.subr.mxu0 0.0
        %2249 = vmatpush1.msra.mxu0 0.0
        %2250 = vmatprep.mubr.f32.mxu0 0.0
        %2251 = vmatmul.mubr.f32.gmra.mrb[0].mxu0 %v2184
        %v2252 = vpop.f32.mrb[0].mxu0
        %v2253 = vadd.f32 0.0, %v2252
        %v2254 = vpop.f32.mrb[0].mxu0
        %2255 = vdwg.mxu0
        %v2257 = vsel %vm944, %v1208, 0
        %v2260 = vsel %vm944, %v1213, 0
        %v2263 = vsel %vm944, %v1218, 0
        %v2266 = vsel %vm944, %v1223, 0
        %2268 = vmatprep.subr.mxu0 0.0
        %2269 = vmatpush1.xpose.msra.mxu0 %v2257
        %2270 = vmatprep.subr.mxu0 0.0
        %2271 = vmatpush1.xpose.msra.mxu0 %v2260
        %2272 = vmatprep.subr.mxu0 0.0
        %2273 = vmatpush1.xpose.msra.mxu0 %v2263
        %2274 = vmatprep.subr.mxu0 0.0
        %2275 = vmatpush1.xpose.msra.mxu0 %v2266
        %2276 = vmatprep.subr.mxu0 0.0
        %2277 = vmatpush1.xpose.msra.mxu0 0.0
        %2278 = vmatprep.subr.mxu0 0.0
        %2279 = vmatpush1.xpose.msra.mxu0 0.0
        %2280 = vmatprep.subr.mxu0 0.0
        %2281 = vmatpush1.xpose.msra.mxu0 0.0
        %2282 = vmatprep.subr.mxu0 0.0
        %2283 = vmatpush1.xpose.msra.mxu0 0.0
        %2284 = vmatprep.subr.mxu0 0.0
        %2285 = vmatpush1.xpose.msra.mxu0 0.0
        %2286 = vmatprep.subr.mxu0 0.0
        %2287 = vmatpush1.xpose.msra.mxu0 0.0
        %2288 = vmatprep.subr.mxu0 0.0
        %2289 = vmatpush1.xpose.msra.mxu0 0.0
        %2290 = vmatprep.subr.mxu0 0.0
        %2291 = vmatpush1.xpose.msra.mxu0 0.0
        %2292 = vmatprep.subr.mxu0 0.0
        %2293 = vmatpush1.xpose.msra.mxu0 0.0
        %2294 = vmatprep.subr.mxu0 0.0
        %2295 = vmatpush1.xpose.msra.mxu0 0.0
        %2296 = vmatprep.subr.mxu0 0.0
        %2297 = vmatpush1.xpose.msra.mxu0 0.0
        %2298 = vmatprep.subr.mxu0 0.0
        %2299 = vmatpush1.xpose.msra.mxu0 0.0
        %2300 = vmatprep.subr.mxu0 0.0
        %2301 = vmatpush1.xpose.msra.mxu0 0.0
        %2302 = vmatprep.subr.mxu0 0.0
        %2303 = vmatpush1.xpose.msra.mxu0 0.0
        %2304 = vmatprep.subr.mxu0 0.0
        %2305 = vmatpush1.xpose.msra.mxu0 0.0
        %2306 = vmatprep.subr.mxu0 0.0
        %2307 = vmatpush1.xpose.msra.mxu0 0.0
        %2308 = vmatprep.subr.mxu0 0.0
        %2309 = vmatpush1.xpose.msra.mxu0 0.0
        %2310 = vmatprep.subr.mxu0 0.0
        %2311 = vmatpush1.xpose.msra.mxu0 0.0
        %2312 = vmatprep.subr.mxu0 0.0
        %2313 = vmatpush1.xpose.msra.mxu0 0.0
        %2314 = vmatprep.subr.mxu0 0.0
        %2315 = vmatpush1.xpose.msra.mxu0 0.0
        %2316 = vmatprep.subr.mxu0 0.0
        %2317 = vmatpush1.xpose.msra.mxu0 0.0
        %2318 = vmatprep.subr.mxu0 0.0
        %2319 = vmatpush1.xpose.msra.mxu0 0.0
        %2320 = vmatprep.subr.mxu0 0.0
        %2321 = vmatpush1.xpose.msra.mxu0 0.0
        %2322 = vmatprep.subr.mxu0 0.0
        %2323 = vmatpush1.xpose.msra.mxu0 0.0
        %2324 = vmatprep.subr.mxu0 0.0
        %2325 = vmatpush1.xpose.msra.mxu0 0.0
        %2326 = vmatprep.subr.mxu0 0.0
        %2327 = vmatpush1.xpose.msra.mxu0 0.0
        %2328 = vmatprep.subr.mxu0 0.0
        %2329 = vmatpush1.xpose.msra.mxu0 0.0
        %2330 = vmatprep.subr.mxu0 0.0
        %2331 = vmatpush1.xpose.msra.mxu0 0.0
        %2332 = vmatprep.mubr.f32.mxu0 0.0
        %2333 = vmatmul.mubr.f32.gmra.mrb[0].mxu0 %v1006
        %v2334 = vpop.f32.mrb[0].mxu0
        %v2335 = vadd.f32 0.0, %v2334
        %v2336 = vpop.f32.mrb[0].mxu0
        %2337 = vmatprep.mubr.f32.mxu0 0.0
        %2338 = vmatmul.mubr.f32.gmra.mrb[0].mxu0 %v1009
        %v2339 = vpop.f32.mrb[0].mxu0
        %v2340 = vadd.f32 0.0, %v2339
        %v2341 = vpop.f32.mrb[0].mxu0
        %2342 = vmatprep.mubr.f32.mxu0 0.0
        %2343 = vmatmul.mubr.f32.gmra.mrb[0].mxu0 %v1012
        %v2344 = vpop.f32.mrb[0].mxu0
        %v2345 = vadd.f32 0.0, %v2344
        %v2346 = vpop.f32.mrb[0].mxu0
        %2347 = vmatprep.mubr.f32.mxu0 0.0
        %2348 = vmatmul.mubr.f32.gmra.mrb[0].mxu0 %v1015
        %v2349 = vpop.f32.mrb[0].mxu0
        %v2350 = vadd.f32 0.0, %v2349
        %v2351 = vpop.f32.mrb[0].mxu0
        %2352 = vdwg.mxu0
        %v2353 = vtanh.pop %v2335
        %v2354 = vtanh.pop %v2340
        %v2355 = vtanh.pop %v2345
        %v2356 = vtanh.pop %v2350
        %v2357 = vsel %vm944, %v2353, -inf
        %v2358 = vsel %vm944, %v2354, -inf
        %v2359 = vsel %vm944, %v2355, -inf
        %v2360 = vsel %vm944, %v2356, -inf
        %v2361 = vmax.f32 %v2357, %v2358
        %v2362 = vmax.f32 %v2359, %v2360
        %v2363 = vmax.f32 %v2361, %v2362
        %v2364 = vrot.slane %v2363, 4
        %v2365 = vmax.f32 %v2363, %v2364
        %v2366 = vrot.slane %v2365, 2
        %v2367 = vmax.f32 %v2365, %v2366
        %v2368 = vrot.slane %v2367, 1
        %v2369 = vmax.f32 %v2367, %v2368
        %v2370 = vsel %vm944, %v2369, -inf
        %2371 = vmax.xlane.f32.xlu0 %v2370
        %v2372 = vpop.xlane.xlu0 %2371
        %v2373 = vsub.f32 %v2369, %v2372
        %v2374 = vmul.f32 %v2373, 1.442695
        %v2375 = vpow.pop %v2374
        %v2376 = vsel %vm944, %v2375, 0.0
        %2377 = vadd.xlane.f32.xlu0 %v2376
        %v2378 = vpop.xlane.xlu0 %2377
        %v2379 = vrcp.pop %v2378
        %v2380 = vmul.f32 %v2375, %v2379
        %v2382 = vsel %vm944, %v2380, 0
        %2384 = vmatprep.subr.mxu0 0.0
        %2385 = vmatpush1.msra.mxu0 %v932
        %2386 = vmatprep.subr.mxu0 0.0
        %2387 = vmatpush1.msra.mxu0 %v933
        %2388 = vmatprep.subr.mxu0 0.0
        %2389 = vmatpush1.msra.mxu0 %v934
        %2390 = vmatprep.subr.mxu0 0.0
        %2391 = vmatpush1.msra.mxu0 %v935
        %2392 = vmatprep.subr.mxu0 0.0
        %2393 = vmatpush1.msra.mxu0 0.0
        %2394 = vmatprep.subr.mxu0 0.0
        %2395 = vmatpush1.msra.mxu0 0.0
        %2396 = vmatprep.subr.mxu0 0.0
        %2397 = vmatpush1.msra.mxu0 0.0
        %2398 = vmatprep.subr.mxu0 0.0
        %2399 = vmatpush1.msra.mxu0 0.0
        %2400 = vmatprep.subr.mxu0 0.0
        %2401 = vmatpush1.msra.mxu0 0.0
        %2402 = vmatprep.subr.mxu0 0.0
        %2403 = vmatpush1.msra.mxu0 0.0
        %2404 = vmatprep.subr.mxu0 0.0
        %2405 = vmatpush1.msra.mxu0 0.0
        %2406 = vmatprep.subr.mxu0 0.0
        %2407 = vmatpush1.msra.mxu0 0.0
        %2408 = vmatprep.subr.mxu0 0.0
        %2409 = vmatpush1.msra.mxu0 0.0
        %2410 = vmatprep.subr.mxu0 0.0
        %2411 = vmatpush1.msra.mxu0 0.0
        %2412 = vmatprep.subr.mxu0 0.0
        %2413 = vmatpush1.msra.mxu0 0.0
        %2414 = vmatprep.subr.mxu0 0.0
        %2415 = vmatpush1.msra.mxu0 0.0
        %2416 = vmatprep.subr.mxu0 0.0
        %2417 = vmatpush1.msra.mxu0 0.0
        %2418 = vmatprep.subr.mxu0 0.0
        %2419 = vmatpush1.msra.mxu0 0.0
        %2420 = vmatprep.subr.mxu0 0.0
        %2421 = vmatpush1.msra.mxu0 0.0
        %2422 = vmatprep.subr.mxu0 0.0
        %2423 = vmatpush1.msra.mxu0 0.0
        %2424 = vmatprep.subr.mxu0 0.0
        %2425 = vmatpush1.msra.mxu0 0.0
        %2426 = vmatprep.subr.mxu0 0.0
        %2427 = vmatpush1.msra.mxu0 0.0
        %2428 = vmatprep.subr.mxu0 0.0
        %2429 = vmatpush1.msra.mxu0 0.0
        %2430 = vmatprep.subr.mxu0 0.0
        %2431 = vmatpush1.msra.mxu0 0.0
        %2432 = vmatprep.subr.mxu0 0.0
        %2433 = vmatpush1.msra.mxu0 0.0
        %2434 = vmatprep.subr.mxu0 0.0
        %2435 = vmatpush1.msra.mxu0 0.0
        %2436 = vmatprep.subr.mxu0 0.0
        %2437 = vmatpush1.msra.mxu0 0.0
        %2438 = vmatprep.subr.mxu0 0.0
        %2439 = vmatpush1.msra.mxu0 0.0
        %2440 = vmatprep.subr.mxu0 0.0
        %2441 = vmatpush1.msra.mxu0 0.0
        %2442 = vmatprep.subr.mxu0 0.0
        %2443 = vmatpush1.msra.mxu0 0.0
        %2444 = vmatprep.subr.mxu0 0.0
        %2445 = vmatpush1.msra.mxu0 0.0
        %2446 = vmatprep.subr.mxu0 0.0
        %2447 = vmatpush1.msra.mxu0 0.0
        %2448 = vmatprep.mubr.f32.mxu0 0.0
        %2449 = vmatmul.mubr.f32.gmra.mrb[0].mxu0 %v2382
        %v2450 = vpop.f32.mrb[0].mxu0
        %v2451 = vadd.f32 0.0, %v2450
        %v2452 = vpop.f32.mrb[0].mxu0
        %2453 = vdwg.mxu0
        %v2455 = vsel %vm944, %v1228, 0
        %v2458 = vsel %vm944, %v1233, 0
        %v2461 = vsel %vm944, %v1238, 0
        %v2464 = vsel %vm944, %v1243, 0
        %2466 = vmatprep.subr.mxu0 0.0
        %2467 = vmatpush1.xpose.msra.mxu0 %v2455
        %2468 = vmatprep.subr.mxu0 0.0
        %2469 = vmatpush1.xpose.msra.mxu0 %v2458
        %2470 = vmatprep.subr.mxu0 0.0
        %2471 = vmatpush1.xpose.msra.mxu0 %v2461
        %2472 = vmatprep.subr.mxu0 0.0
        %2473 = vmatpush1.xpose.msra.mxu0 %v2464
        %2474 = vmatprep.subr.mxu0 0.0
        %2475 = vmatpush1.xpose.msra.mxu0 0.0
        %2476 = vmatprep.subr.mxu0 0.0
        %2477 = vmatpush1.xpose.msra.mxu0 0.0
        %2478 = vmatprep.subr.mxu0 0.0
        %2479 = vmatpush1.xpose.msra.mxu0 0.0
        %2480 = vmatprep.subr.mxu0 0.0
        %2481 = vmatpush1.xpose.msra.mxu0 0.0
        %2482 = vmatprep.subr.mxu0 0.0
        %2483 = vmatpush1.xpose.msra.mxu0 0.0
        %2484 = vmatprep.subr.mxu0 0.0
        %2485 = vmatpush1.xpose.msra.mxu0 0.0
        %2486 = vmatprep.subr.mxu0 0.0
        %2487 = vmatpush1.xpose.msra.mxu0 0.0
        %2488 = vmatprep.subr.mxu0 0.0
        %2489 = vmatpush1.xpose.msra.mxu0 0.0
        %2490 = vmatprep.subr.mxu0 0.0
        %2491 = vmatpush1.xpose.msra.mxu0 0.0
        %2492 = vmatprep.subr.mxu0 0.0
        %2493 = vmatpush1.xpose.msra.mxu0 0.0
        %2494 = vmatprep.subr.mxu0 0.0
        %2495 = vmatpush1.xpose.msra.mxu0 0.0
        %2496 = vmatprep.subr.mxu0 0.0
        %2497 = vmatpush1.xpose.msra.mxu0 0.0
        %2498 = vmatprep.subr.mxu0 0.0
        %2499 = vmatpush1.xpose.msra.mxu0 0.0
        %2500 = vmatprep.subr.mxu0 0.0
        %2501 = vmatpush1.xpose.msra.mxu0 0.0
        %2502 = vmatprep.subr.mxu0 0.0
        %2503 = vmatpush1.xpose.msra.mxu0 0.0
        %2504 = vmatprep.subr.mxu0 0.0
        %2505 = vmatpush1.xpose.msra.mxu0 0.0
        %2506 = vmatprep.subr.mxu0 0.0
        %2507 = vmatpush1.xpose.msra.mxu0 0.0
        %2508 = vmatprep.subr.mxu0 0.0
        %2509 = vmatpush1.xpose.msra.mxu0 0.0
        %2510 = vmatprep.subr.mxu0 0.0
        %2511 = vmatpush1.xpose.msra.mxu0 0.0
        %2512 = vmatprep.subr.mxu0 0.0
        %2513 = vmatpush1.xpose.msra.mxu0 0.0
        %2514 = vmatprep.subr.mxu0 0.0
        %2515 = vmatpush1.xpose.msra.mxu0 0.0
        %2516 = vmatprep.subr.mxu0 0.0
        %2517 = vmatpush1.xpose.msra.mxu0 0.0
        %2518 = vmatprep.subr.mxu0 0.0
        %2519 = vmatpush1.xpose.msra.mxu0 0.0
        %2520 = vmatprep.subr.mxu0 0.0
        %2521 = vmatpush1.xpose.msra.mxu0 0.0
        %2522 = vmatprep.subr.mxu0 0.0
        %2523 = vmatpush1.xpose.msra.mxu0 0.0
        %2524 = vmatprep.subr.mxu0 0.0
        %2525 = vmatpush1.xpose.msra.mxu0 0.0
        %2526 = vmatprep.subr.mxu0 0.0
        %2527 = vmatpush1.xpose.msra.mxu0 0.0
        %2528 = vmatprep.subr.mxu0 0.0
        %2529 = vmatpush1.xpose.msra.mxu0 0.0
        %2530 = vmatprep.mubr.f32.mxu0 0.0
        %2531 = vmatmul.mubr.f32.gmra.mrb[0].mxu0 %v1018
        %v2532 = vpop.f32.mrb[0].mxu0
        %v2533 = vadd.f32 0.0, %v2532
        %v2534 = vpop.f32.mrb[0].mxu0
        %2535 = vmatprep.mubr.f32.mxu0 0.0
        %2536 = vmatmul.mubr.f32.gmra.mrb[0].mxu0 %v1021
        %v2537 = vpop.f32.mrb[0].mxu0
        %v2538 = vadd.f32 0.0, %v2537
        %v2539 = vpop.f32.mrb[0].mxu0
        %2540 = vmatprep.mubr.f32.mxu0 0.0
        %2541 = vmatmul.mubr.f32.gmra.mrb[0].mxu0 %v1024
        %v2542 = vpop.f32.mrb[0].mxu0
        %v2543 = vadd.f32 0.0, %v2542
        %v2544 = vpop.f32.mrb[0].mxu0
        %2545 = vmatprep.mubr.f32.mxu0 0.0
        %2546 = vmatmul.mubr.f32.gmra.mrb[0].mxu0 %v1027
        %v2547 = vpop.f32.mrb[0].mxu0
        %v2548 = vadd.f32 0.0, %v2547
        %v2549 = vpop.f32.mrb[0].mxu0
        %2550 = vdwg.mxu0
        %v2551 = vtanh.pop %v2533
        %v2552 = vtanh.pop %v2538
        %v2553 = vtanh.pop %v2543
        %v2554 = vtanh.pop %v2548
        %v2555 = vsel %vm944, %v2551, -inf
        %v2556 = vsel %vm944, %v2552, -inf
        %v2557 = vsel %vm944, %v2553, -inf
        %v2558 = vsel %vm944, %v2554, -inf
        %v2559 = vmax.f32 %v2555, %v2556
        %v2560 = vmax.f32 %v2557, %v2558
        %v2561 = vmax.f32 %v2559, %v2560
        %v2562 = vrot.slane %v2561, 4
        %v2563 = vmax.f32 %v2561, %v2562
        %v2564 = vrot.slane %v2563, 2
        %v2565 = vmax.f32 %v2563, %v2564
        %v2566 = vrot.slane %v2565, 1
        %v2567 = vmax.f32 %v2565, %v2566
        %v2568 = vsel %vm944, %v2567, -inf
        %2569 = vmax.xlane.f32.xlu0 %v2568
        %v2570 = vpop.xlane.xlu0 %2569
        %v2571 = vsub.f32 %v2567, %v2570
        %v2572 = vmul.f32 %v2571, 1.442695
        %v2573 = vpow.pop %v2572
        %v2574 = vsel %vm944, %v2573, 0.0
        %2575 = vadd.xlane.f32.xlu0 %v2574
        %v2576 = vpop.xlane.xlu0 %2575
        %v2577 = vrcp.pop %v2576
        %v2578 = vmul.f32 %v2573, %v2577
        %v2580 = vsel %vm944, %v2578, 0
        %2582 = vmatprep.subr.mxu0 0.0
        %2583 = vmatpush1.msra.mxu0 %v936
        %2584 = vmatprep.subr.mxu0 0.0
        %2585 = vmatpush1.msra.mxu0 %v937
        %2586 = vmatprep.subr.mxu0 0.0
        %2587 = vmatpush1.msra.mxu0 %v938
        %2588 = vmatprep.subr.mxu0 0.0
        %2589 = vmatpush1.msra.mxu0 %v939
        %2590 = vmatprep.subr.mxu0 0.0
        %2591 = vmatpush1.msra.mxu0 0.0
        %2592 = vmatprep.subr.mxu0 0.0
        %2593 = vmatpush1.msra.mxu0 0.0
        %2594 = vmatprep.subr.mxu0 0.0
        %2595 = vmatpush1.msra.mxu0 0.0
        %2596 = vmatprep.subr.mxu0 0.0
        %2597 = vmatpush1.msra.mxu0 0.0
        %2598 = vmatprep.subr.mxu0 0.0
        %2599 = vmatpush1.msra.mxu0 0.0
        %2600 = vmatprep.subr.mxu0 0.0
        %2601 = vmatpush1.msra.mxu0 0.0
        %2602 = vmatprep.subr.mxu0 0.0
        %2603 = vmatpush1.msra.mxu0 0.0
        %2604 = vmatprep.subr.mxu0 0.0
        %2605 = vmatpush1.msra.mxu0 0.0
        %2606 = vmatprep.subr.mxu0 0.0
        %2607 = vmatpush1.msra.mxu0 0.0
        %2608 = vmatprep.subr.mxu0 0.0
        %2609 = vmatpush1.msra.mxu0 0.0
        %2610 = vmatprep.subr.mxu0 0.0
        %2611 = vmatpush1.msra.mxu0 0.0
        %2612 = vmatprep.subr.mxu0 0.0
        %2613 = vmatpush1.msra.mxu0 0.0
        %2614 = vmatprep.subr.mxu0 0.0
        %2615 = vmatpush1.msra.mxu0 0.0
        %2616 = vmatprep.subr.mxu0 0.0
        %2617 = vmatpush1.msra.mxu0 0.0
        %2618 = vmatprep.subr.mxu0 0.0
        %2619 = vmatpush1.msra.mxu0 0.0
        %2620 = vmatprep.subr.mxu0 0.0
        %2621 = vmatpush1.msra.mxu0 0.0
        %2622 = vmatprep.subr.mxu0 0.0
        %2623 = vmatpush1.msra.mxu0 0.0
        %2624 = vmatprep.subr.mxu0 0.0
        %2625 = vmatpush1.msra.mxu0 0.0
        %2626 = vmatprep.subr.mxu0 0.0
        %2627 = vmatpush1.msra.mxu0 0.0
        %2628 = vmatprep.subr.mxu0 0.0
        %2629 = vmatpush1.msra.mxu0 0.0
        %2630 = vmatprep.subr.mxu0 0.0
        %2631 = vmatpush1.msra.mxu0 0.0
        %2632 = vmatprep.subr.mxu0 0.0
        %2633 = vmatpush1.msra.mxu0 0.0
        %2634 = vmatprep.subr.mxu0 0.0
        %2635 = vmatpush1.msra.mxu0 0.0
        %2636 = vmatprep.subr.mxu0 0.0
        %2637 = vmatpush1.msra.mxu0 0.0
        %2638 = vmatprep.subr.mxu0 0.0
        %2639 = vmatpush1.msra.mxu0 0.0
        %2640 = vmatprep.subr.mxu0 0.0
        %2641 = vmatpush1.msra.mxu0 0.0
        %2642 = vmatprep.subr.mxu0 0.0
        %2643 = vmatpush1.msra.mxu0 0.0
        %2644 = vmatprep.subr.mxu0 0.0
        %2645 = vmatpush1.msra.mxu0 0.0
        %2646 = vmatprep.mubr.f32.mxu0 0.0
        %2647 = vmatmul.mubr.f32.gmra.mrb[0].mxu0 %v2580
        %v2648 = vpop.f32.mrb[0].mxu0
        %v2649 = vadd.f32 0.0, %v2648
        %v2650 = vpop.f32.mrb[0].mxu0
        %2651 = vdwg.mxu0
        %v2653 = vsel %vm944, %v1248, 0
        %v2656 = vsel %vm944, %v1253, 0
        %v2659 = vsel %vm944, %v1258, 0
        %v2662 = vsel %vm944, %v1263, 0
        %2664 = vmatprep.subr.mxu0 0.0
        %2665 = vmatpush1.xpose.msra.mxu0 %v2653
        %2666 = vmatprep.subr.mxu0 0.0
        %2667 = vmatpush1.xpose.msra.mxu0 %v2656
        %2668 = vmatprep.subr.mxu0 0.0
        %2669 = vmatpush1.xpose.msra.mxu0 %v2659
        %2670 = vmatprep.subr.mxu0 0.0
        %2671 = vmatpush1.xpose.msra.mxu0 %v2662
        %2672 = vmatprep.subr.mxu0 0.0
        %2673 = vmatpush1.xpose.msra.mxu0 0.0
        %2674 = vmatprep.subr.mxu0 0.0
        %2675 = vmatpush1.xpose.msra.mxu0 0.0
        %2676 = vmatprep.subr.mxu0 0.0
        %2677 = vmatpush1.xpose.msra.mxu0 0.0
        %2678 = vmatprep.subr.mxu0 0.0
        %2679 = vmatpush1.xpose.msra.mxu0 0.0
        %2680 = vmatprep.subr.mxu0 0.0
        %2681 = vmatpush1.xpose.msra.mxu0 0.0
        %2682 = vmatprep.subr.mxu0 0.0
        %2683 = vmatpush1.xpose.msra.mxu0 0.0
        %2684 = vmatprep.subr.mxu0 0.0
        %2685 = vmatpush1.xpose.msra.mxu0 0.0
        %2686 = vmatprep.subr.mxu0 0.0
        %2687 = vmatpush1.xpose.msra.mxu0 0.0
        %2688 = vmatprep.subr.mxu0 0.0
        %2689 = vmatpush1.xpose.msra.mxu0 0.0
        %2690 = vmatprep.subr.mxu0 0.0
        %2691 = vmatpush1.xpose.msra.mxu0 0.0
        %2692 = vmatprep.subr.mxu0 0.0
        %2693 = vmatpush1.xpose.msra.mxu0 0.0
        %2694 = vmatprep.subr.mxu0 0.0
        %2695 = vmatpush1.xpose.msra.mxu0 0.0
        %2696 = vmatprep.subr.mxu0 0.0
        %2697 = vmatpush1.xpose.msra.mxu0 0.0
        %2698 = vmatprep.subr.mxu0 0.0
        %2699 = vmatpush1.xpose.msra.mxu0 0.0
        %2700 = vmatprep.subr.mxu0 0.0
        %2701 = vmatpush1.xpose.msra.mxu0 0.0
        %2702 = vmatprep.subr.mxu0 0.0
        %2703 = vmatpush1.xpose.msra.mxu0 0.0
        %2704 = vmatprep.subr.mxu0 0.0
        %2705 = vmatpush1.xpose.msra.mxu0 0.0
        %2706 = vmatprep.subr.mxu0 0.0
        %2707 = vmatpush1.xpose.msra.mxu0 0.0
        %2708 = vmatprep.subr.mxu0 0.0
        %2709 = vmatpush1.xpose.msra.mxu0 0.0
        %2710 = vmatprep.subr.mxu0 0.0
        %2711 = vmatpush1.xpose.msra.mxu0 0.0
        %2712 = vmatprep.subr.mxu0 0.0
        %2713 = vmatpush1.xpose.msra.mxu0 0.0
        %2714 = vmatprep.subr.mxu0 0.0
        %2715 = vmatpush1.xpose.msra.mxu0 0.0
        %2716 = vmatprep.subr.mxu0 0.0
        %2717 = vmatpush1.xpose.msra.mxu0 0.0
        %2718 = vmatprep.subr.mxu0 0.0
        %2719 = vmatpush1.xpose.msra.mxu0 0.0
        %2720 = vmatprep.subr.mxu0 0.0
        %2721 = vmatpush1.xpose.msra.mxu0 0.0
        %2722 = vmatprep.subr.mxu0 0.0
        %2723 = vmatpush1.xpose.msra.mxu0 0.0
        %2724 = vmatprep.subr.mxu0 0.0
        %2725 = vmatpush1.xpose.msra.mxu0 0.0
        %2726 = vmatprep.subr.mxu0 0.0
        %2727 = vmatpush1.xpose.msra.mxu0 0.0
        %2728 = vmatprep.mubr.f32.mxu0 0.0
        %2729 = vmatmul.mubr.f32.gmra.mrb[0].mxu0 %v1030
        %v2730 = vpop.f32.mrb[0].mxu0
        %v2731 = vadd.f32 0.0, %v2730
        %v2732 = vpop.f32.mrb[0].mxu0
        %2733 = vmatprep.mubr.f32.mxu0 0.0
        %2734 = vmatmul.mubr.f32.gmra.mrb[0].mxu0 %v1033
        %v2735 = vpop.f32.mrb[0].mxu0
        %v2736 = vadd.f32 0.0, %v2735
        %v2737 = vpop.f32.mrb[0].mxu0
        %2738 = vmatprep.mubr.f32.mxu0 0.0
        %2739 = vmatmul.mubr.f32.gmra.mrb[0].mxu0 %v1036
        %v2740 = vpop.f32.mrb[0].mxu0
        %v2741 = vadd.f32 0.0, %v2740
        %v2742 = vpop.f32.mrb[0].mxu0
        %2743 = vmatprep.mubr.f32.mxu0 0.0
        %2744 = vmatmul.mubr.f32.gmra.mrb[0].mxu0 %v1039
        %v2745 = vpop.f32.mrb[0].mxu0
        %v2746 = vadd.f32 0.0, %v2745
        %v2747 = vpop.f32.mrb[0].mxu0
        %2748 = vdwg.mxu0
        %v2749 = vtanh.pop %v2731
        %v2750 = vtanh.pop %v2736
        %v2751 = vtanh.pop %v2741
        %v2752 = vtanh.pop %v2746
        %v2753 = vsel %vm944, %v2749, -inf
        %v2754 = vsel %vm944, %v2750, -inf
        %v2755 = vsel %vm944, %v2751, -inf
        %v2756 = vsel %vm944, %v2752, -inf
        %v2757 = vmax.f32 %v2753, %v2754
        %v2758 = vmax.f32 %v2755, %v2756
        %v2759 = vmax.f32 %v2757, %v2758
        %v2760 = vrot.slane %v2759, 4
        %v2761 = vmax.f32 %v2759, %v2760
        %v2762 = vrot.slane %v2761, 2
        %v2763 = vmax.f32 %v2761, %v2762
        %v2764 = vrot.slane %v2763, 1
        %v2765 = vmax.f32 %v2763, %v2764
        %v2766 = vsel %vm944, %v2765, -inf
        %2767 = vmax.xlane.f32.xlu0 %v2766
        %v2768 = vpop.xlane.xlu0 %2767
        %v2769 = vsub.f32 %v2765, %v2768
        %v2770 = vmul.f32 %v2769, 1.442695
        %v2771 = vpow.pop %v2770
        %v2772 = vsel %vm944, %v2771, 0.0
        %2773 = vadd.xlane.f32.xlu0 %v2772
        %v2774 = vpop.xlane.xlu0 %2773
        %v2775 = vrcp.pop %v2774
        %v2776 = vmul.f32 %v2771, %v2775
        %v2778 = vsel %vm944, %v2776, 0
        %2780 = vmatprep.subr.mxu0 0.0
        %2781 = vmatpush1.msra.mxu0 %v940
        %2782 = vmatprep.subr.mxu0 0.0
        %2783 = vmatpush1.msra.mxu0 %v941
        %2784 = vmatprep.subr.mxu0 0.0
        %2785 = vmatpush1.msra.mxu0 %v942
        %2786 = vmatprep.subr.mxu0 0.0
        %2787 = vmatpush1.msra.mxu0 %v943
        %2788 = vmatprep.subr.mxu0 0.0
        %2789 = vmatpush1.msra.mxu0 0.0
        %2790 = vmatprep.subr.mxu0 0.0
        %2791 = vmatpush1.msra.mxu0 0.0
        %2792 = vmatprep.subr.mxu0 0.0
        %2793 = vmatpush1.msra.mxu0 0.0
        %2794 = vmatprep.subr.mxu0 0.0
        %2795 = vmatpush1.msra.mxu0 0.0
        %2796 = vmatprep.subr.mxu0 0.0
        %2797 = vmatpush1.msra.mxu0 0.0
        %2798 = vmatprep.subr.mxu0 0.0
        %2799 = vmatpush1.msra.mxu0 0.0
        %2800 = vmatprep.subr.mxu0 0.0
        %2801 = vmatpush1.msra.mxu0 0.0
        %2802 = vmatprep.subr.mxu0 0.0
        %2803 = vmatpush1.msra.mxu0 0.0
        %2804 = vmatprep.subr.mxu0 0.0
        %2805 = vmatpush1.msra.mxu0 0.0
        %2806 = vmatprep.subr.mxu0 0.0
        %2807 = vmatpush1.msra.mxu0 0.0
        %2808 = vmatprep.subr.mxu0 0.0
        %2809 = vmatpush1.msra.mxu0 0.0
        %2810 = vmatprep.subr.mxu0 0.0
        %2811 = vmatpush1.msra.mxu0 0.0
        %2812 = vmatprep.subr.mxu0 0.0
        %2813 = vmatpush1.msra.mxu0 0.0
        %2814 = vmatprep.subr.mxu0 0.0
        %2815 = vmatpush1.msra.mxu0 0.0
        %2816 = vmatprep.subr.mxu0 0.0
        %2817 = vmatpush1.msra.mxu0 0.0
        %2818 = vmatprep.subr.mxu0 0.0
        %2819 = vmatpush1.msra.mxu0 0.0
        %2820 = vmatprep.subr.mxu0 0.0
        %2821 = vmatpush1.msra.mxu0 0.0
        %2822 = vmatprep.subr.mxu0 0.0
        %2823 = vmatpush1.msra.mxu0 0.0
        %2824 = vmatprep.subr.mxu0 0.0
        %2825 = vmatpush1.msra.mxu0 0.0
        %2826 = vmatprep.subr.mxu0 0.0
        %2827 = vmatpush1.msra.mxu0 0.0
        %2828 = vmatprep.subr.mxu0 0.0
        %2829 = vmatpush1.msra.mxu0 0.0
        %2830 = vmatprep.subr.mxu0 0.0
        %2831 = vmatpush1.msra.mxu0 0.0
        %2832 = vmatprep.subr.mxu0 0.0
        %2833 = vmatpush1.msra.mxu0 0.0
        %2834 = vmatprep.subr.mxu0 0.0
        %2835 = vmatpush1.msra.mxu0 0.0
        %2836 = vmatprep.subr.mxu0 0.0
        %2837 = vmatpush1.msra.mxu0 0.0
        %2838 = vmatprep.subr.mxu0 0.0
        %2839 = vmatpush1.msra.mxu0 0.0
        %2840 = vmatprep.subr.mxu0 0.0
        %2841 = vmatpush1.msra.mxu0 0.0
        %2842 = vmatprep.subr.mxu0 0.0
        %2843 = vmatpush1.msra.mxu0 0.0
        %2844 = vmatprep.mubr.f32.mxu0 0.0
        %2845 = vmatmul.mubr.f32.gmra.mrb[0].mxu0 %v2778
        %v2846 = vpop.f32.mrb[0].mxu0
        %v2847 = vadd.f32 0.0, %v2846
        %v2848 = vpop.f32.mrb[0].mxu0
        %2849 = vdwg.mxu0
        %vm2850 = vcmask 1040384
        %v2851 = vsel %vm2850, %v1390, %v1588
        %vm2852 = vcmask 1041408
        %v2853 = vsel %vm2852, %v2851, %v1786
        %vm2854 = vcmask 1042432
        %v2855 = vsel %vm2854, %v2853, %v1984
        %vm2856 = vcmask 1043456
        %v2857 = vsel %vm2856, %v2855, %v2182
        %vm2858 = vcmask 1044480
        %v2859 = vsel %vm2858, %v2857, %v2380
        %vm2860 = vcmask 1045504
        %v2861 = vsel %vm2860, %v2859, %v2578
        %vm2862 = vcmask 1046528
        %v2863 = vsel %vm2862, %v2861, %v2776
        %v2865 = vrot.slane %v1659, 7
        %v2868 = vrot.slane %v1857, 6
        %v2871 = vrot.slane %v2055, 5
        %v2874 = vrot.slane %v2253, 4
        %v2877 = vrot.slane %v2451, 3
        %v2880 = vrot.slane %v2649, 2
        %v2883 = vrot.slane %v2847, 1
        %v2885 = vsel %vm2850, %v1461, %v2865
        %v2886 = vsel %vm2852, %v2885, %v2868
        %v2887 = vsel %vm2854, %v2886, %v2871
        %v2888 = vsel %vm2856, %v2887, %v2874
        %v2889 = vsel %vm2858, %v2888, %v2877
        %v2890 = vsel %vm2860, %v2889, %v2880
        %v2891 = vsel %vm2862, %v2890, %v2883
        %2896 = vrot.lane.b32.xlu0 %v279, 96
        %v2897 = vpop.permute.xlu0 %2896
        %2898 = vrot.lane.b32.xlu0 %v280, 96
        %v2899 = vpop.permute.xlu0 %2898
        %2900 = vrot.lane.b32.xlu0 %v281, 96
        %v2901 = vpop.permute.xlu0 %2900
        %2902 = vrot.lane.b32.xlu0 %v282, 96
        %v2903 = vpop.permute.xlu0 %2902
        %2908 = vrot.lane.b32.xlu0 %v300, 32
        %v2909 = vpop.permute.xlu0 %2908
        %v2912 = vsel %vm944, %v2891, 0
        %2914 = vmatprep.subr.mxu0 0.0
        %2915 = vmatpush1.msra.mxu0 %v2897
        %2916 = vmatprep.subr.mxu0 0.0
        %2917 = vmatpush1.msra.mxu0 %v2899
        %2918 = vmatprep.subr.mxu0 0.0
        %2919 = vmatpush1.msra.mxu0 %v2901
        %2920 = vmatprep.subr.mxu0 0.0
        %2921 = vmatpush1.msra.mxu0 %v2903
        %2922 = vmatprep.subr.mxu0 0.0
        %2923 = vmatpush1.msra.mxu0 0.0
        %2924 = vmatprep.subr.mxu0 0.0
        %2925 = vmatpush1.msra.mxu0 0.0
        %2926 = vmatprep.subr.mxu0 0.0
        %2927 = vmatpush1.msra.mxu0 0.0
        %2928 = vmatprep.subr.mxu0 0.0
        %2929 = vmatpush1.msra.mxu0 0.0
        %2930 = vmatprep.subr.mxu0 0.0
        %2931 = vmatpush1.msra.mxu0 0.0
        %2932 = vmatprep.subr.mxu0 0.0
        %2933 = vmatpush1.msra.mxu0 0.0
        %2934 = vmatprep.subr.mxu0 0.0
        %2935 = vmatpush1.msra.mxu0 0.0
        %2936 = vmatprep.subr.mxu0 0.0
        %2937 = vmatpush1.msra.mxu0 0.0
        %2938 = vmatprep.subr.mxu0 0.0
        %2939 = vmatpush1.msra.mxu0 0.0
        %2940 = vmatprep.subr.mxu0 0.0
        %2941 = vmatpush1.msra.mxu0 0.0
        %2942 = vmatprep.subr.mxu0 0.0
        %2943 = vmatpush1.msra.mxu0 0.0
        %2944 = vmatprep.subr.mxu0 0.0
        %2945 = vmatpush1.msra.mxu0 0.0
        %2946 = vmatprep.subr.mxu0 0.0
        %2947 = vmatpush1.msra.mxu0 0.0
        %2948 = vmatprep.subr.mxu0 0.0
        %2949 = vmatpush1.msra.mxu0 0.0
        %2950 = vmatprep.subr.mxu0 0.0
        %2951 = vmatpush1.msra.mxu0 0.0
        %2952 = vmatprep.subr.mxu0 0.0
        %2953 = vmatpush1.msra.mxu0 0.0
        %2954 = vmatprep.subr.mxu0 0.0
        %2955 = vmatpush1.msra.mxu0 0.0
        %2956 = vmatprep.subr.mxu0 0.0
        %2957 = vmatpush1.msra.mxu0 0.0
        %2958 = vmatprep.subr.mxu0 0.0
        %2959 = vmatpush1.msra.mxu0 0.0
        %2960 = vmatprep.subr.mxu0 0.0
        %2961 = vmatpush1.msra.mxu0 0.0
        %2962 = vmatprep.subr.mxu0 0.0
        %2963 = vmatpush1.msra.mxu0 0.0
        %2964 = vmatprep.subr.mxu0 0.0
        %2965 = vmatpush1.msra.mxu0 0.0
        %2966 = vmatprep.subr.mxu0 0.0
        %2967 = vmatpush1.msra.mxu0 0.0
        %2968 = vmatprep.subr.mxu0 0.0
        %2969 = vmatpush1.msra.mxu0 0.0
        %2970 = vmatprep.subr.mxu0 0.0
        %2971 = vmatpush1.msra.mxu0 0.0
        %2972 = vmatprep.subr.mxu0 0.0
        %2973 = vmatpush1.msra.mxu0 0.0
        %2974 = vmatprep.subr.mxu0 0.0
        %2975 = vmatpush1.msra.mxu0 0.0
        %2976 = vmatprep.subr.mxu0 0.0
        %2977 = vmatpush1.msra.mxu0 0.0
        %2978 = vmatprep.mubr.f32.mxu0 0.0
        %2979 = vmatmul.mubr.f32.gmra.mrb[0].mxu0 %v2912
        %v2980 = vpop.f32.mrb[0].mxu0
        %v2981 = vadd.f32 %v2909, %v2980
        %v2982 = vpop.f32.mrb[0].mxu0
        %2983 = vdwg.mxu0
        %2985 = vrot.lane.b32.xlu0 %v2863, 8
        %v2986 = vpop.permute.xlu0 %2985
        %vm2988 = vcmask 64512
        %v2989 = vsel %vm2988, %v2981, %v2986
        %vm2990 = vcmask 326656
        %2991 = vst.msk [vmem:[%s245] sm:$0xff] %vm2990, %v2989
        %s2992 = sand.u32 %s119, 1
        %s2993 = scalar_lea.sflag [#allocation4], %s2992
        %s2994 = sand.u32 %s119, 1
        %s2995 = smul.addr %s2994, 8
        %s2996 = scalar_lea.vmem [#allocation8], %s2995
        // Predicated region
        $region49: #{tpu_custom_call.1} parent=35 // pred_check
          %p2997 = pneg %p129
        $region50: #{tpu_custom_call.1} parent=35 // pred_check_branch
          %2999 = sbr.rel (%p2997) target = $region52
        $region51: #{tpu_custom_call.1} parent=35 // pred_region
          %s3001 = ssub.s32 128, 128
          %3002 = vsyncadd %s2993, %s3001
          %s3003 = smul.addr %s22, 128
          %s3004 = scalar_lea.hbm %s4, %s3003
          %s3006 = sshll.u32 %s2996, 4
          %s3007 = int_to_ptr.vmem [resolvable:$true] %s3006
          %3009 = dma.vmem_to_hbm [thread:$0]  %s3007, 128, %s3004, %s2993
        $region52: #{tpu_custom_call.1} parent=35 // pred_fallthru
          _
      $region36: #{tpu_custom_call.1} parent=5 // pred_fallthru
        _
      %p3010 = scmp.le.s32.totalorder 2, %s17
      // Predicated region
      $region53: #{tpu_custom_call.1} parent=5 // pred_check
        %p3011 = pneg %p3010
      $region54: #{tpu_custom_call.1} parent=5 // pred_check_branch
        %3013 = sbr.rel (%p3011) target = $region56
      $region55: #{tpu_custom_call.1} parent=5 // pred_region
        %s3014 = ssub.s32 %s17, 2
        // Predicated region
        $region57: #{tpu_custom_call.1} parent=55 // pred_check
          %p3015 = pneg %p135
        $region58: #{tpu_custom_call.1} parent=55 // pred_check_branch
          %3017 = sbr.rel (%p3015) target = $region60
        $region59: #{tpu_custom_call.1} parent=55 // pred_region
          %s3018 = sand.u32 %s120, 1
          %s3019 = scalar_lea.sflag [#allocation4], %s3018
          %s3020 = sand.u32 %s120, 1
          %s3021 = smul.addr %s3020, 8
          %s3022 = scalar_lea.vmem [#allocation8], %s3021
          %3023 = dma.done %s3019, 128
        $region60: #{tpu_custom_call.1} parent=55 // pred_fallthru
          _
      $region56: #{tpu_custom_call.1} parent=5 // pred_fallthru
        _
    $region6: #{tpu_custom_call.1} parent=1 // loop_footer
      %s21 = sadd.s32 1, %s17
    $region7: #{tpu_custom_call.1} parent=1 // loop_footer_branch
      %16 = sbr.rel target = $region3
    $region8: #{tpu_custom_call.1} parent=1 // loop_exit
      _
    %3024 = vsyncpa [#allocation3], 1
    %s3025 = scalar_lea.sflag [#allocation3], 1
    %3026 = vsyncpa %s3025, 1
    %3027 = vsyncpa [#allocation6], 1
    %3028 = vsyncpa [#allocation4], 1
    %s3029 = scalar_lea.sflag [#allocation4], 1
    %3030 = vsyncpa %s3029, 1

</llo_original>
